<compile_context>
chip_gen: v7x
topology: tpu7x:2x2x1
jax: 0.10.0
libtpu: 0.0.40
codegen_flags: <defaults>
</compile_context>

<pallas_src>
import functools

import jax
import jax.numpy as jnp
from jax.experimental import pallas as pl
from jax.experimental.pallas import tpu as pltpu

HEAD_OUT = 9 * 5       # 45 box-channels
HEAD_OUT_PAD = 128     # lane-dense padded output width


# ---------------------------------------------------------------------------
# generate_coord (exact port of the PyTorch helper, torch.meshgrid 'ij')
# ---------------------------------------------------------------------------
def generate_coord(batch, height, width):
    xv, yv = jnp.meshgrid(jnp.arange(height), jnp.arange(width), indexing="ij")
    xv = xv.astype(jnp.float32)
    yv = yv.astype(jnp.float32)
    xv_min = (xv * 2 - width) / width
    yv_min = (yv * 2 - height) / height
    xv_max = ((xv + 1) * 2 - width) / width
    yv_max = ((yv + 1) * 2 - height) / height
    xv_ctr = (xv_min + xv_max) / 2
    yv_ctr = (yv_min + yv_max) / 2
    hmap = jnp.ones((height, width), jnp.float32) * (1.0 / height)
    wmap = jnp.ones((height, width), jnp.float32) * (1.0 / width)
    coord = jnp.stack(
        [xv_min, yv_min, xv_max, yv_max, xv_ctr, yv_ctr, hmap, wmap], axis=0
    )
    coord = jnp.broadcast_to(coord[None], (batch, 8, height, width))
    return coord


def _elementwise_bf16_ok():
    """bf16 VALU exists on v6e/v7x; v5e and older run the f32 path."""
    try:
        kind = jax.devices()[0].device_kind.lower()
    except Exception:
        return False
    return not any(t in kind for t in ("v2", "v3", "v4", "v5"))


# ---------------------------------------------------------------------------
# Fused Pallas kernel: one grid step == one batch element.
#   visual: mapping_visu (1x1 conv, BN pre-folded) + ReLU -> L2 normalize
#           -> fcn_out (ConvBNReLU emb->emb//2 + Conv emb//2 -> 45[pad 128])
#   lang:   mapping_lang (Linear->ReLU->Dropout(eval)->Linear->ReLU)
#           -> per-token L2 normalize -> prefix-token mask
# ---------------------------------------------------------------------------
def _fused_kernel(x_ref, fw_ref, m_ref,
                  wv_ref, bv_ref,
                  w1_ref, b1_ref, w2_ref, b2_ref,
                  lw1_ref, lb1_ref, lw2_ref, lb2_ref,
                  o_ref, fo_ref, *, ew_bf16):
    # ----------------- visual branch ------------------------------------
    x = x_ref[...].astype(jnp.bfloat16)                       # (C, HW), in-kernel cast
    # fvisu[hw, e] = sum_c x[c, hw] * Wv[c, e]  (BN scale already folded into Wv;
    # contraction over the sublane axis — any vxpose lands in the XLU slot)
    y = jax.lax.dot_general(x, wv_ref[...], (((0,), (0,)), ((), ())),
                            preferred_element_type=jnp.float32)  # (HW, emb) f32
    if ew_bf16:
        # bias+ReLU+square+normalize-mul in bf16; sumsq accumulation / rsqrt in f32
        yb = jnp.maximum(y.astype(jnp.bfloat16) + bv_ref[...].astype(jnp.bfloat16),
                         0.0)
        ssq = jnp.sum(jnp.square(yb), axis=-1, keepdims=True, dtype=jnp.float32)
        inv = jax.lax.rsqrt(jnp.maximum(ssq, 1e-24))           # == F.normalize eps
        yn = yb * inv.astype(jnp.bfloat16)
    else:
        yb = jnp.maximum(y + bv_ref[...], 0.0)
        ssq = jnp.sum(jnp.square(yb), axis=-1, keepdims=True)
        inv = jax.lax.rsqrt(jnp.maximum(ssq, 1e-24))
        yn = (yb * inv).astype(jnp.bfloat16)

    # TODO(synk): FiLMedConvBlock_multihop (external, no source) would act here;
    # the normalized visual feature feeds straight into the detection head.
    h = jnp.dot(yn, w1_ref[...], preferred_element_type=jnp.float32)   # (HW, half)
    h = jnp.maximum(h + b1_ref[...], 0.0).astype(jnp.bfloat16)         # BN folded
    o_ref[...] = jnp.dot(h, w2_ref[...],
                         preferred_element_type=jnp.float32) + b2_ref[...]

    # ----------------- language branch ----------------------------------
    fw = fw_ref[...].astype(jnp.bfloat16)                      # (T, D), in-kernel cast
    hl = jnp.dot(fw, lw1_ref[...],
                 preferred_element_type=jnp.float32) + lb1_ref[...]
    hl = jnp.maximum(hl, 0.0)                                   # Dropout(eval) = id
    hl = jnp.dot(hl.astype(jnp.bfloat16), lw2_ref[...],
                 preferred_element_type=jnp.float32) + lb2_ref[...]
    hl = jnp.maximum(hl, 0.0)
    ssl = jnp.sum(hl * hl, axis=-1, keepdims=True)
    hl = hl * jax.lax.rsqrt(jnp.maximum(ssl, 1e-24))
    fo_ref[...] = hl * m_ref[...]


# ---------------------------------------------------------------------------
# pallas_call wrapper: single fused launch, grid over batch ("parallel")
# ---------------------------------------------------------------------------
def fused_visu_lang(raw_fvisu_nchw, raw_fword, tok_mask, p):
    B, C, H, W = raw_fvisu_nchw.shape
    HW = H * W
    _, T, D = raw_fword.shape
    emb = p["visu_w"].shape[1]
    half = p["head_w1"].shape[1]
    cout = p["head_w2"].shape[1]          # padded to HEAD_OUT_PAD

    x = raw_fvisu_nchw.reshape(B, C, HW)  # free view of NCHW, no XLA transpose
    ew = _elementwise_bf16_ok()

    out_rows, fword_rows = pl.pallas_call(
        functools.partial(_fused_kernel, ew_bf16=ew),
        out_shape=(
            jax.ShapeDtypeStruct((B, HW, cout), jnp.float32),
            jax.ShapeDtypeStruct((B, T, emb), jnp.float32),
        ),
        grid=(B,),
        in_specs=[
            pl.BlockSpec((None, C, HW), lambda b: (b, 0, 0)),    # visual feature
            pl.BlockSpec((None, T, D), lambda b: (b, 0, 0)),     # token features
            pl.BlockSpec((None, T, 1), lambda b: (b, 0, 0)),     # prefix token mask
            pl.BlockSpec((C, emb), lambda b: (0, 0)),            # visu_w (BN folded)
            pl.BlockSpec((1, emb), lambda b: (0, 0)),            # visu_b
            pl.BlockSpec((emb, half), lambda b: (0, 0)),         # head_w1 (BN folded)
            pl.BlockSpec((1, half), lambda b: (0, 0)),           # head_b1
            pl.BlockSpec((half, cout), lambda b: (0, 0)),        # head_w2 (pad 128)
            pl.BlockSpec((1, cout), lambda b: (0, 0)),           # head_b2
            pl.BlockSpec((D, emb), lambda b: (0, 0)),            # lang_w1
            pl.BlockSpec((1, emb), lambda b: (0, 0)),            # lang_b1
            pl.BlockSpec((emb, emb), lambda b: (0, 0)),          # lang_w2
            pl.BlockSpec((1, emb), lambda b: (0, 0)),            # lang_b2
        ],
        out_specs=(
            pl.BlockSpec((None, HW, cout), lambda b: (b, 0, 0)),
            pl.BlockSpec((None, T, emb), lambda b: (b, 0, 0)),
        ),
        compiler_params=pltpu.CompilerParams(
            dimension_semantics=("parallel",)),   # v7x: one image per TensorCore
    )(x, raw_fword, tok_mask,
      p["visu_w"], p["visu_b"],
      p["head_w1"], p["head_b1"], p["head_w2"], p["head_b2"],
      p["lang_w1"], p["lang_b1"], p["lang_w2"], p["lang_b2"])
    return out_rows, fword_rows


# ---------------------------------------------------------------------------
# Parameter construction (deterministic, synthetic, inference-ready:
# BN scales folded into weights in f32, matmul weights in bf16,
# head output padded to 128 lanes)
# ---------------------------------------------------------------------------
def fold_bn(gamma, beta, mean, var, eps=1e-5):
    scale = gamma / jnp.sqrt(var + eps)
    bias = beta - mean * scale
    return scale, bias


def init_params(key, visu_in=256, emb=256, textdim=768):
    ks = jax.random.split(key, 12)
    p = {}
    # mapping_visu: ConvBatchNormReLU(visu_in -> emb, k=1); fold BN scale into
    # the weight columns (f32) BEFORE the bf16 cast.
    wv = jax.random.normal(ks[0], (visu_in, emb), jnp.float32) * 0.02
    g = 1.0 + 0.01 * jax.random.normal(ks[1], (emb,), jnp.float32)
    b = 0.01 * jax.random.normal(ks[2], (emb,), jnp.float32)
    m = 0.01 * jax.random.normal(ks[3], (emb,), jnp.float32)
    v = jnp.ones((emb,), jnp.float32)
    s, bb = fold_bn(g, b, m, v)
    p["visu_w"] = (wv * s[None, :]).astype(jnp.bfloat16)
    p["visu_b"] = bb[None, :]
    # mapping_lang: Linear(textdim, emb), Linear(emb, emb)
    p["lang_w1"] = (jax.random.normal(ks[4], (textdim, emb), jnp.float32)
                    * 0.02).astype(jnp.bfloat16)
    p["lang_b1"] = jnp.zeros((1, emb), jnp.float32)
    p["lang_w2"] = (jax.random.normal(ks[5], (emb, emb), jnp.float32)
                    * 0.02).astype(jnp.bfloat16)
    p["lang_b2"] = jnp.zeros((1, emb), jnp.float32)
    # fcn_out: ConvBatchNormReLU(emb -> emb//2) + Conv2d(emb//2 -> 45)
    half = emb // 2
    w1 = jax.random.normal(ks[6], (emb, half), jnp.float32) * 0.02
    g2 = 1.0 + 0.01 * jax.random.normal(ks[7], (half,), jnp.float32)
    b2 = 0.01 * jax.random.normal(ks[8], (half,), jnp.float32)
    m2 = 0.01 * jax.random.normal(ks[9], (half,), jnp.float32)
    v2 = jnp.ones((half,), jnp.float32)
    s2, bb2 = fold_bn(g2, b2, m2, v2)
    p["head_w1"] = (w1 * s2[None, :]).astype(jnp.bfloat16)
    p["head_b1"] = bb2[None, :]
    w2 = jax.random.normal(ks[10], (half, HEAD_OUT), jnp.float32) * 0.02
    c2 = 0.01 * jax.random.normal(ks[11], (1, HEAD_OUT), jnp.float32)
    # zero-pad output columns 45 -> 128 for lane-dense stores; sliced back later
    p["head_w2"] = jnp.pad(
        w2, ((0, 0), (0, HEAD_OUT_PAD - HEAD_OUT))).astype(jnp.bfloat16)
    p["head_b2"] = jnp.pad(c2, ((0, 0), (0, HEAD_OUT_PAD - HEAD_OUT)))
    return p


# ---------------------------------------------------------------------------
# Forward pass (grounding_model_multihop, default flags:
# mstage=False, intmd=False, convlstm=False, leaky=False, eval mode)
# ---------------------------------------------------------------------------
@jax.jit
def grounding_forward(raw_fvisu_nchw, raw_fword, word_mask, params):
    B, C, H, W = raw_fvisu_nchw.shape
    _, T, D = raw_fword.shape
    emb = params["visu_w"].shape[1]

    # Prefix token mask.  NOTE: the PyTorch reference fills fword[ii, :ntoken]
    # with ntoken = (word_mask[ii] != 0).sum(), i.e. prefix semantics, so this
    # matches the original even though it is built from the count.
    ntoken = jnp.sum((word_mask != 0).astype(jnp.int32), axis=1)          # (B,)
    pos = jnp.arange(T)[None, :]
    tok_mask = (pos < ntoken[:, None]).astype(jnp.float32)[..., None]     # (B,T,1)

    # ---- single fused Pallas launch: visual mapping + head, lang mapping ----
    # NOTE: bf16 MXU operands (f32 accumulation) are a numerical deviation from
    # the f32 PyTorch conv path; acceptable for inference.
    out_rows, fword_rows = fused_visu_lang(
        raw_fvisu_nchw, raw_fword, tok_mask, params)
    # (B, H*W, 128) -> (B, 45, H, W)   (tiny: ~92 KiB of glue)
    outbox = jnp.transpose(
        out_rows[:, :, :HEAD_OUT].reshape(B, H, W, HEAD_OUT), (0, 3, 1, 2))
    raw_fword_out = fword_rows                                            # (B,T,emb)

    # ---- coordinate map (glue) ----
    coord = generate_coord(B, H, W)  # (B, 8, H, W)

    # TODO(synk): FiLMedConvBlock_multihop is an external module (no source);
    # no attention scores are produced.
    attnscore_list = []

    # Original module returns (outbox, attnscore_list); the mapped word
    # features and coord map are exposed as well for verification.
    return [outbox], attnscore_list, raw_fword_out, coord


# ---------------------------------------------------------------------------
if __name__ == "__main__":
    key = jax.random.PRNGKey(0)
    k_feat, k_word, k_par = jax.random.split(key, 3)

    B, C_VISU, H, W = 2, 256, 16, 16      # Darknet stage-2 feature stand-in
    T, TEXTDIM, EMB = 8, 768, 256         # bert-base: textdim=768, emb_size=256

    raw_fvisu = jax.random.normal(k_feat, (B, C_VISU, H, W), jnp.float32)
    raw_fword = jax.random.normal(k_word, (B, T, TEXTDIM), jnp.float32)
    word_mask = jnp.array(
        [[1, 1, 1, 1, 1, 0, 0, 0],
         [1, 1, 1, 1, 1, 1, 1, 1]], dtype=jnp.int32
    )

    params = init_params(k_par, visu_in=C_VISU, emb=EMB, textdim=TEXTDIM)

    outbox, attnscore_list, fword, coord = grounding_forward(
        raw_fvisu, raw_fword, word_mask, params
    )
    jax.block_until_ready(outbox[0])
    jax.block_until_ready(fword)
    jax.block_until_ready(coord)

    assert outbox[0].shape == (B, 45, H, W)
    assert fword.shape == (B, T, EMB)
    assert coord.shape == (B, 8, H, W)
    print("KERNEL_OK")
</pallas_src>

<mosaic_0001>
module attributes {stable_mosaic.version = 11 : i64} {
  func.func @_fused_kernel(%arg0: i32, %arg1: memref<1x256x256xf32, #tpu.memory_space<vmem>>, %arg2: memref<1x8x768xf32, #tpu.memory_space<vmem>>, %arg3: memref<1x8x1xf32, #tpu.memory_space<vmem>>, %arg4: memref<256x256xbf16, #tpu.memory_space<vmem>>, %arg5: memref<1x256xf32, #tpu.memory_space<vmem>>, %arg6: memref<256x128xbf16, #tpu.memory_space<vmem>>, %arg7: memref<1x128xf32, #tpu.memory_space<vmem>>, %arg8: memref<128x128xbf16, #tpu.memory_space<vmem>>, %arg9: memref<1x128xf32, #tpu.memory_space<vmem>>, %arg10: memref<768x256xbf16, #tpu.memory_space<vmem>>, %arg11: memref<1x256xf32, #tpu.memory_space<vmem>>, %arg12: memref<256x256xbf16, #tpu.memory_space<vmem>>, %arg13: memref<1x256xf32, #tpu.memory_space<vmem>>, %arg14: memref<1x256x128xf32, #tpu.memory_space<vmem>>, %arg15: memref<1x8x256xf32, #tpu.memory_space<vmem>>) attributes {dimension_semantics = [#tpu.dimension_semantics<parallel>], iteration_bounds = array<i64: 2>, scalar_prefetch = 0 : i64, scratch_operands = 0 : i64, tpu.core_type = #tpu.core_type<tc>, window_params = [{transform_indices = @transform_0, window_bounds = array<i64: 1, 256, 256>}, {transform_indices = @transform_1, window_bounds = array<i64: 1, 8, 768>}, {transform_indices = @transform_2, window_bounds = array<i64: 1, 8, 1>}, {pipeline_mode = #tpu.pipeline_mode<synchronous>, transform_indices = @transform_3, window_bounds = array<i64: 256, 256>}, {pipeline_mode = #tpu.pipeline_mode<synchronous>, transform_indices = @transform_4, window_bounds = array<i64: 1, 256>}, {pipeline_mode = #tpu.pipeline_mode<synchronous>, transform_indices = @transform_5, window_bounds = array<i64: 256, 128>}, {pipeline_mode = #tpu.pipeline_mode<synchronous>, transform_indices = @transform_6, window_bounds = array<i64: 1, 128>}, {pipeline_mode = #tpu.pipeline_mode<synchronous>, transform_indices = @transform_7, window_bounds = array<i64: 128, 128>}, {pipeline_mode = #tpu.pipeline_mode<synchronous>, transform_indices = @transform_8, window_bounds = array<i64: 1, 128>}, {pipeline_mode = #tpu.pipeline_mode<synchronous>, transform_indices = @transform_9, window_bounds = array<i64: 768, 256>}, {pipeline_mode = #tpu.pipeline_mode<synchronous>, transform_indices = @transform_10, window_bounds = array<i64: 1, 256>}, {pipeline_mode = #tpu.pipeline_mode<synchronous>, transform_indices = @transform_11, window_bounds = array<i64: 256, 256>}, {pipeline_mode = #tpu.pipeline_mode<synchronous>, transform_indices = @transform_12, window_bounds = array<i64: 1, 256>}, {transform_indices = @transform_13, window_bounds = array<i64: 1, 256, 128>}, {transform_indices = @transform_14, window_bounds = array<i64: 1, 8, 256>}]} {
    %c0 = arith.constant 0 : index
    %c0_0 = arith.constant 0 : index
    %c0_1 = arith.constant 0 : index
    %0 = vector.load %arg1[%c0, %c0_0, %c0_1] : memref<1x256x256xf32, #tpu.memory_space<vmem>>, vector<1x256x256xf32>
    %1 = vector.shape_cast %0 : vector<1x256x256xf32> to vector<256x256xf32>
    %2 = arith.truncf %1 : vector<256x256xf32> to vector<256x256xbf16>
    %c0_2 = arith.constant 0 : index
    %c0_3 = arith.constant 0 : index
    %3 = vector.load %arg4[%c0_2, %c0_3] : memref<256x256xbf16, #tpu.memory_space<vmem>>, vector<256x256xbf16>
    %cst = arith.constant dense<0.000000e+00> : vector<256x256xf32>
    %4 = tpu.matmul %2, %3, %cst {dimension_numbers = #tpu.dot_dimension_numbers<[0], [0], [1], [1], [0, 1, 1, 1], [], []>} : vector<256x256xbf16>, vector<256x256xbf16>, vector<256x256xf32> -> vector<256x256xf32>
    %5 = arith.truncf %4 : vector<256x256xf32> to vector<256x256xbf16>
    %c0_4 = arith.constant 0 : index
    %c0_5 = arith.constant 0 : index
    %6 = vector.load %arg5[%c0_4, %c0_5] : memref<1x256xf32, #tpu.memory_space<vmem>>, vector<1x256xf32>
    %7 = arith.truncf %6 : vector<1x256xf32> to vector<1x256xbf16>
    %8 = vector.broadcast %7 : vector<1x256xbf16> to vector<256x256xbf16>
    %9 = arith.addf %5, %8 : vector<256x256xbf16>
    %cst_6 = arith.constant 0.000000e+00 : bf16
    %10 = vector.broadcast %cst_6 : bf16 to vector<256x256xbf16>
    %11 = arith.maximumf %9, %10 : vector<256x256xbf16>
    %12 = arith.mulf %11, %11 : vector<256x256xbf16>
    %13 = arith.extf %12 : vector<256x256xbf16> to vector<256x256xf32>
    %cst_7 = arith.constant dense<0.000000e+00> : vector<256xf32>
    %14 = vector.multi_reduction <add>, %13, %cst_7 [1] : vector<256x256xf32> to vector<256xf32>
    %15 = vector.shape_cast %14 : vector<256xf32> to vector<256x1xf32>
    %cst_8 = arith.constant 1.000000e-24 : f32
    %16 = vector.broadcast %cst_8 : f32 to vector<256x1xf32>
    %17 = arith.maximumf %15, %16 : vector<256x1xf32>
    %18 = math.rsqrt %17 : vector<256x1xf32>
    %19 = arith.truncf %18 : vector<256x1xf32> to vector<256x1xbf16>
    %20 = vector.broadcast %19 : vector<256x1xbf16> to vector<256x256xbf16>
    %21 = arith.mulf %11, %20 : vector<256x256xbf16>
    %c0_9 = arith.constant 0 : index
    %c0_10 = arith.constant 0 : index
    %22 = vector.load %arg6[%c0_9, %c0_10] : memref<256x128xbf16, #tpu.memory_space<vmem>>, vector<256x128xbf16>
    %cst_11 = arith.constant dense<0.000000e+00> : vector<256x128xf32>
    %23 = tpu.matmul %21, %22, %cst_11 {dimension_numbers = #tpu.dot_dimension_numbers<[1], [0], [0], [1], [0, 0, 1, 1], [], []>} : vector<256x256xbf16>, vector<256x128xbf16>, vector<256x128xf32> -> vector<256x128xf32>
    %c0_12 = arith.constant 0 : index
    %c0_13 = arith.constant 0 : index
    %24 = vector.load %arg7[%c0_12, %c0_13] : memref<1x128xf32, #tpu.memory_space<vmem>>, vector<1x128xf32>
    %25 = vector.broadcast %24 : vector<1x128xf32> to vector<256x128xf32>
    %26 = arith.addf %23, %25 : vector<256x128xf32>
    %cst_14 = arith.constant 0.000000e+00 : f32
    %27 = vector.broadcast %cst_14 : f32 to vector<256x128xf32>
    %28 = arith.maximumf %26, %27 : vector<256x128xf32>
    %29 = arith.truncf %28 : vector<256x128xf32> to vector<256x128xbf16>
    %c0_15 = arith.constant 0 : index
    %c0_16 = arith.constant 0 : index
    %30 = vector.load %arg8[%c0_15, %c0_16] : memref<128x128xbf16, #tpu.memory_space<vmem>>, vector<128x128xbf16>
    %cst_17 = arith.constant dense<0.000000e+00> : vector<256x128xf32>
    %31 = tpu.matmul %29, %30, %cst_17 {dimension_numbers = #tpu.dot_dimension_numbers<[1], [0], [0], [1], [0, 0, 1, 1], [], []>} : vector<256x128xbf16>, vector<128x128xbf16>, vector<256x128xf32> -> vector<256x128xf32>
    %c0_18 = arith.constant 0 : index
    %c0_19 = arith.constant 0 : index
    %32 = vector.load %arg9[%c0_18, %c0_19] : memref<1x128xf32, #tpu.memory_space<vmem>>, vector<1x128xf32>
    %33 = vector.broadcast %32 : vector<1x128xf32> to vector<256x128xf32>
    %34 = arith.addf %31, %33 : vector<256x128xf32>
    %c0_20 = arith.constant 0 : index
    %c0_21 = arith.constant 0 : index
    %c0_22 = arith.constant 0 : index
    %35 = vector.load %arg14[%c0_20, %c0_21, %c0_22] : memref<1x256x128xf32, #tpu.memory_space<vmem>>, vector<1x256x128xf32>
    %36 = vector.shape_cast %35 : vector<1x256x128xf32> to vector<256x128xf32>
    %37 = vector.shape_cast %34 : vector<256x128xf32> to vector<1x256x128xf32>
    tpu.vector_store %arg14[%c0_20, %c0_21, %c0_22], %37 {strides = array<i32>} : memref<1x256x128xf32, #tpu.memory_space<vmem>>, vector<1x256x128xf32>,
    %c0_23 = arith.constant 0 : index
    %c0_24 = arith.constant 0 : index
    %c0_25 = arith.constant 0 : index
    %38 = vector.load %arg2[%c0_23, %c0_24, %c0_25] : memref<1x8x768xf32, #tpu.memory_space<vmem>>, vector<1x8x768xf32>
    %39 = vector.shape_cast %38 : vector<1x8x768xf32> to vector<8x768xf32>
    %40 = arith.truncf %39 : vector<8x768xf32> to vector<8x768xbf16>
    %c0_26 = arith.constant 0 : index
    %c0_27 = arith.constant 0 : index
    %41 = vector.load %arg10[%c0_26, %c0_27] : memref<768x256xbf16, #tpu.memory_space<vmem>>, vector<768x256xbf16>
    %cst_28 = arith.constant dense<0.000000e+00> : vector<8x256xf32>
    %42 = tpu.matmul %40, %41, %cst_28 {dimension_numbers = #tpu.dot_dimension_numbers<[1], [0], [0], [1], [0, 0, 1, 1], [], []>} : vector<8x768xbf16>, vector<768x256xbf16>, vector<8x256xf32> -> vector<8x256xf32>
    %c0_29 = arith.constant 0 : index
    %c0_30 = arith.constant 0 : index
    %43 = vector.load %arg11[%c0_29, %c0_30] : memref<1x256xf32, #tpu.memory_space<vmem>>, vector<1x256xf32>
    %44 = vector.broadcast %43 : vector<1x256xf32> to vector<8x256xf32>
    %45 = arith.addf %42, %44 : vector<8x256xf32>
    %cst_31 = arith.constant 0.000000e+00 : f32
    %46 = vector.broadcast %cst_31 : f32 to vector<8x256xf32>
    %47 = arith.maximumf %45, %46 : vector<8x256xf32>
    %48 = arith.truncf %47 : vector<8x256xf32> to vector<8x256xbf16>
    %c0_32 = arith.constant 0 : index
    %c0_33 = arith.constant 0 : index
    %49 = vector.load %arg12[%c0_32, %c0_33] : memref<256x256xbf16, #tpu.memory_space<vmem>>, vector<256x256xbf16>
    %cst_34 = arith.constant dense<0.000000e+00> : vector<8x256xf32>
    %50 = tpu.matmul %48, %49, %cst_34 {dimension_numbers = #tpu.dot_dimension_numbers<[1], [0], [0], [1], [0, 0, 1, 1], [], []>} : vector<8x256xbf16>, vector<256x256xbf16>, vector<8x256xf32> -> vector<8x256xf32>
    %c0_35 = arith.constant 0 : index
    %c0_36 = arith.constant 0 : index
    %51 = vector.load %arg13[%c0_35, %c0_36] : memref<1x256xf32, #tpu.memory_space<vmem>>, vector<1x256xf32>
    %52 = vector.broadcast %51 : vector<1x256xf32> to vector<8x256xf32>
    %53 = arith.addf %50, %52 : vector<8x256xf32>
    %cst_37 = arith.constant 0.000000e+00 : f32
    %54 = vector.broadcast %cst_37 : f32 to vector<8x256xf32>
    %55 = arith.maximumf %53, %54 : vector<8x256xf32>
    %56 = arith.mulf %55, %55 : vector<8x256xf32>
    %cst_38 = arith.constant dense<0.000000e+00> : vector<8xf32>
    %57 = vector.multi_reduction <add>, %56, %cst_38 [1] : vector<8x256xf32> to vector<8xf32>
    %58 = vector.shape_cast %57 : vector<8xf32> to vector<8x1xf32>
    %cst_39 = arith.constant 1.000000e-24 : f32
    %59 = vector.broadcast %cst_39 : f32 to vector<8x1xf32>
    %60 = arith.maximumf %58, %59 : vector<8x1xf32>
    %61 = math.rsqrt %60 : vector<8x1xf32>
    %62 = vector.broadcast %61 : vector<8x1xf32> to vector<8x256xf32>
    %63 = arith.mulf %55, %62 : vector<8x256xf32>
    %c0_40 = arith.constant 0 : index
    %c0_41 = arith.constant 0 : index
    %c0_42 = arith.constant 0 : index
    %64 = vector.load %arg3[%c0_40, %c0_41, %c0_42] : memref<1x8x1xf32, #tpu.memory_space<vmem>>, vector<1x8x1xf32>
    %65 = vector.shape_cast %64 : vector<1x8x1xf32> to vector<8x1xf32>
    %66 = vector.broadcast %65 : vector<8x1xf32> to vector<8x256xf32>
    %67 = arith.mulf %63, %66 : vector<8x256xf32>
    %c0_43 = arith.constant 0 : index
    %c0_44 = arith.constant 0 : index
    %c0_45 = arith.constant 0 : index
    %68 = vector.load %arg15[%c0_43, %c0_44, %c0_45] : memref<1x8x256xf32, #tpu.memory_space<vmem>>, vector<1x8x256xf32>
    %69 = vector.shape_cast %68 : vector<1x8x256xf32> to vector<8x256xf32>
    %70 = vector.shape_cast %67 : vector<8x256xf32> to vector<1x8x256xf32>
    tpu.vector_store %arg15[%c0_43, %c0_44, %c0_45], %70 {strides = array<i32>} : memref<1x8x256xf32, #tpu.memory_space<vmem>>, vector<1x8x256xf32>,
    return
  }
  func.func @transform_0(%arg0: i32) -> (i32, i32, i32) {
    %c0_i32 = arith.constant 0 : i32
    %c0_i32_0 = arith.constant 0 : i32
    %c0_i32_1 = arith.constant 0 : i32
    return %arg0, %c0_i32, %c0_i32_0 : i32, i32, i32
  }
  func.func @transform_1(%arg0: i32) -> (i32, i32, i32) {
    %c0_i32 = arith.constant 0 : i32
    %c0_i32_0 = arith.constant 0 : i32
    %c0_i32_1 = arith.constant 0 : i32
    return %arg0, %c0_i32, %c0_i32_0 : i32, i32, i32
  }
  func.func @transform_2(%arg0: i32) -> (i32, i32, i32) {
    %c0_i32 = arith.constant 0 : i32
    %c0_i32_0 = arith.constant 0 : i32
    %c0_i32_1 = arith.constant 0 : i32
    return %arg0, %c0_i32, %c0_i32_0 : i32, i32, i32
  }
  func.func @transform_3(%arg0: i32) -> (i32, i32) {
    %c0_i32 = arith.constant 0 : i32
    %c0_i32_0 = arith.constant 0 : i32
    %c0_i32_1 = arith.constant 0 : i32
    return %c0_i32, %c0_i32_0 : i32, i32
  }
  func.func @transform_4(%arg0: i32) -> (i32, i32) {
    %c0_i32 = arith.constant 0 : i32
    %c0_i32_0 = arith.constant 0 : i32
    %c0_i32_1 = arith.constant 0 : i32
    return %c0_i32, %c0_i32_0 : i32, i32
  }
  func.func @transform_5(%arg0: i32) -> (i32, i32) {
    %c0_i32 = arith.constant 0 : i32
    %c0_i32_0 = arith.constant 0 : i32
    %c0_i32_1 = arith.constant 0 : i32
    return %c0_i32, %c0_i32_0 : i32, i32
  }
  func.func @transform_6(%arg0: i32) -> (i32, i32) {
    %c0_i32 = arith.constant 0 : i32
    %c0_i32_0 = arith.constant 0 : i32
    %c0_i32_1 = arith.constant 0 : i32
    return %c0_i32, %c0_i32_0 : i32, i32
  }
  func.func @transform_7(%arg0: i32) -> (i32, i32) {
    %c0_i32 = arith.constant 0 : i32
    %c0_i32_0 = arith.constant 0 : i32
    %c0_i32_1 = arith.constant 0 : i32
    return %c0_i32, %c0_i32_0 : i32, i32
  }
  func.func @transform_8(%arg0: i32) -> (i32, i32) {
    %c0_i32 = arith.constant 0 : i32
    %c0_i32_0 = arith.constant 0 : i32
    %c0_i32_1 = arith.constant 0 : i32
    return %c0_i32, %c0_i32_0 : i32, i32
  }
  func.func @transform_9(%arg0: i32) -> (i32, i32) {
    %c0_i32 = arith.constant 0 : i32
    %c0_i32_0 = arith.constant 0 : i32
    %c0_i32_1 = arith.constant 0 : i32
    return %c0_i32, %c0_i32_0 : i32, i32
  }
  func.func @transform_10(%arg0: i32) -> (i32, i32) {
    %c0_i32 = arith.constant 0 : i32
    %c0_i32_0 = arith.constant 0 : i32
    %c0_i32_1 = arith.constant 0 : i32
    return %c0_i32, %c0_i32_0 : i32, i32
  }
  func.func @transform_11(%arg0: i32) -> (i32, i32) {
    %c0_i32 = arith.constant 0 : i32
    %c0_i32_0 = arith.constant 0 : i32
    %c0_i32_1 = arith.constant 0 : i32
    return %c0_i32, %c0_i32_0 : i32, i32
  }
  func.func @transform_12(%arg0: i32) -> (i32, i32) {
    %c0_i32 = arith.constant 0 : i32
    %c0_i32_0 = arith.constant 0 : i32
    %c0_i32_1 = arith.constant 0 : i32
    return %c0_i32, %c0_i32_0 : i32, i32
  }
  func.func @transform_13(%arg0: i32) -> (i32, i32, i32) {
    %c0_i32 = arith.constant 0 : i32
    %c0_i32_0 = arith.constant 0 : i32
    %c0_i32_1 = arith.constant 0 : i32
    return %arg0, %c0_i32, %c0_i32_0 : i32, i32, i32
  }
  func.func @transform_14(%arg0: i32) -> (i32, i32, i32) {
    %c0_i32 = arith.constant 0 : i32
    %c0_i32_0 = arith.constant 0 : i32
    %c0_i32_1 = arith.constant 0 : i32
    return %arg0, %c0_i32, %c0_i32_0 : i32, i32, i32
  }
}

</mosaic_0001>

<llo_original>
// kernel: grounding_forward.1
$region0: #{grounding_forward.1}
  #allocation0 [shape = 'u32[]', space=smem, size = 0x4, offset = 0x4, fixed_abs, tag = 'smem constant byte address 0x4 - core index']
  #allocation1 [shape = 'u32[144,128]{1,0:T(1,128)}', space=vmem, size = 0x12000, scoped, tag = 'internal scratch']
  %s0 = inlined_call_operand.vmem [shape: f32[2,256,256], index: 0, kind: input, shape index: {}]
  %s1 = inlined_call_operand.vmem [shape: f32[2,8,768], index: 1, kind: input, shape index: {}]
  %s2 = inlined_call_operand.vmem [shape: f32[2,8,1], index: 2, kind: input, shape index: {}]
  %s3 = inlined_call_operand.vmem [shape: bf16[256,256], index: 3, kind: input, shape index: {}]
  %s4 = inlined_call_operand.vmem [shape: f32[1,256], index: 4, kind: input, shape index: {}]
  %s5 = inlined_call_operand.vmem [shape: bf16[256,128], index: 5, kind: input, shape index: {}]
  %s6 = inlined_call_operand.vmem [shape: f32[1,128], index: 6, kind: input, shape index: {}]
  %s7 = inlined_call_operand.vmem [shape: bf16[128,128], index: 7, kind: input, shape index: {}]
  %s8 = inlined_call_operand.vmem [shape: f32[1,128], index: 8, kind: input, shape index: {}]
  %s9 = inlined_call_operand.vmem [shape: bf16[768,256], index: 9, kind: input, shape index: {}]
  %s10 = inlined_call_operand.vmem [shape: f32[1,256], index: 10, kind: input, shape index: {}]
  %s11 = inlined_call_operand.vmem [shape: bf16[256,256], index: 11, kind: input, shape index: {}]
  %s12 = inlined_call_operand.vmem [shape: f32[1,256], index: 12, kind: input, shape index: {}]
  %s13 = inlined_call_operand.hbm [shape: f32[2,256,128], index: 13, kind: output, shape index: {0}]
  %s14 = inlined_call_operand.hbm [shape: f32[2,8,256], index: 14, kind: output, shape index: {1}]
  %15 = xla_tuple %s13, %s14
  %s16 = sld [smem:[#allocation0]]
  $region93: #{grounding_forward.1} parent=0
    _
  %s18 = ssub.s32 1, %s16
  %s19 = scalar_select 0, %s18, %s16
  $region1: #{grounding_forward.1} parent=0
    #allocation2 [shape = 'u8[262144]{0}', space=vmem, size = 0x40000, scoped, tag = 'output window, operand 0']
    #allocation3 [shape = 's32[2]{0}', space=sflag, size = 0x8, scoped, tag = 'scoped memory for grounding_forward.1']
    #allocation4 [shape = 'u8[16384]{0}', space=vmem, size = 0x4000, scoped, tag = 'output window, operand 1']
    #allocation5 [shape = 's32[2]{0}', space=sflag, size = 0x8, scoped, tag = 'scoped memory for grounding_forward.1']
    %20 = vsyncpa [#allocation3], 0
    %s21 = scalar_lea.sflag [#allocation3], 1
    %22 = vsyncpa %s21, 0
    %23 = vsyncpa [#allocation5], 0
    %s24 = scalar_lea.sflag [#allocation5], 1
    %25 = vsyncpa %s24, 0
    loop: start=0, step=1, limit=4
    $region2: #{grounding_forward.1} parent=1 // loop_pre_header
      _
    $region3: #{grounding_forward.1} parent=1 // loop_header
      %s27 = sphi 0, %s31
      %p28 = scmp.ge.s32.totalorder %s27, 4
      %s37 = sphi 0, %s39
      %s40 = sphi 0, %s37
      %s41 = sphi 0, %s40
      %s57 = sphi 0, %s41
      %s63 = sphi 0, %s65
      %s66 = sphi 0, %s63
      %s67 = sphi 0, %s66
      %s83 = sphi 0, %s67
      %s89 = sphi 0, %s91
      %s92 = sphi 0, %s89
      %s93 = sphi 0, %s92
      %s109 = sphi 0, %s93
      %s113 = sphi 0, %s113
      %s115 = sphi 0, %s113
      %s116 = sphi 0, %s115
      %s130 = sphi 0, %s116
      %s134 = sphi 0, %s134
      %s136 = sphi 0, %s134
      %s137 = sphi 0, %s136
      %s151 = sphi 0, %s137
      %s155 = sphi 0, %s155
      %s157 = sphi 0, %s155
      %s158 = sphi 0, %s157
      %s172 = sphi 0, %s158
      %s176 = sphi 0, %s176
      %s178 = sphi 0, %s176
      %s179 = sphi 0, %s178
      %s193 = sphi 0, %s179
      %s197 = sphi 0, %s197
      %s199 = sphi 0, %s197
      %s200 = sphi 0, %s199
      %s214 = sphi 0, %s200
      %s218 = sphi 0, %s218
      %s220 = sphi 0, %s218
      %s221 = sphi 0, %s220
      %s235 = sphi 0, %s221
      %s239 = sphi 0, %s239
      %s241 = sphi 0, %s239
      %s242 = sphi 0, %s241
      %s256 = sphi 0, %s242
      %s260 = sphi 0, %s260
      %s262 = sphi 0, %s260
      %s263 = sphi 0, %s262
      %s277 = sphi 0, %s263
      %s281 = sphi 0, %s281
      %s283 = sphi 0, %s281
      %s284 = sphi 0, %s283
      %s298 = sphi 0, %s284
      %s302 = sphi 0, %s302
      %s304 = sphi 0, %s302
      %s305 = sphi 0, %s304
      %s319 = sphi 0, %s305
      %s325 = sphi 0, %s327
      %s328 = sphi 0, %s325
      %s329 = sphi 0, %s328
      %s345 = sphi 0, %s329
      %s351 = sphi 0, %s353
      %s354 = sphi 0, %s351
      %s355 = sphi 0, %s354
      %s371 = sphi 0, %s355
    $region4: #{grounding_forward.1} parent=1 // loop_header_branch
      %30 = sbr.rel (%p28) target = $region8
    $region5: #{grounding_forward.1} parent=1 // loop_body
      %s32 = ssub.s32 %s27, 1
      %s33 = ssub.s32 %s27, 2
      %s34 = sadd.s32 %s27, 1
      %s35 = ssub.s32 %s27, %s34
      %p36 = scmp.eq.s32.totalorder %s35, 0
      %s38 = sadd.s32 %s37, 1
      %s39 = scalar_select %p36, %s37, %s38
      %p42 = pneg %p36
      %p43 = scmp.eq.s32.totalorder %s27, 1
      %p44 = por %p42, %p43
      %p45 = scmp.ne.s32.totalorder %s37, %s40
      %p46 = scmp.eq.s32.totalorder %s27, 0
      %p47 = por %p45, %p46
      %p48 = scmp.ne.s32.totalorder %s37, %s40
      %p49 = scmp.eq.s32.totalorder %s32, 1
      %p50 = por %p48, %p49
      %p51 = scmp.ne.s32.totalorder %s40, %s41
      %p52 = scmp.eq.s32.totalorder %s32, 0
      %p53 = por %p51, %p52
      %p54 = scmp.ne.s32.totalorder %s40, %s41
      %p55 = scmp.eq.s32.totalorder %s33, 1
      %p56 = por %p54, %p55
      %p58 = scmp.ne.s32.totalorder %s41, %s57
      %p59 = scmp.eq.s32.totalorder %s33, 0
      %p60 = por %p58, %p59
      %s61 = ssub.s32 %s27, %s34
      %p62 = scmp.eq.s32.totalorder %s61, 0
      %s64 = sadd.s32 %s63, 1
      %s65 = scalar_select %p62, %s63, %s64
      %p68 = pneg %p62
      %p69 = scmp.eq.s32.totalorder %s27, 1
      %p70 = por %p68, %p69
      %p71 = scmp.ne.s32.totalorder %s63, %s66
      %p72 = scmp.eq.s32.totalorder %s27, 0
      %p73 = por %p71, %p72
      %p74 = scmp.ne.s32.totalorder %s63, %s66
      %p75 = scmp.eq.s32.totalorder %s32, 1
      %p76 = por %p74, %p75
      %p77 = scmp.ne.s32.totalorder %s66, %s67
      %p78 = scmp.eq.s32.totalorder %s32, 0
      %p79 = por %p77, %p78
      %p80 = scmp.ne.s32.totalorder %s66, %s67
      %p81 = scmp.eq.s32.totalorder %s33, 1
      %p82 = por %p80, %p81
      %p84 = scmp.ne.s32.totalorder %s67, %s83
      %p85 = scmp.eq.s32.totalorder %s33, 0
      %p86 = por %p84, %p85
      %s87 = ssub.s32 %s27, %s34
      %p88 = scmp.eq.s32.totalorder %s87, 0
      %s90 = sadd.s32 %s89, 1
      %s91 = scalar_select %p88, %s89, %s90
      %p94 = pneg %p88
      %p95 = scmp.eq.s32.totalorder %s27, 1
      %p96 = por %p94, %p95
      %p97 = scmp.ne.s32.totalorder %s89, %s92
      %p98 = scmp.eq.s32.totalorder %s27, 0
      %p99 = por %p97, %p98
      %p100 = scmp.ne.s32.totalorder %s89, %s92
      %p101 = scmp.eq.s32.totalorder %s32, 1
      %p102 = por %p100, %p101
      %p103 = scmp.ne.s32.totalorder %s92, %s93
      %p104 = scmp.eq.s32.totalorder %s32, 0
      %p105 = por %p103, %p104
      %p106 = scmp.ne.s32.totalorder %s92, %s93
      %p107 = scmp.eq.s32.totalorder %s33, 1
      %p108 = por %p106, %p107
      %p110 = scmp.ne.s32.totalorder %s93, %s109
      %p111 = scmp.eq.s32.totalorder %s33, 0
      %p112 = por %p110, %p111
      %s114 = sadd.s32 %s113, 1
      %p117 = scmp.eq.s32.totalorder %s27, 1
      %p118 = scmp.ne.s32.totalorder %s113, %s115
      %p119 = scmp.eq.s32.totalorder %s27, 0
      %p120 = por %p118, %p119
      %p121 = scmp.ne.s32.totalorder %s113, %s115
      %p122 = scmp.eq.s32.totalorder %s32, 1
      %p123 = por %p121, %p122
      %p124 = scmp.ne.s32.totalorder %s115, %s116
      %p125 = scmp.eq.s32.totalorder %s32, 0
      %p126 = por %p124, %p125
      %p127 = scmp.ne.s32.totalorder %s115, %s116
      %p128 = scmp.eq.s32.totalorder %s33, 1
      %p129 = por %p127, %p128
      %p131 = scmp.ne.s32.totalorder %s116, %s130
      %p132 = scmp.eq.s32.totalorder %s33, 0
      %p133 = por %p131, %p132
      %s135 = sadd.s32 %s134, 1
      %p138 = scmp.eq.s32.totalorder %s27, 1
      %p139 = scmp.ne.s32.totalorder %s134, %s136
      %p140 = scmp.eq.s32.totalorder %s27, 0
      %p141 = por %p139, %p140
      %p142 = scmp.ne.s32.totalorder %s134, %s136
      %p143 = scmp.eq.s32.totalorder %s32, 1
      %p144 = por %p142, %p143
      %p145 = scmp.ne.s32.totalorder %s136, %s137
      %p146 = scmp.eq.s32.totalorder %s32, 0
      %p147 = por %p145, %p146
      %p148 = scmp.ne.s32.totalorder %s136, %s137
      %p149 = scmp.eq.s32.totalorder %s33, 1
      %p150 = por %p148, %p149
      %p152 = scmp.ne.s32.totalorder %s137, %s151
      %p153 = scmp.eq.s32.totalorder %s33, 0
      %p154 = por %p152, %p153
      %s156 = sadd.s32 %s155, 1
      %p159 = scmp.eq.s32.totalorder %s27, 1
      %p160 = scmp.ne.s32.totalorder %s155, %s157
      %p161 = scmp.eq.s32.totalorder %s27, 0
      %p162 = por %p160, %p161
      %p163 = scmp.ne.s32.totalorder %s155, %s157
      %p164 = scmp.eq.s32.totalorder %s32, 1
      %p165 = por %p163, %p164
      %p166 = scmp.ne.s32.totalorder %s157, %s158
      %p167 = scmp.eq.s32.totalorder %s32, 0
      %p168 = por %p166, %p167
      %p169 = scmp.ne.s32.totalorder %s157, %s158
      %p170 = scmp.eq.s32.totalorder %s33, 1
      %p171 = por %p169, %p170
      %p173 = scmp.ne.s32.totalorder %s158, %s172
      %p174 = scmp.eq.s32.totalorder %s33, 0
      %p175 = por %p173, %p174
      %s177 = sadd.s32 %s176, 1
      %p180 = scmp.eq.s32.totalorder %s27, 1
      %p181 = scmp.ne.s32.totalorder %s176, %s178
      %p182 = scmp.eq.s32.totalorder %s27, 0
      %p183 = por %p181, %p182
      %p184 = scmp.ne.s32.totalorder %s176, %s178
      %p185 = scmp.eq.s32.totalorder %s32, 1
      %p186 = por %p184, %p185
      %p187 = scmp.ne.s32.totalorder %s178, %s179
      %p188 = scmp.eq.s32.totalorder %s32, 0
      %p189 = por %p187, %p188
      %p190 = scmp.ne.s32.totalorder %s178, %s179
      %p191 = scmp.eq.s32.totalorder %s33, 1
      %p192 = por %p190, %p191
      %p194 = scmp.ne.s32.totalorder %s179, %s193
      %p195 = scmp.eq.s32.totalorder %s33, 0
      %p196 = por %p194, %p195
      %s198 = sadd.s32 %s197, 1
      %p201 = scmp.eq.s32.totalorder %s27, 1
      %p202 = scmp.ne.s32.totalorder %s197, %s199
      %p203 = scmp.eq.s32.totalorder %s27, 0
      %p204 = por %p202, %p203
      %p205 = scmp.ne.s32.totalorder %s197, %s199
      %p206 = scmp.eq.s32.totalorder %s32, 1
      %p207 = por %p205, %p206
      %p208 = scmp.ne.s32.totalorder %s199, %s200
      %p209 = scmp.eq.s32.totalorder %s32, 0
      %p210 = por %p208, %p209
      %p211 = scmp.ne.s32.totalorder %s199, %s200
      %p212 = scmp.eq.s32.totalorder %s33, 1
      %p213 = por %p211, %p212
      %p215 = scmp.ne.s32.totalorder %s200, %s214
      %p216 = scmp.eq.s32.totalorder %s33, 0
      %p217 = por %p215, %p216
      %s219 = sadd.s32 %s218, 1
      %p222 = scmp.eq.s32.totalorder %s27, 1
      %p223 = scmp.ne.s32.totalorder %s218, %s220
      %p224 = scmp.eq.s32.totalorder %s27, 0
      %p225 = por %p223, %p224
      %p226 = scmp.ne.s32.totalorder %s218, %s220
      %p227 = scmp.eq.s32.totalorder %s32, 1
      %p228 = por %p226, %p227
      %p229 = scmp.ne.s32.totalorder %s220, %s221
      %p230 = scmp.eq.s32.totalorder %s32, 0
      %p231 = por %p229, %p230
      %p232 = scmp.ne.s32.totalorder %s220, %s221
      %p233 = scmp.eq.s32.totalorder %s33, 1
      %p234 = por %p232, %p233
      %p236 = scmp.ne.s32.totalorder %s221, %s235
      %p237 = scmp.eq.s32.totalorder %s33, 0
      %p238 = por %p236, %p237
      %s240 = sadd.s32 %s239, 1
      %p243 = scmp.eq.s32.totalorder %s27, 1
      %p244 = scmp.ne.s32.totalorder %s239, %s241
      %p245 = scmp.eq.s32.totalorder %s27, 0
      %p246 = por %p244, %p245
      %p247 = scmp.ne.s32.totalorder %s239, %s241
      %p248 = scmp.eq.s32.totalorder %s32, 1
      %p249 = por %p247, %p248
      %p250 = scmp.ne.s32.totalorder %s241, %s242
      %p251 = scmp.eq.s32.totalorder %s32, 0
      %p252 = por %p250, %p251
      %p253 = scmp.ne.s32.totalorder %s241, %s242
      %p254 = scmp.eq.s32.totalorder %s33, 1
      %p255 = por %p253, %p254
      %p257 = scmp.ne.s32.totalorder %s242, %s256
      %p258 = scmp.eq.s32.totalorder %s33, 0
      %p259 = por %p257, %p258
      %s261 = sadd.s32 %s260, 1
      %p264 = scmp.eq.s32.totalorder %s27, 1
      %p265 = scmp.ne.s32.totalorder %s260, %s262
      %p266 = scmp.eq.s32.totalorder %s27, 0
      %p267 = por %p265, %p266
      %p268 = scmp.ne.s32.totalorder %s260, %s262
      %p269 = scmp.eq.s32.totalorder %s32, 1
      %p270 = por %p268, %p269
      %p271 = scmp.ne.s32.totalorder %s262, %s263
      %p272 = scmp.eq.s32.totalorder %s32, 0
      %p273 = por %p271, %p272
      %p274 = scmp.ne.s32.totalorder %s262, %s263
      %p275 = scmp.eq.s32.totalorder %s33, 1
      %p276 = por %p274, %p275
      %p278 = scmp.ne.s32.totalorder %s263, %s277
      %p279 = scmp.eq.s32.totalorder %s33, 0
      %p280 = por %p278, %p279
      %s282 = sadd.s32 %s281, 1
      %p285 = scmp.eq.s32.totalorder %s27, 1
      %p286 = scmp.ne.s32.totalorder %s281, %s283
      %p287 = scmp.eq.s32.totalorder %s27, 0
      %p288 = por %p286, %p287
      %p289 = scmp.ne.s32.totalorder %s281, %s283
      %p290 = scmp.eq.s32.totalorder %s32, 1
      %p291 = por %p289, %p290
      %p292 = scmp.ne.s32.totalorder %s283, %s284
      %p293 = scmp.eq.s32.totalorder %s32, 0
      %p294 = por %p292, %p293
      %p295 = scmp.ne.s32.totalorder %s283, %s284
      %p296 = scmp.eq.s32.totalorder %s33, 1
      %p297 = por %p295, %p296
      %p299 = scmp.ne.s32.totalorder %s284, %s298
      %p300 = scmp.eq.s32.totalorder %s33, 0
      %p301 = por %p299, %p300
      %s303 = sadd.s32 %s302, 1
      %p306 = scmp.eq.s32.totalorder %s27, 1
      %p307 = scmp.ne.s32.totalorder %s302, %s304
      %p308 = scmp.eq.s32.totalorder %s27, 0
      %p309 = por %p307, %p308
      %p310 = scmp.ne.s32.totalorder %s302, %s304
      %p311 = scmp.eq.s32.totalorder %s32, 1
      %p312 = por %p310, %p311
      %p313 = scmp.ne.s32.totalorder %s304, %s305
      %p314 = scmp.eq.s32.totalorder %s32, 0
      %p315 = por %p313, %p314
      %p316 = scmp.ne.s32.totalorder %s304, %s305
      %p317 = scmp.eq.s32.totalorder %s33, 1
      %p318 = por %p316, %p317
      %p320 = scmp.ne.s32.totalorder %s305, %s319
      %p321 = scmp.eq.s32.totalorder %s33, 0
      %p322 = por %p320, %p321
      %s323 = ssub.s32 %s27, %s34
      %p324 = scmp.eq.s32.totalorder %s323, 0
      %s326 = sadd.s32 %s325, 1
      %s327 = scalar_select %p324, %s325, %s326
      %p330 = pneg %p324
      %p331 = scmp.eq.s32.totalorder %s27, 1
      %p332 = por %p330, %p331
      %p333 = scmp.ne.s32.totalorder %s325, %s328
      %p334 = scmp.eq.s32.totalorder %s27, 0
      %p335 = por %p333, %p334
      %p336 = scmp.ne.s32.totalorder %s325, %s328
      %p337 = scmp.eq.s32.totalorder %s32, 1
      %p338 = por %p336, %p337
      %p339 = scmp.ne.s32.totalorder %s328, %s329
      %p340 = scmp.eq.s32.totalorder %s32, 0
      %p341 = por %p339, %p340
      %p342 = scmp.ne.s32.totalorder %s328, %s329
      %p343 = scmp.eq.s32.totalorder %s33, 1
      %p344 = por %p342, %p343
      %p346 = scmp.ne.s32.totalorder %s329, %s345
      %p347 = scmp.eq.s32.totalorder %s33, 0
      %p348 = por %p346, %p347
      %s349 = ssub.s32 %s27, %s34
      %p350 = scmp.eq.s32.totalorder %s349, 0
      %s352 = sadd.s32 %s351, 1
      %s353 = scalar_select %p350, %s351, %s352
      %p356 = pneg %p350
      %p357 = scmp.eq.s32.totalorder %s27, 1
      %p358 = por %p356, %p357
      %p359 = scmp.ne.s32.totalorder %s351, %s354
      %p360 = scmp.eq.s32.totalorder %s27, 0
      %p361 = por %p359, %p360
      %p362 = scmp.ne.s32.totalorder %s351, %s354
      %p363 = scmp.eq.s32.totalorder %s32, 1
      %p364 = por %p362, %p363
      %p365 = scmp.ne.s32.totalorder %s354, %s355
      %p366 = scmp.eq.s32.totalorder %s32, 0
      %p367 = por %p365, %p366
      %p368 = scmp.ne.s32.totalorder %s354, %s355
      %p369 = scmp.eq.s32.totalorder %s33, 1
      %p370 = por %p368, %p369
      %p372 = scmp.ne.s32.totalorder %s355, %s371
      %p373 = scmp.eq.s32.totalorder %s33, 0
      %p374 = por %p372, %p373
      %p375 = scmp.le.s32.totalorder 1, %s27
      %p376 = scmp.lt.s32.totalorder %s27, 3
      %p377 = pnand %p375, %p376
      %p378 = pneg %p377
      // Predicated region
      $region9: #{grounding_forward.1} parent=5 // pred_check
        _
      $region10: #{grounding_forward.1} parent=5 // pred_check_branch
        %380 = sbr.rel (%p377) target = $region12
      $region11: #{grounding_forward.1} parent=5 // pred_region
        %s381 = ssub.s32 %s27, 1
        // Predicated region
        $region13: #{grounding_forward.1} parent=11 // pred_check
          %p382 = pneg %p126
        $region14: #{grounding_forward.1} parent=11 // pred_check_branch
          %384 = sbr.rel (%p382) target = $region16
        $region15: #{grounding_forward.1} parent=11 // pred_region
          _
        $region16: #{grounding_forward.1} parent=11 // pred_fallthru
          _
        // Predicated region
        $region17: #{grounding_forward.1} parent=11 // pred_check
          %p385 = pneg %p147
        $region18: #{grounding_forward.1} parent=11 // pred_check_branch
          %387 = sbr.rel (%p385) target = $region20
        $region19: #{grounding_forward.1} parent=11 // pred_region
          _
        $region20: #{grounding_forward.1} parent=11 // pred_fallthru
          _
        // Predicated region
        $region21: #{grounding_forward.1} parent=11 // pred_check
          %p388 = pneg %p168
        $region22: #{grounding_forward.1} parent=11 // pred_check_branch
          %390 = sbr.rel (%p388) target = $region24
        $region23: #{grounding_forward.1} parent=11 // pred_region
          _
        $region24: #{grounding_forward.1} parent=11 // pred_fallthru
          _
        // Predicated region
        $region25: #{grounding_forward.1} parent=11 // pred_check
          %p391 = pneg %p189
        $region26: #{grounding_forward.1} parent=11 // pred_check_branch
          %393 = sbr.rel (%p391) target = $region28
        $region27: #{grounding_forward.1} parent=11 // pred_region
          _
        $region28: #{grounding_forward.1} parent=11 // pred_fallthru
          _
        // Predicated region
        $region29: #{grounding_forward.1} parent=11 // pred_check
          %p394 = pneg %p210
        $region30: #{grounding_forward.1} parent=11 // pred_check_branch
          %396 = sbr.rel (%p394) target = $region32
        $region31: #{grounding_forward.1} parent=11 // pred_region
          _
        $region32: #{grounding_forward.1} parent=11 // pred_fallthru
          _
        // Predicated region
        $region33: #{grounding_forward.1} parent=11 // pred_check
          %p397 = pneg %p231
        $region34: #{grounding_forward.1} parent=11 // pred_check_branch
          %399 = sbr.rel (%p397) target = $region36
        $region35: #{grounding_forward.1} parent=11 // pred_region
          _
        $region36: #{grounding_forward.1} parent=11 // pred_fallthru
          _
        // Predicated region
        $region37: #{grounding_forward.1} parent=11 // pred_check
          %p400 = pneg %p252
        $region38: #{grounding_forward.1} parent=11 // pred_check_branch
          %402 = sbr.rel (%p400) target = $region40
        $region39: #{grounding_forward.1} parent=11 // pred_region
          _
        $region40: #{grounding_forward.1} parent=11 // pred_fallthru
          _
        // Predicated region
        $region41: #{grounding_forward.1} parent=11 // pred_check
          %p403 = pneg %p273
        $region42: #{grounding_forward.1} parent=11 // pred_check_branch
          %405 = sbr.rel (%p403) target = $region44
        $region43: #{grounding_forward.1} parent=11 // pred_region
          _
        $region44: #{grounding_forward.1} parent=11 // pred_fallthru
          _
        // Predicated region
        $region45: #{grounding_forward.1} parent=11 // pred_check
          %p406 = pneg %p294
        $region46: #{grounding_forward.1} parent=11 // pred_check_branch
          %408 = sbr.rel (%p406) target = $region48
        $region47: #{grounding_forward.1} parent=11 // pred_region
          _
        $region48: #{grounding_forward.1} parent=11 // pred_fallthru
          _
        // Predicated region
        $region49: #{grounding_forward.1} parent=11 // pred_check
          %p409 = pneg %p315
        $region50: #{grounding_forward.1} parent=11 // pred_check_branch
          %411 = sbr.rel (%p409) target = $region52
        $region51: #{grounding_forward.1} parent=11 // pred_region
          _
        $region52: #{grounding_forward.1} parent=11 // pred_fallthru
          _
      $region12: #{grounding_forward.1} parent=5 // pred_fallthru
        _
      %p412 = scmp.lt.s32.totalorder %s27, 2
      // Predicated region
      $region53: #{grounding_forward.1} parent=5 // pred_check
        %p413 = pneg %p412
      $region54: #{grounding_forward.1} parent=5 // pred_check_branch
        %415 = sbr.rel (%p413) target = $region56
      $region55: #{grounding_forward.1} parent=5 // pred_region
        // Predicated region
        $region57: #{grounding_forward.1} parent=55 // pred_check
          %p416 = pneg %p47
        $region58: #{grounding_forward.1} parent=55 // pred_check_branch
          %418 = sbr.rel (%p416) target = $region60
        $region59: #{grounding_forward.1} parent=55 // pred_region
          %p419 = scmp.lt.s32.totalorder %s27, 1
          %s420 = scalar_select %p419, %s27, 1
          %s421 = smul.addr %s420, 64
          %s422 = smul.addr %s421, 8
          %s423 = scalar_lea.vmem %s0, %s422
        $region60: #{grounding_forward.1} parent=55 // pred_fallthru
          _
        // Predicated region
        $region61: #{grounding_forward.1} parent=55 // pred_check
          %p424 = pneg %p73
        $region62: #{grounding_forward.1} parent=55 // pred_check_branch
          %426 = sbr.rel (%p424) target = $region64
        $region63: #{grounding_forward.1} parent=55 // pred_region
          %p427 = scmp.lt.s32.totalorder %s27, 1
          %s428 = scalar_select %p427, %s27, 1
          %s429 = smul.addr %s428, 6
          %s430 = smul.addr %s429, 8
          %s431 = scalar_lea.vmem %s1, %s430
        $region64: #{grounding_forward.1} parent=55 // pred_fallthru
          _
        // Predicated region
        $region65: #{grounding_forward.1} parent=55 // pred_check
          %p432 = pneg %p99
        $region66: #{grounding_forward.1} parent=55 // pred_check_branch
          %434 = sbr.rel (%p432) target = $region68
        $region67: #{grounding_forward.1} parent=55 // pred_region
          %p435 = scmp.lt.s32.totalorder %s27, 1
          %s436 = scalar_select %p435, %s27, 1
          %s437 = smul.addr %s436, 8
          %s438 = scalar_lea.vmem %s2, %s437
        $region68: #{grounding_forward.1} parent=55 // pred_fallthru
          _
      $region56: #{grounding_forward.1} parent=5 // pred_fallthru
        _
      %p439 = scmp.le.s32.totalorder 1, %s27
      %p440 = scmp.lt.s32.totalorder %s27, 3
      %p441 = pnand %p439, %p440
      %p442 = pneg %p441
      // Predicated region
      $region69: #{grounding_forward.1} parent=5 // pred_check
        _
      $region70: #{grounding_forward.1} parent=5 // pred_check_branch
        %444 = sbr.rel (%p441) target = $region72
      $region71: #{grounding_forward.1} parent=5 // pred_region
        %s445 = ssub.s32 %s27, 1
        %p446 = scmp.lt.s32.totalorder %s32, 1
        %s447 = scalar_select %p446, %s32, 1
        %s448 = smul.addr %s447, 64
        %s449 = smul.addr %s448, 8
        %s450 = scalar_lea.vmem %s0, %s449
        %p451 = pneg %p53
        %p452 = pneg %p50
        %p453 = scmp.lt.s32.totalorder %s32, 1
        %s454 = scalar_select %p453, %s32, 1
        %s455 = smul.addr %s454, 6
        %s456 = smul.addr %s455, 8
        %s457 = scalar_lea.vmem %s1, %s456
        %p458 = pneg %p79
        %p459 = pneg %p76
        %p460 = scmp.lt.s32.totalorder %s32, 1
        %s461 = scalar_select %p460, %s32, 1
        %s462 = smul.addr %s461, 8
        %s463 = scalar_lea.vmem %s2, %s462
        %p464 = pneg %p105
        %p465 = pneg %p102
        %p466 = pneg %p126
        %p467 = pneg %p123
        %p468 = pneg %p147
        %p469 = pneg %p144
        %p470 = pneg %p168
        %p471 = pneg %p165
        %p472 = pneg %p189
        %p473 = pneg %p186
        %p474 = pneg %p210
        %p475 = pneg %p207
        %p476 = pneg %p231
        %p477 = pneg %p228
        %p478 = pneg %p252
        %p479 = pneg %p249
        %p480 = pneg %p273
        %p481 = pneg %p270
        %p482 = pneg %p294
        %p483 = pneg %p291
        %p484 = pneg %p315
        %p485 = pneg %p312
        %p486 = pneg %p341
        %p487 = pneg %p338
        %s488 = sand.u32 %s328, 1
        %s489 = scalar_lea.sflag [#allocation3], %s488
        %s490 = sand.u32 %s328, 1
        %s491 = smul.addr %s490, 256
        %s492 = scalar_lea.vmem [#allocation2], %s491
        %p493 = pneg %p367
        %p494 = pneg %p364
        %s495 = sand.u32 %s354, 1
        %s496 = scalar_lea.sflag [#allocation5], %s495
        %s497 = sand.u32 %s354, 1
        %s498 = smul.addr %s497, 16
        %s499 = scalar_lea.vmem [#allocation4], %s498
        %p500 = scmp.lt.s32.totalorder %s32, 1
        %s501 = scalar_select %p500, %s32, 1
        %s502 = smul.addr %s501, 64
        %s503 = smul.addr %s502, 8
        %s504 = scalar_lea.vmem %s0, %s503
        %p505 = scmp.lt.s32.totalorder %s32, 1
        %s506 = scalar_select %p505, %s32, 1
        %s507 = smul.addr %s506, 6
        %s508 = smul.addr %s507, 8
        %s509 = scalar_lea.vmem %s1, %s508
        %p510 = scmp.lt.s32.totalorder %s32, 1
        %s511 = scalar_select %p510, %s32, 1
        %s512 = smul.addr %s511, 8
        %s513 = scalar_lea.vmem %s2, %s512
        %v515 = vld [vmem:[%s504] sm:$0xff]
        %v516 = vld [vmem:[%s504 + $0x8] sm:$0xff]
        %v517 = vld [vmem:[%s504 + $0x10] sm:$0xff]
        %v518 = vld [vmem:[%s504 + $0x18] sm:$0xff]
        %v519 = vld [vmem:[%s504 + $0x20] sm:$0xff]
        %v520 = vld [vmem:[%s504 + $0x28] sm:$0xff]
        %v521 = vld [vmem:[%s504 + $0x30] sm:$0xff]
        %v522 = vld [vmem:[%s504 + $0x38] sm:$0xff]
        %v523 = vld [vmem:[%s504 + $0x40] sm:$0xff]
        %v524 = vld [vmem:[%s504 + $0x48] sm:$0xff]
        %v525 = vld [vmem:[%s504 + $0x50] sm:$0xff]
        %v526 = vld [vmem:[%s504 + $0x58] sm:$0xff]
        %v527 = vld [vmem:[%s504 + $0x60] sm:$0xff]
        %v528 = vld [vmem:[%s504 + $0x68] sm:$0xff]
        %v529 = vld [vmem:[%s504 + $0x70] sm:$0xff]
        %v530 = vld [vmem:[%s504 + $0x78] sm:$0xff]
        %v531 = vld [vmem:[%s504 + $0x80] sm:$0xff]
        %v532 = vld [vmem:[%s504 + $0x88] sm:$0xff]
        %v533 = vld [vmem:[%s504 + $0x90] sm:$0xff]
        %v534 = vld [vmem:[%s504 + $0x98] sm:$0xff]
        %v535 = vld [vmem:[%s504 + $0xa0] sm:$0xff]
        %v536 = vld [vmem:[%s504 + $0xa8] sm:$0xff]
        %v537 = vld [vmem:[%s504 + $0xb0] sm:$0xff]
        %v538 = vld [vmem:[%s504 + $0xb8] sm:$0xff]
        %v539 = vld [vmem:[%s504 + $0xc0] sm:$0xff]
        %v540 = vld [vmem:[%s504 + $0xc8] sm:$0xff]
        %v541 = vld [vmem:[%s504 + $0xd0] sm:$0xff]
        %v542 = vld [vmem:[%s504 + $0xd8] sm:$0xff]
        %v543 = vld [vmem:[%s504 + $0xe0] sm:$0xff]
        %v544 = vld [vmem:[%s504 + $0xe8] sm:$0xff]
        %v545 = vld [vmem:[%s504 + $0xf0] sm:$0xff]
        %v546 = vld [vmem:[%s504 + $0xf8] sm:$0xff]
        %v547 = vld [vmem:[%s504 + $0x100] sm:$0xff]
        %v548 = vld [vmem:[%s504 + $0x108] sm:$0xff]
        %v549 = vld [vmem:[%s504 + $0x110] sm:$0xff]
        %v550 = vld [vmem:[%s504 + $0x118] sm:$0xff]
        %v551 = vld [vmem:[%s504 + $0x120] sm:$0xff]
        %v552 = vld [vmem:[%s504 + $0x128] sm:$0xff]
        %v553 = vld [vmem:[%s504 + $0x130] sm:$0xff]
        %v554 = vld [vmem:[%s504 + $0x138] sm:$0xff]
        %v555 = vld [vmem:[%s504 + $0x140] sm:$0xff]
        %v556 = vld [vmem:[%s504 + $0x148] sm:$0xff]
        %v557 = vld [vmem:[%s504 + $0x150] sm:$0xff]
        %v558 = vld [vmem:[%s504 + $0x158] sm:$0xff]
        %v559 = vld [vmem:[%s504 + $0x160] sm:$0xff]
        %v560 = vld [vmem:[%s504 + $0x168] sm:$0xff]
        %v561 = vld [vmem:[%s504 + $0x170] sm:$0xff]
        %v562 = vld [vmem:[%s504 + $0x178] sm:$0xff]
        %v563 = vld [vmem:[%s504 + $0x180] sm:$0xff]
        %v564 = vld [vmem:[%s504 + $0x188] sm:$0xff]
        %v565 = vld [vmem:[%s504 + $0x190] sm:$0xff]
        %v566 = vld [vmem:[%s504 + $0x198] sm:$0xff]
        %v567 = vld [vmem:[%s504 + $0x1a0] sm:$0xff]
        %v568 = vld [vmem:[%s504 + $0x1a8] sm:$0xff]
        %v569 = vld [vmem:[%s504 + $0x1b0] sm:$0xff]
        %v570 = vld [vmem:[%s504 + $0x1b8] sm:$0xff]
        %v571 = vld [vmem:[%s504 + $0x1c0] sm:$0xff]
        %v572 = vld [vmem:[%s504 + $0x1c8] sm:$0xff]
        %v573 = vld [vmem:[%s504 + $0x1d0] sm:$0xff]
        %v574 = vld [vmem:[%s504 + $0x1d8] sm:$0xff]
        %v575 = vld [vmem:[%s504 + $0x1e0] sm:$0xff]
        %v576 = vld [vmem:[%s504 + $0x1e8] sm:$0xff]
        %v577 = vld [vmem:[%s504 + $0x1f0] sm:$0xff]
        %v578 = vld [vmem:[%s504 + $0x1f8] sm:$0xff]
        %v579 = vpack.c.bf16 %v517, %v515
        %v580 = vpack.c.bf16 %v518, %v516
        %v581 = vpack.c.bf16 %v521, %v519
        %v582 = vpack.c.bf16 %v522, %v520
        %v583 = vpack.c.bf16 %v525, %v523
        %v584 = vpack.c.bf16 %v526, %v524
        %v585 = vpack.c.bf16 %v529, %v527
        %v586 = vpack.c.bf16 %v530, %v528
        %v587 = vpack.c.bf16 %v533, %v531
        %v588 = vpack.c.bf16 %v534, %v532
        %v589 = vpack.c.bf16 %v537, %v535
        %v590 = vpack.c.bf16 %v538, %v536
        %v591 = vpack.c.bf16 %v541, %v539
        %v592 = vpack.c.bf16 %v542, %v540
        %v593 = vpack.c.bf16 %v545, %v543
        %v594 = vpack.c.bf16 %v546, %v544
        %v595 = vpack.c.bf16 %v549, %v547
        %v596 = vpack.c.bf16 %v550, %v548
        %v597 = vpack.c.bf16 %v553, %v551
        %v598 = vpack.c.bf16 %v554, %v552
        %v599 = vpack.c.bf16 %v557, %v555
        %v600 = vpack.c.bf16 %v558, %v556
        %v601 = vpack.c.bf16 %v561, %v559
        %v602 = vpack.c.bf16 %v562, %v560
        %v603 = vpack.c.bf16 %v565, %v563
        %v604 = vpack.c.bf16 %v566, %v564
        %v605 = vpack.c.bf16 %v569, %v567
        %v606 = vpack.c.bf16 %v570, %v568
        %v607 = vpack.c.bf16 %v573, %v571
        %v608 = vpack.c.bf16 %v574, %v572
        %v609 = vpack.c.bf16 %v577, %v575
        %v610 = vpack.c.bf16 %v578, %v576
        %v611 = vld [vmem:[%s3] sm:$0xff]
        %v612 = vld [vmem:[%s3 + $0x8] sm:$0xff]
        %v613 = vld [vmem:[%s3 + $0x10] sm:$0xff]
        %v614 = vld [vmem:[%s3 + $0x18] sm:$0xff]
        %v615 = vld [vmem:[%s3 + $0x20] sm:$0xff]
        %v616 = vld [vmem:[%s3 + $0x28] sm:$0xff]
        %v617 = vld [vmem:[%s3 + $0x30] sm:$0xff]
        %v618 = vld [vmem:[%s3 + $0x38] sm:$0xff]
        %v619 = vld [vmem:[%s3 + $0x40] sm:$0xff]
        %v620 = vld [vmem:[%s3 + $0x48] sm:$0xff]
        %v621 = vld [vmem:[%s3 + $0x50] sm:$0xff]
        %v622 = vld [vmem:[%s3 + $0x58] sm:$0xff]
        %v623 = vld [vmem:[%s3 + $0x60] sm:$0xff]
        %v624 = vld [vmem:[%s3 + $0x68] sm:$0xff]
        %v625 = vld [vmem:[%s3 + $0x70] sm:$0xff]
        %v626 = vld [vmem:[%s3 + $0x78] sm:$0xff]
        %v627 = vld [vmem:[%s3 + $0x80] sm:$0xff]
        %v628 = vld [vmem:[%s3 + $0x88] sm:$0xff]
        %v629 = vld [vmem:[%s3 + $0x90] sm:$0xff]
        %v630 = vld [vmem:[%s3 + $0x98] sm:$0xff]
        %v631 = vld [vmem:[%s3 + $0xa0] sm:$0xff]
        %v632 = vld [vmem:[%s3 + $0xa8] sm:$0xff]
        %v633 = vld [vmem:[%s3 + $0xb0] sm:$0xff]
        %v634 = vld [vmem:[%s3 + $0xb8] sm:$0xff]
        %v635 = vld [vmem:[%s3 + $0xc0] sm:$0xff]
        %v636 = vld [vmem:[%s3 + $0xc8] sm:$0xff]
        %v637 = vld [vmem:[%s3 + $0xd0] sm:$0xff]
        %v638 = vld [vmem:[%s3 + $0xd8] sm:$0xff]
        %v639 = vld [vmem:[%s3 + $0xe0] sm:$0xff]
        %v640 = vld [vmem:[%s3 + $0xe8] sm:$0xff]
        %v641 = vld [vmem:[%s3 + $0xf0] sm:$0xff]
        %v642 = vld [vmem:[%s3 + $0xf8] sm:$0xff]
        %643 = vxpose.xlu0.c.b16.start [1/8] %v579, 128
        %644 = vxpose.xlu0.c.b16.cont [2/8] %v581, 128
        %645 = vxpose.xlu0.c.b16.cont [3/8] %v583, 128
        %646 = vxpose.xlu0.c.b16.cont [4/8] %v585, 128
        %647 = vxpose.xlu0.c.b16.cont [5/8] %v587, 128
        %648 = vxpose.xlu0.c.b16.cont [6/8] %v589, 128
        %649 = vxpose.xlu0.c.b16.cont [7/8] %v591, 128
        %650 = vxpose.xlu0.c.b16.end [8/8] %v593, 128
        %v651 = vpop.trf.xlu0
        %v652 = vpop.trf.xlu0
        %v653 = vpop.trf.xlu0
        %v654 = vpop.trf.xlu0
        %v655 = vpop.trf.xlu0
        %v656 = vpop.trf.xlu0
        %v657 = vpop.trf.xlu0
        %v658 = vpop.trf.xlu0
        %659 = vxpose.xlu0.c.b16.start [1/8] %v580, 128
        %660 = vxpose.xlu0.c.b16.cont [2/8] %v582, 128
        %661 = vxpose.xlu0.c.b16.cont [3/8] %v584, 128
        %662 = vxpose.xlu0.c.b16.cont [4/8] %v586, 128
        %663 = vxpose.xlu0.c.b16.cont [5/8] %v588, 128
        %664 = vxpose.xlu0.c.b16.cont [6/8] %v590, 128
        %665 = vxpose.xlu0.c.b16.cont [7/8] %v592, 128
        %666 = vxpose.xlu0.c.b16.end [8/8] %v594, 128
        %v667 = vpop.trf.xlu0
        %v668 = vpop.trf.xlu0
        %v669 = vpop.trf.xlu0
        %v670 = vpop.trf.xlu0
        %v671 = vpop.trf.xlu0
        %v672 = vpop.trf.xlu0
        %v673 = vpop.trf.xlu0
        %v674 = vpop.trf.xlu0
        %675 = vxpose.xlu0.c.b16.start [1/8] %v595, 128
        %676 = vxpose.xlu0.c.b16.cont [2/8] %v597, 128
        %677 = vxpose.xlu0.c.b16.cont [3/8] %v599, 128
        %678 = vxpose.xlu0.c.b16.cont [4/8] %v601, 128
        %679 = vxpose.xlu0.c.b16.cont [5/8] %v603, 128
        %680 = vxpose.xlu0.c.b16.cont [6/8] %v605, 128
        %681 = vxpose.xlu0.c.b16.cont [7/8] %v607, 128
        %682 = vxpose.xlu0.c.b16.end [8/8] %v609, 128
        %v683 = vpop.trf.xlu0
        %v684 = vpop.trf.xlu0
        %v685 = vpop.trf.xlu0
        %v686 = vpop.trf.xlu0
        %v687 = vpop.trf.xlu0
        %v688 = vpop.trf.xlu0
        %v689 = vpop.trf.xlu0
        %v690 = vpop.trf.xlu0
        %691 = vxpose.xlu0.c.b16.start [1/8] %v596, 128
        %692 = vxpose.xlu0.c.b16.cont [2/8] %v598, 128
        %693 = vxpose.xlu0.c.b16.cont [3/8] %v600, 128
        %694 = vxpose.xlu0.c.b16.cont [4/8] %v602, 128
        %695 = vxpose.xlu0.c.b16.cont [5/8] %v604, 128
        %696 = vxpose.xlu0.c.b16.cont [6/8] %v606, 128
        %697 = vxpose.xlu0.c.b16.cont [7/8] %v608, 128
        %698 = vxpose.xlu0.c.b16.end [8/8] %v610, 128
        %v699 = vpop.trf.xlu0
        %v700 = vpop.trf.xlu0
        %v701 = vpop.trf.xlu0
        %v702 = vpop.trf.xlu0
        %v703 = vpop.trf.xlu0
        %v704 = vpop.trf.xlu0
        %v705 = vpop.trf.xlu0
        %v706 = vpop.trf.xlu0
        %v739 = vunpack.c.l.b16 %v611
        %v740 = vunpack.c.h.b16 %v611
        %v741 = vunpack.c.l.b16 %v612
        %v742 = vunpack.c.h.b16 %v612
        %v743 = vunpack.c.l.b16 %v613
        %v744 = vunpack.c.h.b16 %v613
        %v745 = vunpack.c.l.b16 %v614
        %v746 = vunpack.c.h.b16 %v614
        %v747 = vunpack.c.l.b16 %v615
        %v748 = vunpack.c.h.b16 %v615
        %v749 = vunpack.c.l.b16 %v616
        %v750 = vunpack.c.h.b16 %v616
        %v751 = vunpack.c.l.b16 %v617
        %v752 = vunpack.c.h.b16 %v617
        %v753 = vunpack.c.l.b16 %v618
        %v754 = vunpack.c.h.b16 %v618
        %v755 = vunpack.c.l.b16 %v619
        %v756 = vunpack.c.h.b16 %v619
        %v757 = vunpack.c.l.b16 %v620
        %v758 = vunpack.c.h.b16 %v620
        %v759 = vunpack.c.l.b16 %v621
        %v760 = vunpack.c.h.b16 %v621
        %v761 = vunpack.c.l.b16 %v622
        %v762 = vunpack.c.h.b16 %v622
        %v763 = vunpack.c.l.b16 %v623
        %v764 = vunpack.c.h.b16 %v623
        %v765 = vunpack.c.l.b16 %v624
        %v766 = vunpack.c.h.b16 %v624
        %v767 = vunpack.c.l.b16 %v625
        %v768 = vunpack.c.h.b16 %v625
        %v769 = vunpack.c.l.b16 %v626
        %v770 = vunpack.c.h.b16 %v626
        %v771 = vunpack.c.l.b16 %v627
        %v772 = vunpack.c.h.b16 %v627
        %v773 = vunpack.c.l.b16 %v628
        %v774 = vunpack.c.h.b16 %v628
        %v775 = vunpack.c.l.b16 %v629
        %v776 = vunpack.c.h.b16 %v629
        %v777 = vunpack.c.l.b16 %v630
        %v778 = vunpack.c.h.b16 %v630
        %v779 = vunpack.c.l.b16 %v631
        %v780 = vunpack.c.h.b16 %v631
        %v781 = vunpack.c.l.b16 %v632
        %v782 = vunpack.c.h.b16 %v632
        %v783 = vunpack.c.l.b16 %v633
        %v784 = vunpack.c.h.b16 %v633
        %v785 = vunpack.c.l.b16 %v634
        %v786 = vunpack.c.h.b16 %v634
        %v787 = vunpack.c.l.b16 %v635
        %v788 = vunpack.c.h.b16 %v635
        %v789 = vunpack.c.l.b16 %v636
        %v790 = vunpack.c.h.b16 %v636
        %v791 = vunpack.c.l.b16 %v637
        %v792 = vunpack.c.h.b16 %v637
        %v793 = vunpack.c.l.b16 %v638
        %v794 = vunpack.c.h.b16 %v638
        %v795 = vunpack.c.l.b16 %v639
        %v796 = vunpack.c.h.b16 %v639
        %v797 = vunpack.c.l.b16 %v640
        %v798 = vunpack.c.h.b16 %v640
        %v799 = vunpack.c.l.b16 %v641
        %v800 = vunpack.c.h.b16 %v641
        %v801 = vunpack.c.l.b16 %v642
        %v802 = vunpack.c.h.b16 %v642
        %v803 = vpack.c.b16 %v741, %v739
        %v804 = vpack.c.b16 %v742, %v740
        %v805 = vpack.c.b16 %v745, %v743
        %v806 = vpack.c.b16 %v746, %v744
        %v807 = vpack.c.b16 %v749, %v747
        %v808 = vpack.c.b16 %v750, %v748
        %v809 = vpack.c.b16 %v753, %v751
        %v810 = vpack.c.b16 %v754, %v752
        %v811 = vpack.c.b16 %v757, %v755
        %v812 = vpack.c.b16 %v758, %v756
        %v813 = vpack.c.b16 %v761, %v759
        %v814 = vpack.c.b16 %v762, %v760
        %v815 = vpack.c.b16 %v765, %v763
        %v816 = vpack.c.b16 %v766, %v764
        %v817 = vpack.c.b16 %v769, %v767
        %v818 = vpack.c.b16 %v770, %v768
        %v819 = vpack.c.b16 %v773, %v771
        %v820 = vpack.c.b16 %v774, %v772
        %v821 = vpack.c.b16 %v777, %v775
        %v822 = vpack.c.b16 %v778, %v776
        %v823 = vpack.c.b16 %v781, %v779
        %v824 = vpack.c.b16 %v782, %v780
        %v825 = vpack.c.b16 %v785, %v783
        %v826 = vpack.c.b16 %v786, %v784
        %v827 = vpack.c.b16 %v789, %v787
        %v828 = vpack.c.b16 %v790, %v788
        %v829 = vpack.c.b16 %v793, %v791
        %v830 = vpack.c.b16 %v794, %v792
        %v831 = vpack.c.b16 %v797, %v795
        %v832 = vpack.c.b16 %v798, %v796
        %v833 = vpack.c.b16 %v801, %v799
        %v834 = vpack.c.b16 %v802, %v800
        %867 = vmatprep.subr.bf16.mxu0 %v804
        %868 = vmatpush1.bf16.msra.mxu0 %v803
        %869 = vmatprep.subr.bf16.mxu0 %v806
        %870 = vmatpush1.bf16.msra.mxu0 %v805
        %871 = vmatprep.subr.bf16.mxu0 %v808
        %872 = vmatpush1.bf16.msra.mxu0 %v807
        %873 = vmatprep.subr.bf16.mxu0 %v810
        %874 = vmatpush1.bf16.msra.mxu0 %v809
        %875 = vmatprep.subr.bf16.mxu0 %v812
        %876 = vmatpush1.bf16.msra.mxu0 %v811
        %877 = vmatprep.subr.bf16.mxu0 %v814
        %878 = vmatpush1.bf16.msra.mxu0 %v813
        %879 = vmatprep.subr.bf16.mxu0 %v816
        %880 = vmatpush1.bf16.msra.mxu0 %v815
        %881 = vmatprep.subr.bf16.mxu0 %v818
        %882 = vmatpush1.bf16.msra.mxu0 %v817
        %883 = vmatprep.subr.bf16.mxu0 %v820
        %884 = vmatpush1.bf16.msra.mxu0 %v819
        %885 = vmatprep.subr.bf16.mxu0 %v822
        %886 = vmatpush1.bf16.msra.mxu0 %v821
        %887 = vmatprep.subr.bf16.mxu0 %v824
        %888 = vmatpush1.bf16.msra.mxu0 %v823
        %889 = vmatprep.subr.bf16.mxu0 %v826
        %890 = vmatpush1.bf16.msra.mxu0 %v825
        %891 = vmatprep.subr.bf16.mxu0 %v828
        %892 = vmatpush1.bf16.msra.mxu0 %v827
        %893 = vmatprep.subr.bf16.mxu0 %v830
        %894 = vmatpush1.bf16.msra.mxu0 %v829
        %895 = vmatprep.subr.bf16.mxu0 %v832
        %896 = vmatpush1.bf16.msra.mxu0 %v831
        %897 = vmatprep.subr.bf16.mxu0 %v834
        %898 = vmatpush1.bf16.msra.mxu0 %v833
        %899 = vmatprep.mubr.bf16.mxu0 %v683
        %900 = vmatmul.mubr.bf16.gmra.mrb[0].mxu0 %v651
        %v901 = vpop.f32.mrb[0].mxu0
        %v902 = vadd.f32 0.0, %v901
        %v903 = vpop.f32.mrb[0].mxu0
        %v904 = vadd.f32 0.0, %v903
        %v905 = vpop.f32.mrb[0].mxu0
        %v906 = vadd.f32 0.0, %v905
        %v907 = vpop.f32.mrb[0].mxu0
        %v908 = vadd.f32 0.0, %v907
        %909 = vmatprep.mubr.bf16.mxu0 %v684
        %910 = vmatmul.mubr.bf16.gmra.mrb[0].mxu0 %v652
        %v911 = vpop.f32.mrb[0].mxu0
        %v912 = vadd.f32 0.0, %v911
        %v913 = vpop.f32.mrb[0].mxu0
        %v914 = vadd.f32 0.0, %v913
        %v915 = vpop.f32.mrb[0].mxu0
        %v916 = vadd.f32 0.0, %v915
        %v917 = vpop.f32.mrb[0].mxu0
        %v918 = vadd.f32 0.0, %v917
        %919 = vmatprep.mubr.bf16.mxu0 %v685
        %920 = vmatmul.mubr.bf16.gmra.mrb[0].mxu0 %v653
        %v921 = vpop.f32.mrb[0].mxu0
        %v922 = vadd.f32 0.0, %v921
        %v923 = vpop.f32.mrb[0].mxu0
        %v924 = vadd.f32 0.0, %v923
        %v925 = vpop.f32.mrb[0].mxu0
        %v926 = vadd.f32 0.0, %v925
        %v927 = vpop.f32.mrb[0].mxu0
        %v928 = vadd.f32 0.0, %v927
        %929 = vmatprep.mubr.bf16.mxu0 %v686
        %930 = vmatmul.mubr.bf16.gmra.mrb[0].mxu0 %v654
        %v931 = vpop.f32.mrb[0].mxu0
        %v932 = vadd.f32 0.0, %v931
        %v933 = vpop.f32.mrb[0].mxu0
        %v934 = vadd.f32 0.0, %v933
        %v935 = vpop.f32.mrb[0].mxu0
        %v936 = vadd.f32 0.0, %v935
        %v937 = vpop.f32.mrb[0].mxu0
        %v938 = vadd.f32 0.0, %v937
        %939 = vmatprep.mubr.bf16.mxu0 %v687
        %940 = vmatmul.mubr.bf16.gmra.mrb[0].mxu0 %v655
        %v941 = vpop.f32.mrb[0].mxu0
        %v942 = vadd.f32 0.0, %v941
        %v943 = vpop.f32.mrb[0].mxu0
        %v944 = vadd.f32 0.0, %v943
        %v945 = vpop.f32.mrb[0].mxu0
        %v946 = vadd.f32 0.0, %v945
        %v947 = vpop.f32.mrb[0].mxu0
        %v948 = vadd.f32 0.0, %v947
        %949 = vmatprep.mubr.bf16.mxu0 %v688
        %950 = vmatmul.mubr.bf16.gmra.mrb[0].mxu0 %v656
        %v951 = vpop.f32.mrb[0].mxu0
        %v952 = vadd.f32 0.0, %v951
        %v953 = vpop.f32.mrb[0].mxu0
        %v954 = vadd.f32 0.0, %v953
        %v955 = vpop.f32.mrb[0].mxu0
        %v956 = vadd.f32 0.0, %v955
        %v957 = vpop.f32.mrb[0].mxu0
        %v958 = vadd.f32 0.0, %v957
        %959 = vmatprep.mubr.bf16.mxu0 %v689
        %960 = vmatmul.mubr.bf16.gmra.mrb[0].mxu0 %v657
        %v961 = vpop.f32.mrb[0].mxu0
        %v962 = vadd.f32 0.0, %v961
        %v963 = vpop.f32.mrb[0].mxu0
        %v964 = vadd.f32 0.0, %v963
        %v965 = vpop.f32.mrb[0].mxu0
        %v966 = vadd.f32 0.0, %v965
        %v967 = vpop.f32.mrb[0].mxu0
        %v968 = vadd.f32 0.0, %v967
        %969 = vmatprep.mubr.bf16.mxu0 %v690
        %970 = vmatmul.mubr.bf16.gmra.mrb[0].mxu0 %v658
        %v971 = vpop.f32.mrb[0].mxu0
        %v972 = vadd.f32 0.0, %v971
        %v973 = vpop.f32.mrb[0].mxu0
        %v974 = vadd.f32 0.0, %v973
        %v975 = vpop.f32.mrb[0].mxu0
        %v976 = vadd.f32 0.0, %v975
        %v977 = vpop.f32.mrb[0].mxu0
        %v978 = vadd.f32 0.0, %v977
        %979 = vmatprep.mubr.bf16.mxu0 %v699
        %980 = vmatmul.mubr.bf16.gmra.mrb[0].mxu0 %v667
        %v981 = vpop.f32.mrb[0].mxu0
        %v982 = vadd.f32 0.0, %v981
        %v983 = vpop.f32.mrb[0].mxu0
        %v984 = vadd.f32 0.0, %v983
        %v985 = vpop.f32.mrb[0].mxu0
        %v986 = vadd.f32 0.0, %v985
        %v987 = vpop.f32.mrb[0].mxu0
        %v988 = vadd.f32 0.0, %v987
        %989 = vmatprep.mubr.bf16.mxu0 %v700
        %990 = vmatmul.mubr.bf16.gmra.mrb[0].mxu0 %v668
        %v991 = vpop.f32.mrb[0].mxu0
        %v992 = vadd.f32 0.0, %v991
        %v993 = vpop.f32.mrb[0].mxu0
        %v994 = vadd.f32 0.0, %v993
        %v995 = vpop.f32.mrb[0].mxu0
        %v996 = vadd.f32 0.0, %v995
        %v997 = vpop.f32.mrb[0].mxu0
        %v998 = vadd.f32 0.0, %v997
        %999 = vmatprep.mubr.bf16.mxu0 %v701
        %1000 = vmatmul.mubr.bf16.gmra.mrb[0].mxu0 %v669
        %v1001 = vpop.f32.mrb[0].mxu0
        %v1002 = vadd.f32 0.0, %v1001
        %v1003 = vpop.f32.mrb[0].mxu0
        %v1004 = vadd.f32 0.0, %v1003
        %v1005 = vpop.f32.mrb[0].mxu0
        %v1006 = vadd.f32 0.0, %v1005
        %v1007 = vpop.f32.mrb[0].mxu0
        %v1008 = vadd.f32 0.0, %v1007
        %1009 = vmatprep.mubr.bf16.mxu0 %v702
        %1010 = vmatmul.mubr.bf16.gmra.mrb[0].mxu0 %v670
        %v1011 = vpop.f32.mrb[0].mxu0
        %v1012 = vadd.f32 0.0, %v1011
        %v1013 = vpop.f32.mrb[0].mxu0
        %v1014 = vadd.f32 0.0, %v1013
        %v1015 = vpop.f32.mrb[0].mxu0
        %v1016 = vadd.f32 0.0, %v1015
        %v1017 = vpop.f32.mrb[0].mxu0
        %v1018 = vadd.f32 0.0, %v1017
        %1019 = vmatprep.mubr.bf16.mxu0 %v703
        %1020 = vmatmul.mubr.bf16.gmra.mrb[0].mxu0 %v671
        %v1021 = vpop.f32.mrb[0].mxu0
        %v1022 = vadd.f32 0.0, %v1021
        %v1023 = vpop.f32.mrb[0].mxu0
        %v1024 = vadd.f32 0.0, %v1023
        %v1025 = vpop.f32.mrb[0].mxu0
        %v1026 = vadd.f32 0.0, %v1025
        %v1027 = vpop.f32.mrb[0].mxu0
        %v1028 = vadd.f32 0.0, %v1027
        %1029 = vmatprep.mubr.bf16.mxu0 %v704
        %1030 = vmatmul.mubr.bf16.gmra.mrb[0].mxu0 %v672
        %v1031 = vpop.f32.mrb[0].mxu0
        %v1032 = vadd.f32 0.0, %v1031
        %v1033 = vpop.f32.mrb[0].mxu0
        %v1034 = vadd.f32 0.0, %v1033
        %v1035 = vpop.f32.mrb[0].mxu0
        %v1036 = vadd.f32 0.0, %v1035
        %v1037 = vpop.f32.mrb[0].mxu0
        %v1038 = vadd.f32 0.0, %v1037
        %1039 = vmatprep.mubr.bf16.mxu0 %v705
        %1040 = vmatmul.mubr.bf16.gmra.mrb[0].mxu0 %v673
        %v1041 = vpop.f32.mrb[0].mxu0
        %v1042 = vadd.f32 0.0, %v1041
        %v1043 = vpop.f32.mrb[0].mxu0
        %v1044 = vadd.f32 0.0, %v1043
        %v1045 = vpop.f32.mrb[0].mxu0
        %v1046 = vadd.f32 0.0, %v1045
        %v1047 = vpop.f32.mrb[0].mxu0
        %v1048 = vadd.f32 0.0, %v1047
        %1049 = vmatprep.mubr.bf16.mxu0 %v706
        %1050 = vmatmul.mubr.bf16.gmra.mrb[0].mxu0 %v674
        %v1051 = vpop.f32.mrb[0].mxu0
        %v1052 = vadd.f32 0.0, %v1051
        %v1053 = vpop.f32.mrb[0].mxu0
        %v1054 = vadd.f32 0.0, %v1053
        %v1055 = vpop.f32.mrb[0].mxu0
        %v1056 = vadd.f32 0.0, %v1055
        %v1057 = vpop.f32.mrb[0].mxu0
        %v1058 = vadd.f32 0.0, %v1057
        %1059 = vdwg.mxu0
        %v1060 = vpack.c.bf16 %v906, %v902
        %v1061 = vpack.c.bf16 %v908, %v904
        %v1062 = vpack.c.bf16 %v916, %v912
        %v1063 = vpack.c.bf16 %v918, %v914
        %v1064 = vpack.c.bf16 %v926, %v922
        %v1065 = vpack.c.bf16 %v928, %v924
        %v1066 = vpack.c.bf16 %v936, %v932
        %v1067 = vpack.c.bf16 %v938, %v934
        %v1068 = vpack.c.bf16 %v946, %v942
        %v1069 = vpack.c.bf16 %v948, %v944
        %v1070 = vpack.c.bf16 %v956, %v952
        %v1071 = vpack.c.bf16 %v958, %v954
        %v1072 = vpack.c.bf16 %v966, %v962
        %v1073 = vpack.c.bf16 %v968, %v964
        %v1074 = vpack.c.bf16 %v976, %v972
        %v1075 = vpack.c.bf16 %v978, %v974
        %v1076 = vpack.c.bf16 %v986, %v982
        %v1077 = vpack.c.bf16 %v988, %v984
        %v1078 = vpack.c.bf16 %v996, %v992
        %v1079 = vpack.c.bf16 %v998, %v994
        %v1080 = vpack.c.bf16 %v1006, %v1002
        %v1081 = vpack.c.bf16 %v1008, %v1004
        %v1082 = vpack.c.bf16 %v1016, %v1012
        %v1083 = vpack.c.bf16 %v1018, %v1014
        %v1084 = vpack.c.bf16 %v1026, %v1022
        %v1085 = vpack.c.bf16 %v1028, %v1024
        %v1086 = vpack.c.bf16 %v1036, %v1032
        %v1087 = vpack.c.bf16 %v1038, %v1034
        %v1088 = vpack.c.bf16 %v1046, %v1042
        %v1089 = vpack.c.bf16 %v1048, %v1044
        %v1090 = vpack.c.bf16 %v1056, %v1052
        %v1091 = vpack.c.bf16 %v1058, %v1054
        %v1092 = vld [vmem:[%s4] sm:$0x3]
        %v1094 = vlaneseq
        %v1095 = vshrl.u32 %v1094, 7
        %v1096 = vsub.s32 0, %v1095
        %v1097 = vrot.slane %v1092, %v1096
        %v1098 = vlaneseq
        %v1099 = vshrl.u32 %v1098, 7
        %v1100 = vsub.s32 1, %v1099
        %v1101 = vrot.slane %v1092, %v1100
        %v1104 = vpack.c.bf16 %v1097, %v1097
        %v1105 = vpack.c.bf16 %v1101, %v1101
        %v1107 = vpack.i.b16 %v1104, %v1104
        %v1109 = vlaneseq
        %v1110 = vshrl.u32 %v1109, 7
        %v1111 = vsub.s32 0, %v1110
        %v1112 = vrot.slane %v1107, %v1111
        %v1114 = vpack.i.b16 %v1105, %v1105
        %v1116 = vlaneseq
        %v1117 = vshrl.u32 %v1116, 7
        %v1118 = vsub.s32 0, %v1117
        %v1119 = vrot.slane %v1114, %v1118
        %v1120 = vadd.bf16 %v1060, %v1112
        %v1121 = vadd.bf16 %v1061, %v1119
        %v1122 = vadd.bf16 %v1062, %v1112
        %v1123 = vadd.bf16 %v1063, %v1119
        %v1124 = vadd.bf16 %v1064, %v1112
        %v1125 = vadd.bf16 %v1065, %v1119
        %v1126 = vadd.bf16 %v1066, %v1112
        %v1127 = vadd.bf16 %v1067, %v1119
        %v1128 = vadd.bf16 %v1068, %v1112
        %v1129 = vadd.bf16 %v1069, %v1119
        %v1130 = vadd.bf16 %v1070, %v1112
        %v1131 = vadd.bf16 %v1071, %v1119
        %v1132 = vadd.bf16 %v1072, %v1112
        %v1133 = vadd.bf16 %v1073, %v1119
        %v1134 = vadd.bf16 %v1074, %v1112
        %v1135 = vadd.bf16 %v1075, %v1119
        %v1136 = vadd.bf16 %v1076, %v1112
        %v1137 = vadd.bf16 %v1077, %v1119
        %v1138 = vadd.bf16 %v1078, %v1112
        %v1139 = vadd.bf16 %v1079, %v1119
        %v1140 = vadd.bf16 %v1080, %v1112
        %v1141 = vadd.bf16 %v1081, %v1119
        %v1142 = vadd.bf16 %v1082, %v1112
        %v1143 = vadd.bf16 %v1083, %v1119
        %v1144 = vadd.bf16 %v1084, %v1112
        %v1145 = vadd.bf16 %v1085, %v1119
        %v1146 = vadd.bf16 %v1086, %v1112
        %v1147 = vadd.bf16 %v1087, %v1119
        %v1148 = vadd.bf16 %v1088, %v1112
        %v1149 = vadd.bf16 %v1089, %v1119
        %v1150 = vadd.bf16 %v1090, %v1112
        %v1151 = vadd.bf16 %v1091, %v1119
        %v1152 = vmax.bf16 %v1120, 0
        %v1153 = vmax.bf16 %v1121, 0
        %v1154 = vmax.bf16 %v1122, 0
        %v1155 = vmax.bf16 %v1123, 0
        %v1156 = vmax.bf16 %v1124, 0
        %v1157 = vmax.bf16 %v1125, 0
        %v1158 = vmax.bf16 %v1126, 0
        %v1159 = vmax.bf16 %v1127, 0
        %v1160 = vmax.bf16 %v1128, 0
        %v1161 = vmax.bf16 %v1129, 0
        %v1162 = vmax.bf16 %v1130, 0
        %v1163 = vmax.bf16 %v1131, 0
        %v1164 = vmax.bf16 %v1132, 0
        %v1165 = vmax.bf16 %v1133, 0
        %v1166 = vmax.bf16 %v1134, 0
        %v1167 = vmax.bf16 %v1135, 0
        %v1168 = vmax.bf16 %v1136, 0
        %v1169 = vmax.bf16 %v1137, 0
        %v1170 = vmax.bf16 %v1138, 0
        %v1171 = vmax.bf16 %v1139, 0
        %v1172 = vmax.bf16 %v1140, 0
        %v1173 = vmax.bf16 %v1141, 0
        %v1174 = vmax.bf16 %v1142, 0
        %v1175 = vmax.bf16 %v1143, 0
        %v1176 = vmax.bf16 %v1144, 0
        %v1177 = vmax.bf16 %v1145, 0
        %v1178 = vmax.bf16 %v1146, 0
        %v1179 = vmax.bf16 %v1147, 0
        %v1180 = vmax.bf16 %v1148, 0
        %v1181 = vmax.bf16 %v1149, 0
        %v1182 = vmax.bf16 %v1150, 0
        %v1183 = vmax.bf16 %v1151, 0
        %v1184 = vmul.bf16 %v1152, %v1152
        %v1185 = vmul.bf16 %v1153, %v1153
        %v1186 = vmul.bf16 %v1154, %v1154
        %v1187 = vmul.bf16 %v1155, %v1155
        %v1188 = vmul.bf16 %v1156, %v1156
        %v1189 = vmul.bf16 %v1157, %v1157
        %v1190 = vmul.bf16 %v1158, %v1158
        %v1191 = vmul.bf16 %v1159, %v1159
        %v1192 = vmul.bf16 %v1160, %v1160
        %v1193 = vmul.bf16 %v1161, %v1161
        %v1194 = vmul.bf16 %v1162, %v1162
        %v1195 = vmul.bf16 %v1163, %v1163
        %v1196 = vmul.bf16 %v1164, %v1164
        %v1197 = vmul.bf16 %v1165, %v1165
        %v1198 = vmul.bf16 %v1166, %v1166
        %v1199 = vmul.bf16 %v1167, %v1167
        %v1200 = vmul.bf16 %v1168, %v1168
        %v1201 = vmul.bf16 %v1169, %v1169
        %v1202 = vmul.bf16 %v1170, %v1170
        %v1203 = vmul.bf16 %v1171, %v1171
        %v1204 = vmul.bf16 %v1172, %v1172
        %v1205 = vmul.bf16 %v1173, %v1173
        %v1206 = vmul.bf16 %v1174, %v1174
        %v1207 = vmul.bf16 %v1175, %v1175
        %v1208 = vmul.bf16 %v1176, %v1176
        %v1209 = vmul.bf16 %v1177, %v1177
        %v1210 = vmul.bf16 %v1178, %v1178
        %v1211 = vmul.bf16 %v1179, %v1179
        %v1212 = vmul.bf16 %v1180, %v1180
        %v1213 = vmul.bf16 %v1181, %v1181
        %v1214 = vmul.bf16 %v1182, %v1182
        %v1215 = vmul.bf16 %v1183, %v1183
        %v1216 = vunpack.c.l.bf16 %v1184
        %v1217 = vunpack.c.l.bf16 %v1185
        %v1218 = vunpack.c.h.bf16 %v1184
        %v1219 = vunpack.c.h.bf16 %v1185
        %v1220 = vunpack.c.l.bf16 %v1186
        %v1221 = vunpack.c.l.bf16 %v1187
        %v1222 = vunpack.c.h.bf16 %v1186
        %v1223 = vunpack.c.h.bf16 %v1187
        %v1224 = vunpack.c.l.bf16 %v1188
        %v1225 = vunpack.c.l.bf16 %v1189
        %v1226 = vunpack.c.h.bf16 %v1188
        %v1227 = vunpack.c.h.bf16 %v1189
        %v1228 = vunpack.c.l.bf16 %v1190
        %v1229 = vunpack.c.l.bf16 %v1191
        %v1230 = vunpack.c.h.bf16 %v1190
        %v1231 = vunpack.c.h.bf16 %v1191
        %v1232 = vunpack.c.l.bf16 %v1192
        %v1233 = vunpack.c.l.bf16 %v1193
        %v1234 = vunpack.c.h.bf16 %v1192
        %v1235 = vunpack.c.h.bf16 %v1193
        %v1236 = vunpack.c.l.bf16 %v1194
        %v1237 = vunpack.c.l.bf16 %v1195
        %v1238 = vunpack.c.h.bf16 %v1194
        %v1239 = vunpack.c.h.bf16 %v1195
        %v1240 = vunpack.c.l.bf16 %v1196
        %v1241 = vunpack.c.l.bf16 %v1197
        %v1242 = vunpack.c.h.bf16 %v1196
        %v1243 = vunpack.c.h.bf16 %v1197
        %v1244 = vunpack.c.l.bf16 %v1198
        %v1245 = vunpack.c.l.bf16 %v1199
        %v1246 = vunpack.c.h.bf16 %v1198
        %v1247 = vunpack.c.h.bf16 %v1199
        %v1248 = vunpack.c.l.bf16 %v1200
        %v1249 = vunpack.c.l.bf16 %v1201
        %v1250 = vunpack.c.h.bf16 %v1200
        %v1251 = vunpack.c.h.bf16 %v1201
        %v1252 = vunpack.c.l.bf16 %v1202
        %v1253 = vunpack.c.l.bf16 %v1203
        %v1254 = vunpack.c.h.bf16 %v1202
        %v1255 = vunpack.c.h.bf16 %v1203
        %v1256 = vunpack.c.l.bf16 %v1204
        %v1257 = vunpack.c.l.bf16 %v1205
        %v1258 = vunpack.c.h.bf16 %v1204
        %v1259 = vunpack.c.h.bf16 %v1205
        %v1260 = vunpack.c.l.bf16 %v1206
        %v1261 = vunpack.c.l.bf16 %v1207
        %v1262 = vunpack.c.h.bf16 %v1206
        %v1263 = vunpack.c.h.bf16 %v1207
        %v1264 = vunpack.c.l.bf16 %v1208
        %v1265 = vunpack.c.l.bf16 %v1209
        %v1266 = vunpack.c.h.bf16 %v1208
        %v1267 = vunpack.c.h.bf16 %v1209
        %v1268 = vunpack.c.l.bf16 %v1210
        %v1269 = vunpack.c.l.bf16 %v1211
        %v1270 = vunpack.c.h.bf16 %v1210
        %v1271 = vunpack.c.h.bf16 %v1211
        %v1272 = vunpack.c.l.bf16 %v1212
        %v1273 = vunpack.c.l.bf16 %v1213
        %v1274 = vunpack.c.h.bf16 %v1212
        %v1275 = vunpack.c.h.bf16 %v1213
        %v1276 = vunpack.c.l.bf16 %v1214
        %v1277 = vunpack.c.l.bf16 %v1215
        %v1278 = vunpack.c.h.bf16 %v1214
        %v1279 = vunpack.c.h.bf16 %v1215
        %v1280 = vadd.f32 %v1216, %v1217
        %1281 = vadd.xlane.f32.xlu0 %v1280
        %v1282 = vpop.xlane.xlu0 %1281
        %v1283 = vadd.f32 %v1218, %v1219
        %1284 = vadd.xlane.f32.xlu0 %v1283
        %v1285 = vpop.xlane.xlu0 %1284
        %v1286 = vadd.f32 %v1220, %v1221
        %1287 = vadd.xlane.f32.xlu0 %v1286
        %v1288 = vpop.xlane.xlu0 %1287
        %v1289 = vadd.f32 %v1222, %v1223
        %1290 = vadd.xlane.f32.xlu0 %v1289
        %v1291 = vpop.xlane.xlu0 %1290
        %v1292 = vadd.f32 %v1224, %v1225
        %1293 = vadd.xlane.f32.xlu0 %v1292
        %v1294 = vpop.xlane.xlu0 %1293
        %v1295 = vadd.f32 %v1226, %v1227
        %1296 = vadd.xlane.f32.xlu0 %v1295
        %v1297 = vpop.xlane.xlu0 %1296
        %v1298 = vadd.f32 %v1228, %v1229
        %1299 = vadd.xlane.f32.xlu0 %v1298
        %v1300 = vpop.xlane.xlu0 %1299
        %v1301 = vadd.f32 %v1230, %v1231
        %1302 = vadd.xlane.f32.xlu0 %v1301
        %v1303 = vpop.xlane.xlu0 %1302
        %v1304 = vadd.f32 %v1232, %v1233
        %1305 = vadd.xlane.f32.xlu0 %v1304
        %v1306 = vpop.xlane.xlu0 %1305
        %v1307 = vadd.f32 %v1234, %v1235
        %1308 = vadd.xlane.f32.xlu0 %v1307
        %v1309 = vpop.xlane.xlu0 %1308
        %v1310 = vadd.f32 %v1236, %v1237
        %1311 = vadd.xlane.f32.xlu0 %v1310
        %v1312 = vpop.xlane.xlu0 %1311
        %v1313 = vadd.f32 %v1238, %v1239
        %1314 = vadd.xlane.f32.xlu0 %v1313
        %v1315 = vpop.xlane.xlu0 %1314
        %v1316 = vadd.f32 %v1240, %v1241
        %1317 = vadd.xlane.f32.xlu0 %v1316
        %v1318 = vpop.xlane.xlu0 %1317
        %v1319 = vadd.f32 %v1242, %v1243
        %1320 = vadd.xlane.f32.xlu0 %v1319
        %v1321 = vpop.xlane.xlu0 %1320
        %v1322 = vadd.f32 %v1244, %v1245
        %1323 = vadd.xlane.f32.xlu0 %v1322
        %v1324 = vpop.xlane.xlu0 %1323
        %v1325 = vadd.f32 %v1246, %v1247
        %1326 = vadd.xlane.f32.xlu0 %v1325
        %v1327 = vpop.xlane.xlu0 %1326
        %v1328 = vadd.f32 %v1248, %v1249
        %1329 = vadd.xlane.f32.xlu0 %v1328
        %v1330 = vpop.xlane.xlu0 %1329
        %v1331 = vadd.f32 %v1250, %v1251
        %1332 = vadd.xlane.f32.xlu0 %v1331
        %v1333 = vpop.xlane.xlu0 %1332
        %v1334 = vadd.f32 %v1252, %v1253
        %1335 = vadd.xlane.f32.xlu0 %v1334
        %v1336 = vpop.xlane.xlu0 %1335
        %v1337 = vadd.f32 %v1254, %v1255
        %1338 = vadd.xlane.f32.xlu0 %v1337
        %v1339 = vpop.xlane.xlu0 %1338
        %v1340 = vadd.f32 %v1256, %v1257
        %1341 = vadd.xlane.f32.xlu0 %v1340
        %v1342 = vpop.xlane.xlu0 %1341
        %v1343 = vadd.f32 %v1258, %v1259
        %1344 = vadd.xlane.f32.xlu0 %v1343
        %v1345 = vpop.xlane.xlu0 %1344
        %v1346 = vadd.f32 %v1260, %v1261
        %1347 = vadd.xlane.f32.xlu0 %v1346
        %v1348 = vpop.xlane.xlu0 %1347
        %v1349 = vadd.f32 %v1262, %v1263
        %1350 = vadd.xlane.f32.xlu0 %v1349
        %v1351 = vpop.xlane.xlu0 %1350
        %v1352 = vadd.f32 %v1264, %v1265
        %1353 = vadd.xlane.f32.xlu0 %v1352
        %v1354 = vpop.xlane.xlu0 %1353
        %v1355 = vadd.f32 %v1266, %v1267
        %1356 = vadd.xlane.f32.xlu0 %v1355
        %v1357 = vpop.xlane.xlu0 %1356
        %v1358 = vadd.f32 %v1268, %v1269
        %1359 = vadd.xlane.f32.xlu0 %v1358
        %v1360 = vpop.xlane.xlu0 %1359
        %v1361 = vadd.f32 %v1270, %v1271
        %1362 = vadd.xlane.f32.xlu0 %v1361
        %v1363 = vpop.xlane.xlu0 %1362
        %v1364 = vadd.f32 %v1272, %v1273
        %1365 = vadd.xlane.f32.xlu0 %v1364
        %v1366 = vpop.xlane.xlu0 %1365
        %v1367 = vadd.f32 %v1274, %v1275
        %1368 = vadd.xlane.f32.xlu0 %v1367
        %v1369 = vpop.xlane.xlu0 %1368
        %v1370 = vadd.f32 %v1276, %v1277
        %1371 = vadd.xlane.f32.xlu0 %v1370
        %v1372 = vpop.xlane.xlu0 %1371
        %v1373 = vadd.f32 %v1278, %v1279
        %1374 = vadd.xlane.f32.xlu0 %v1373
        %v1375 = vpop.xlane.xlu0 %1374
        %v1376 = vmax.f32 %v1282, 1e-24
        %v1377 = vmax.f32 %v1285, 1e-24
        %v1378 = vmax.f32 %v1288, 1e-24
        %v1379 = vmax.f32 %v1291, 1e-24
        %v1380 = vmax.f32 %v1294, 1e-24
        %v1381 = vmax.f32 %v1297, 1e-24
        %v1382 = vmax.f32 %v1300, 1e-24
        %v1383 = vmax.f32 %v1303, 1e-24
        %v1384 = vmax.f32 %v1306, 1e-24
        %v1385 = vmax.f32 %v1309, 1e-24
        %v1386 = vmax.f32 %v1312, 1e-24
        %v1387 = vmax.f32 %v1315, 1e-24
        %v1388 = vmax.f32 %v1318, 1e-24
        %v1389 = vmax.f32 %v1321, 1e-24
        %v1390 = vmax.f32 %v1324, 1e-24
        %v1391 = vmax.f32 %v1327, 1e-24
        %v1392 = vmax.f32 %v1330, 1e-24
        %v1393 = vmax.f32 %v1333, 1e-24
        %v1394 = vmax.f32 %v1336, 1e-24
        %v1395 = vmax.f32 %v1339, 1e-24
        %v1396 = vmax.f32 %v1342, 1e-24
        %v1397 = vmax.f32 %v1345, 1e-24
        %v1398 = vmax.f32 %v1348, 1e-24
        %v1399 = vmax.f32 %v1351, 1e-24
        %v1400 = vmax.f32 %v1354, 1e-24
        %v1401 = vmax.f32 %v1357, 1e-24
        %v1402 = vmax.f32 %v1360, 1e-24
        %v1403 = vmax.f32 %v1363, 1e-24
        %v1404 = vmax.f32 %v1366, 1e-24
        %v1405 = vmax.f32 %v1369, 1e-24
        %v1406 = vmax.f32 %v1372, 1e-24
        %v1407 = vmax.f32 %v1375, 1e-24
        %v1408 = vrsqrt.pop %v1376
        %v1409 = vrsqrt.pop %v1377
        %v1410 = vrsqrt.pop %v1378
        %v1411 = vrsqrt.pop %v1379
        %v1412 = vrsqrt.pop %v1380
        %v1413 = vrsqrt.pop %v1381
        %v1414 = vrsqrt.pop %v1382
        %v1415 = vrsqrt.pop %v1383
        %v1416 = vrsqrt.pop %v1384
        %v1417 = vrsqrt.pop %v1385
        %v1418 = vrsqrt.pop %v1386
        %v1419 = vrsqrt.pop %v1387
        %v1420 = vrsqrt.pop %v1388
        %v1421 = vrsqrt.pop %v1389
        %v1422 = vrsqrt.pop %v1390
        %v1423 = vrsqrt.pop %v1391
        %v1424 = vrsqrt.pop %v1392
        %v1425 = vrsqrt.pop %v1393
        %v1426 = vrsqrt.pop %v1394
        %v1427 = vrsqrt.pop %v1395
        %v1428 = vrsqrt.pop %v1396
        %v1429 = vrsqrt.pop %v1397
        %v1430 = vrsqrt.pop %v1398
        %v1431 = vrsqrt.pop %v1399
        %v1432 = vrsqrt.pop %v1400
        %v1433 = vrsqrt.pop %v1401
        %v1434 = vrsqrt.pop %v1402
        %v1435 = vrsqrt.pop %v1403
        %v1436 = vrsqrt.pop %v1404
        %v1437 = vrsqrt.pop %v1405
        %v1438 = vrsqrt.pop %v1406
        %v1439 = vrsqrt.pop %v1407
        %v1440 = vpack.c.bf16 %v1409, %v1408
        %v1441 = vpack.c.bf16 %v1411, %v1410
        %v1442 = vpack.c.bf16 %v1413, %v1412
        %v1443 = vpack.c.bf16 %v1415, %v1414
        %v1444 = vpack.c.bf16 %v1417, %v1416
        %v1445 = vpack.c.bf16 %v1419, %v1418
        %v1446 = vpack.c.bf16 %v1421, %v1420
        %v1447 = vpack.c.bf16 %v1423, %v1422
        %v1448 = vpack.c.bf16 %v1425, %v1424
        %v1449 = vpack.c.bf16 %v1427, %v1426
        %v1450 = vpack.c.bf16 %v1429, %v1428
        %v1451 = vpack.c.bf16 %v1431, %v1430
        %v1452 = vpack.c.bf16 %v1433, %v1432
        %v1453 = vpack.c.bf16 %v1435, %v1434
        %v1454 = vpack.c.bf16 %v1437, %v1436
        %v1455 = vpack.c.bf16 %v1439, %v1438
        %v1456 = vmul.bf16 %v1152, %v1440
        %v1457 = vmul.bf16 %v1153, %v1440
        %v1458 = vmul.bf16 %v1154, %v1441
        %v1459 = vmul.bf16 %v1155, %v1441
        %v1460 = vmul.bf16 %v1156, %v1442
        %v1461 = vmul.bf16 %v1157, %v1442
        %v1462 = vmul.bf16 %v1158, %v1443
        %v1463 = vmul.bf16 %v1159, %v1443
        %v1464 = vmul.bf16 %v1160, %v1444
        %v1465 = vmul.bf16 %v1161, %v1444
        %v1466 = vmul.bf16 %v1162, %v1445
        %v1467 = vmul.bf16 %v1163, %v1445
        %v1468 = vmul.bf16 %v1164, %v1446
        %v1469 = vmul.bf16 %v1165, %v1446
        %v1470 = vmul.bf16 %v1166, %v1447
        %v1471 = vmul.bf16 %v1167, %v1447
        %v1472 = vmul.bf16 %v1168, %v1448
        %v1473 = vmul.bf16 %v1169, %v1448
        %v1474 = vmul.bf16 %v1170, %v1449
        %v1475 = vmul.bf16 %v1171, %v1449
        %v1476 = vmul.bf16 %v1172, %v1450
        %v1477 = vmul.bf16 %v1173, %v1450
        %v1478 = vmul.bf16 %v1174, %v1451
        %v1479 = vmul.bf16 %v1175, %v1451
        %v1480 = vmul.bf16 %v1176, %v1452
        %v1481 = vmul.bf16 %v1177, %v1452
        %v1482 = vmul.bf16 %v1178, %v1453
        %v1483 = vmul.bf16 %v1179, %v1453
        %v1484 = vmul.bf16 %v1180, %v1454
        %v1485 = vmul.bf16 %v1181, %v1454
        %v1486 = vmul.bf16 %v1182, %v1455
        %v1487 = vmul.bf16 %v1183, %v1455
        %v1488 = vld [vmem:[%s5] sm:$0xf]
        %v1489 = vld [vmem:[%s5 + $0x4] sm:$0xf]
        %v1490 = vld [vmem:[%s5 + $0x8] sm:$0xf]
        %v1491 = vld [vmem:[%s5 + $0xc] sm:$0xf]
        %v1492 = vld [vmem:[%s5 + $0x10] sm:$0xf]
        %v1493 = vld [vmem:[%s5 + $0x14] sm:$0xf]
        %v1494 = vld [vmem:[%s5 + $0x18] sm:$0xf]
        %v1495 = vld [vmem:[%s5 + $0x1c] sm:$0xf]
        %v1496 = vld [vmem:[%s5 + $0x20] sm:$0xf]
        %v1497 = vld [vmem:[%s5 + $0x24] sm:$0xf]
        %v1498 = vld [vmem:[%s5 + $0x28] sm:$0xf]
        %v1499 = vld [vmem:[%s5 + $0x2c] sm:$0xf]
        %v1500 = vld [vmem:[%s5 + $0x30] sm:$0xf]
        %v1501 = vld [vmem:[%s5 + $0x34] sm:$0xf]
        %v1502 = vld [vmem:[%s5 + $0x38] sm:$0xf]
        %v1503 = vld [vmem:[%s5 + $0x3c] sm:$0xf]
        %v1504 = vld [vmem:[%s5 + $0x40] sm:$0xf]
        %v1505 = vld [vmem:[%s5 + $0x44] sm:$0xf]
        %v1506 = vld [vmem:[%s5 + $0x48] sm:$0xf]
        %v1507 = vld [vmem:[%s5 + $0x4c] sm:$0xf]
        %v1508 = vld [vmem:[%s5 + $0x50] sm:$0xf]
        %v1509 = vld [vmem:[%s5 + $0x54] sm:$0xf]
        %v1510 = vld [vmem:[%s5 + $0x58] sm:$0xf]
        %v1511 = vld [vmem:[%s5 + $0x5c] sm:$0xf]
        %v1512 = vld [vmem:[%s5 + $0x60] sm:$0xf]
        %v1513 = vld [vmem:[%s5 + $0x64] sm:$0xf]
        %v1514 = vld [vmem:[%s5 + $0x68] sm:$0xf]
        %v1515 = vld [vmem:[%s5 + $0x6c] sm:$0xf]
        %v1516 = vld [vmem:[%s5 + $0x70] sm:$0xf]
        %v1517 = vld [vmem:[%s5 + $0x74] sm:$0xf]
        %v1518 = vld [vmem:[%s5 + $0x78] sm:$0xf]
        %v1519 = vld [vmem:[%s5 + $0x7c] sm:$0xf]
        %v1520 = vld [vmem:[%s6] sm:$0x1]
        %v1522 = vlaneseq
        %v1523 = vshrl.u32 %v1522, 7
        %v1524 = vsub.s32 0, %v1523
        %v1525 = vrot.slane %v1520, %v1524
        %v1559 = vunpack.c.l.b16 %v1488
        %v1560 = vunpack.c.l.b16 %v1489
        %v1561 = vunpack.c.l.b16 %v1490
        %v1562 = vunpack.c.l.b16 %v1491
        %v1563 = vunpack.c.l.b16 %v1492
        %v1564 = vunpack.c.l.b16 %v1493
        %v1565 = vunpack.c.l.b16 %v1494
        %v1566 = vunpack.c.l.b16 %v1495
        %v1567 = vunpack.c.l.b16 %v1496
        %v1568 = vunpack.c.l.b16 %v1497
        %v1569 = vunpack.c.l.b16 %v1498
        %v1570 = vunpack.c.l.b16 %v1499
        %v1571 = vunpack.c.l.b16 %v1500
        %v1572 = vunpack.c.l.b16 %v1501
        %v1573 = vunpack.c.l.b16 %v1502
        %v1574 = vunpack.c.l.b16 %v1503
        %v1575 = vunpack.c.l.b16 %v1504
        %v1576 = vunpack.c.l.b16 %v1505
        %v1577 = vunpack.c.l.b16 %v1506
        %v1578 = vunpack.c.l.b16 %v1507
        %v1579 = vunpack.c.l.b16 %v1508
        %v1580 = vunpack.c.l.b16 %v1509
        %v1581 = vunpack.c.l.b16 %v1510
        %v1582 = vunpack.c.l.b16 %v1511
        %v1583 = vunpack.c.l.b16 %v1512
        %v1584 = vunpack.c.l.b16 %v1513
        %v1585 = vunpack.c.l.b16 %v1514
        %v1586 = vunpack.c.l.b16 %v1515
        %v1587 = vunpack.c.l.b16 %v1516
        %v1588 = vunpack.c.l.b16 %v1517
        %v1589 = vunpack.c.l.b16 %v1518
        %v1590 = vunpack.c.l.b16 %v1519
        %v1591 = vpack.c.b16 %v1560, %v1559
        %v1592 = vpack.c.b16 %v1562, %v1561
        %v1593 = vpack.c.b16 %v1564, %v1563
        %v1594 = vpack.c.b16 %v1566, %v1565
        %v1595 = vpack.c.b16 %v1568, %v1567
        %v1596 = vpack.c.b16 %v1570, %v1569
        %v1597 = vpack.c.b16 %v1572, %v1571
        %v1598 = vpack.c.b16 %v1574, %v1573
        %v1599 = vpack.c.b16 %v1576, %v1575
        %v1600 = vpack.c.b16 %v1578, %v1577
        %v1601 = vpack.c.b16 %v1580, %v1579
        %v1602 = vpack.c.b16 %v1582, %v1581
        %v1603 = vpack.c.b16 %v1584, %v1583
        %v1604 = vpack.c.b16 %v1586, %v1585
        %v1605 = vpack.c.b16 %v1588, %v1587
        %v1606 = vpack.c.b16 %v1590, %v1589
        %1623 = vmatprep.subr.bf16.mxu0 0
        %1624 = vmatpush1.bf16.msra.mxu0 %v1591
        %1625 = vmatprep.subr.bf16.mxu0 0
        %1626 = vmatpush1.bf16.msra.mxu0 %v1592
        %1627 = vmatprep.subr.bf16.mxu0 0
        %1628 = vmatpush1.bf16.msra.mxu0 %v1593
        %1629 = vmatprep.subr.bf16.mxu0 0
        %1630 = vmatpush1.bf16.msra.mxu0 %v1594
        %1631 = vmatprep.subr.bf16.mxu0 0
        %1632 = vmatpush1.bf16.msra.mxu0 %v1595
        %1633 = vmatprep.subr.bf16.mxu0 0
        %1634 = vmatpush1.bf16.msra.mxu0 %v1596
        %1635 = vmatprep.subr.bf16.mxu0 0
        %1636 = vmatpush1.bf16.msra.mxu0 %v1597
        %1637 = vmatprep.subr.bf16.mxu0 0
        %1638 = vmatpush1.bf16.msra.mxu0 %v1598
        %1639 = vmatprep.subr.bf16.mxu0 0
        %1640 = vmatpush1.bf16.msra.mxu0 %v1599
        %1641 = vmatprep.subr.bf16.mxu0 0
        %1642 = vmatpush1.bf16.msra.mxu0 %v1600
        %1643 = vmatprep.subr.bf16.mxu0 0
        %1644 = vmatpush1.bf16.msra.mxu0 %v1601
        %1645 = vmatprep.subr.bf16.mxu0 0
        %1646 = vmatpush1.bf16.msra.mxu0 %v1602
        %1647 = vmatprep.subr.bf16.mxu0 0
        %1648 = vmatpush1.bf16.msra.mxu0 %v1603
        %1649 = vmatprep.subr.bf16.mxu0 0
        %1650 = vmatpush1.bf16.msra.mxu0 %v1604
        %1651 = vmatprep.subr.bf16.mxu0 0
        %1652 = vmatpush1.bf16.msra.mxu0 %v1605
        %1653 = vmatprep.subr.bf16.mxu0 0
        %1654 = vmatpush1.bf16.msra.mxu0 %v1606
        %1655 = vmatprep.mubr.bf16.mxu0 %v1457
        %1656 = vmatmul.mubr.bf16.gmra.mrb[0].mxu0 %v1456
        %v1657 = vpop.f32.mrb[0].mxu0
        %v1658 = vadd.f32 %v1525, %v1657
        %v1659 = vpop.f32.mrb[0].mxu0
        %v1660 = vpop.f32.mrb[0].mxu0
        %v1661 = vadd.f32 %v1525, %v1660
        %v1662 = vpop.f32.mrb[0].mxu0
        %1663 = vmatprep.mubr.bf16.mxu0 %v1459
        %1664 = vmatmul.mubr.bf16.gmra.mrb[0].mxu0 %v1458
        %v1665 = vpop.f32.mrb[0].mxu0
        %v1666 = vadd.f32 %v1525, %v1665
        %v1667 = vpop.f32.mrb[0].mxu0
        %v1668 = vpop.f32.mrb[0].mxu0
        %v1669 = vadd.f32 %v1525, %v1668
        %v1670 = vpop.f32.mrb[0].mxu0
        %1671 = vmatprep.mubr.bf16.mxu0 %v1461
        %1672 = vmatmul.mubr.bf16.gmra.mrb[0].mxu0 %v1460
        %v1673 = vpop.f32.mrb[0].mxu0
        %v1674 = vadd.f32 %v1525, %v1673
        %v1675 = vpop.f32.mrb[0].mxu0
        %v1676 = vpop.f32.mrb[0].mxu0
        %v1677 = vadd.f32 %v1525, %v1676
        %v1678 = vpop.f32.mrb[0].mxu0
        %1679 = vmatprep.mubr.bf16.mxu0 %v1463
        %1680 = vmatmul.mubr.bf16.gmra.mrb[0].mxu0 %v1462
        %v1681 = vpop.f32.mrb[0].mxu0
        %v1682 = vadd.f32 %v1525, %v1681
        %v1683 = vpop.f32.mrb[0].mxu0
        %v1684 = vpop.f32.mrb[0].mxu0
        %v1685 = vadd.f32 %v1525, %v1684
        %v1686 = vpop.f32.mrb[0].mxu0
        %1687 = vmatprep.mubr.bf16.mxu0 %v1465
        %1688 = vmatmul.mubr.bf16.gmra.mrb[0].mxu0 %v1464
        %v1689 = vpop.f32.mrb[0].mxu0
        %v1690 = vadd.f32 %v1525, %v1689
        %v1691 = vpop.f32.mrb[0].mxu0
        %v1692 = vpop.f32.mrb[0].mxu0
        %v1693 = vadd.f32 %v1525, %v1692
        %v1694 = vpop.f32.mrb[0].mxu0
        %1695 = vmatprep.mubr.bf16.mxu0 %v1467
        %1696 = vmatmul.mubr.bf16.gmra.mrb[0].mxu0 %v1466
        %v1697 = vpop.f32.mrb[0].mxu0
        %v1698 = vadd.f32 %v1525, %v1697
        %v1699 = vpop.f32.mrb[0].mxu0
        %v1700 = vpop.f32.mrb[0].mxu0
        %v1701 = vadd.f32 %v1525, %v1700
        %v1702 = vpop.f32.mrb[0].mxu0
        %1703 = vmatprep.mubr.bf16.mxu0 %v1469
        %1704 = vmatmul.mubr.bf16.gmra.mrb[0].mxu0 %v1468
        %v1705 = vpop.f32.mrb[0].mxu0
        %v1706 = vadd.f32 %v1525, %v1705
        %v1707 = vpop.f32.mrb[0].mxu0
        %v1708 = vpop.f32.mrb[0].mxu0
        %v1709 = vadd.f32 %v1525, %v1708
        %v1710 = vpop.f32.mrb[0].mxu0
        %1711 = vmatprep.mubr.bf16.mxu0 %v1471
        %1712 = vmatmul.mubr.bf16.gmra.mrb[0].mxu0 %v1470
        %v1713 = vpop.f32.mrb[0].mxu0
        %v1714 = vadd.f32 %v1525, %v1713
        %v1715 = vpop.f32.mrb[0].mxu0
        %v1716 = vpop.f32.mrb[0].mxu0
        %v1717 = vadd.f32 %v1525, %v1716
        %v1718 = vpop.f32.mrb[0].mxu0
        %1719 = vmatprep.mubr.bf16.mxu0 %v1473
        %1720 = vmatmul.mubr.bf16.gmra.mrb[0].mxu0 %v1472
        %v1721 = vpop.f32.mrb[0].mxu0
        %v1722 = vadd.f32 %v1525, %v1721
        %v1723 = vpop.f32.mrb[0].mxu0
        %v1724 = vpop.f32.mrb[0].mxu0
        %v1725 = vadd.f32 %v1525, %v1724
        %v1726 = vpop.f32.mrb[0].mxu0
        %1727 = vmatprep.mubr.bf16.mxu0 %v1475
        %1728 = vmatmul.mubr.bf16.gmra.mrb[0].mxu0 %v1474
        %v1729 = vpop.f32.mrb[0].mxu0
        %v1730 = vadd.f32 %v1525, %v1729
        %v1731 = vpop.f32.mrb[0].mxu0
        %v1732 = vpop.f32.mrb[0].mxu0
        %v1733 = vadd.f32 %v1525, %v1732
        %v1734 = vpop.f32.mrb[0].mxu0
        %1735 = vmatprep.mubr.bf16.mxu0 %v1477
        %1736 = vmatmul.mubr.bf16.gmra.mrb[0].mxu0 %v1476
        %v1737 = vpop.f32.mrb[0].mxu0
        %v1738 = vadd.f32 %v1525, %v1737
        %v1739 = vpop.f32.mrb[0].mxu0
        %v1740 = vpop.f32.mrb[0].mxu0
        %v1741 = vadd.f32 %v1525, %v1740
        %v1742 = vpop.f32.mrb[0].mxu0
        %1743 = vmatprep.mubr.bf16.mxu0 %v1479
        %1744 = vmatmul.mubr.bf16.gmra.mrb[0].mxu0 %v1478
        %v1745 = vpop.f32.mrb[0].mxu0
        %v1746 = vadd.f32 %v1525, %v1745
        %v1747 = vpop.f32.mrb[0].mxu0
        %v1748 = vpop.f32.mrb[0].mxu0
        %v1749 = vadd.f32 %v1525, %v1748
        %v1750 = vpop.f32.mrb[0].mxu0
        %1751 = vmatprep.mubr.bf16.mxu0 %v1481
        %1752 = vmatmul.mubr.bf16.gmra.mrb[0].mxu0 %v1480
        %v1753 = vpop.f32.mrb[0].mxu0
        %v1754 = vadd.f32 %v1525, %v1753
        %v1755 = vpop.f32.mrb[0].mxu0
        %v1756 = vpop.f32.mrb[0].mxu0
        %v1757 = vadd.f32 %v1525, %v1756
        %v1758 = vpop.f32.mrb[0].mxu0
        %1759 = vmatprep.mubr.bf16.mxu0 %v1483
        %1760 = vmatmul.mubr.bf16.gmra.mrb[0].mxu0 %v1482
        %v1761 = vpop.f32.mrb[0].mxu0
        %v1762 = vadd.f32 %v1525, %v1761
        %v1763 = vpop.f32.mrb[0].mxu0
        %v1764 = vpop.f32.mrb[0].mxu0
        %v1765 = vadd.f32 %v1525, %v1764
        %v1766 = vpop.f32.mrb[0].mxu0
        %1767 = vmatprep.mubr.bf16.mxu0 %v1485
        %1768 = vmatmul.mubr.bf16.gmra.mrb[0].mxu0 %v1484
        %v1769 = vpop.f32.mrb[0].mxu0
        %v1770 = vadd.f32 %v1525, %v1769
        %v1771 = vpop.f32.mrb[0].mxu0
        %v1772 = vpop.f32.mrb[0].mxu0
        %v1773 = vadd.f32 %v1525, %v1772
        %v1774 = vpop.f32.mrb[0].mxu0
        %1775 = vmatprep.mubr.bf16.mxu0 %v1487
        %1776 = vmatmul.mubr.bf16.gmra.mrb[0].mxu0 %v1486
        %v1777 = vpop.f32.mrb[0].mxu0
        %v1778 = vadd.f32 %v1525, %v1777
        %v1779 = vpop.f32.mrb[0].mxu0
        %v1780 = vpop.f32.mrb[0].mxu0
        %v1781 = vadd.f32 %v1525, %v1780
        %v1782 = vpop.f32.mrb[0].mxu0
        %1783 = vdwg.mxu0
        %v1784 = vmax.f32 %v1658, 0.0
        %v1785 = vmax.f32 %v1661, 0.0
        %v1786 = vmax.f32 %v1666, 0.0
        %v1787 = vmax.f32 %v1669, 0.0
        %v1788 = vmax.f32 %v1674, 0.0
        %v1789 = vmax.f32 %v1677, 0.0
        %v1790 = vmax.f32 %v1682, 0.0
        %v1791 = vmax.f32 %v1685, 0.0
        %v1792 = vmax.f32 %v1690, 0.0
        %v1793 = vmax.f32 %v1693, 0.0
        %v1794 = vmax.f32 %v1698, 0.0
        %v1795 = vmax.f32 %v1701, 0.0
        %v1796 = vmax.f32 %v1706, 0.0
        %v1797 = vmax.f32 %v1709, 0.0
        %v1798 = vmax.f32 %v1714, 0.0
        %v1799 = vmax.f32 %v1717, 0.0
        %v1800 = vmax.f32 %v1722, 0.0
        %v1801 = vmax.f32 %v1725, 0.0
        %v1802 = vmax.f32 %v1730, 0.0
        %v1803 = vmax.f32 %v1733, 0.0
        %v1804 = vmax.f32 %v1738, 0.0
        %v1805 = vmax.f32 %v1741, 0.0
        %v1806 = vmax.f32 %v1746, 0.0
        %v1807 = vmax.f32 %v1749, 0.0
        %v1808 = vmax.f32 %v1754, 0.0
        %v1809 = vmax.f32 %v1757, 0.0
        %v1810 = vmax.f32 %v1762, 0.0
        %v1811 = vmax.f32 %v1765, 0.0
        %v1812 = vmax.f32 %v1770, 0.0
        %v1813 = vmax.f32 %v1773, 0.0
        %v1814 = vmax.f32 %v1778, 0.0
        %v1815 = vmax.f32 %v1781, 0.0
        %v1816 = vpack.c.bf16 %v1785, %v1784
        %v1817 = vpack.c.bf16 %v1787, %v1786
        %v1818 = vpack.c.bf16 %v1789, %v1788
        %v1819 = vpack.c.bf16 %v1791, %v1790
        %v1820 = vpack.c.bf16 %v1793, %v1792
        %v1821 = vpack.c.bf16 %v1795, %v1794
        %v1822 = vpack.c.bf16 %v1797, %v1796
        %v1823 = vpack.c.bf16 %v1799, %v1798
        %v1824 = vpack.c.bf16 %v1801, %v1800
        %v1825 = vpack.c.bf16 %v1803, %v1802
        %v1826 = vpack.c.bf16 %v1805, %v1804
        %v1827 = vpack.c.bf16 %v1807, %v1806
        %v1828 = vpack.c.bf16 %v1809, %v1808
        %v1829 = vpack.c.bf16 %v1811, %v1810
        %v1830 = vpack.c.bf16 %v1813, %v1812
        %v1831 = vpack.c.bf16 %v1815, %v1814
        %v1832 = vld [vmem:[%s7] sm:$0xf]
        %v1833 = vld [vmem:[%s7 + $0x4] sm:$0xf]
        %v1834 = vld [vmem:[%s7 + $0x8] sm:$0xf]
        %v1835 = vld [vmem:[%s7 + $0xc] sm:$0xf]
        %v1836 = vld [vmem:[%s7 + $0x10] sm:$0xf]
        %v1837 = vld [vmem:[%s7 + $0x14] sm:$0xf]
        %v1838 = vld [vmem:[%s7 + $0x18] sm:$0xf]
        %v1839 = vld [vmem:[%s7 + $0x1c] sm:$0xf]
        %v1840 = vld [vmem:[%s7 + $0x20] sm:$0xf]
        %v1841 = vld [vmem:[%s7 + $0x24] sm:$0xf]
        %v1842 = vld [vmem:[%s7 + $0x28] sm:$0xf]
        %v1843 = vld [vmem:[%s7 + $0x2c] sm:$0xf]
        %v1844 = vld [vmem:[%s7 + $0x30] sm:$0xf]
        %v1845 = vld [vmem:[%s7 + $0x34] sm:$0xf]
        %v1846 = vld [vmem:[%s7 + $0x38] sm:$0xf]
        %v1847 = vld [vmem:[%s7 + $0x3c] sm:$0xf]
        %v1848 = vld [vmem:[%s8] sm:$0x1]
        %v1850 = vlaneseq
        %v1851 = vshrl.u32 %v1850, 7
        %v1852 = vsub.s32 0, %v1851
        %v1853 = vrot.slane %v1848, %v1852
        %v1871 = vunpack.c.l.b16 %v1832
        %v1872 = vunpack.c.l.b16 %v1833
        %v1873 = vunpack.c.l.b16 %v1834
        %v1874 = vunpack.c.l.b16 %v1835
        %v1875 = vunpack.c.l.b16 %v1836
        %v1876 = vunpack.c.l.b16 %v1837
        %v1877 = vunpack.c.l.b16 %v1838
        %v1878 = vunpack.c.l.b16 %v1839
        %v1879 = vunpack.c.l.b16 %v1840
        %v1880 = vunpack.c.l.b16 %v1841
        %v1881 = vunpack.c.l.b16 %v1842
        %v1882 = vunpack.c.l.b16 %v1843
        %v1883 = vunpack.c.l.b16 %v1844
        %v1884 = vunpack.c.l.b16 %v1845
        %v1885 = vunpack.c.l.b16 %v1846
        %v1886 = vunpack.c.l.b16 %v1847
        %v1887 = vpack.c.b16 %v1872, %v1871
        %v1888 = vpack.c.b16 %v1874, %v1873
        %v1889 = vpack.c.b16 %v1876, %v1875
        %v1890 = vpack.c.b16 %v1878, %v1877
        %v1891 = vpack.c.b16 %v1880, %v1879
        %v1892 = vpack.c.b16 %v1882, %v1881
        %v1893 = vpack.c.b16 %v1884, %v1883
        %v1894 = vpack.c.b16 %v1886, %v1885
        %1903 = vmatprep.subr.bf16.mxu0 0
        %1904 = vmatpush1.bf16.msra.mxu0 %v1887
        %1905 = vmatprep.subr.bf16.mxu0 0
        %1906 = vmatpush1.bf16.msra.mxu0 %v1888
        %1907 = vmatprep.subr.bf16.mxu0 0
        %1908 = vmatpush1.bf16.msra.mxu0 %v1889
        %1909 = vmatprep.subr.bf16.mxu0 0
        %1910 = vmatpush1.bf16.msra.mxu0 %v1890
        %1911 = vmatprep.subr.bf16.mxu0 0
        %1912 = vmatpush1.bf16.msra.mxu0 %v1891
        %1913 = vmatprep.subr.bf16.mxu0 0
        %1914 = vmatpush1.bf16.msra.mxu0 %v1892
        %1915 = vmatprep.subr.bf16.mxu0 0
        %1916 = vmatpush1.bf16.msra.mxu0 %v1893
        %1917 = vmatprep.subr.bf16.mxu0 0
        %1918 = vmatpush1.bf16.msra.mxu0 %v1894
        %1919 = vmatprep.subr.bf16.mxu0 0
        %1920 = vmatpush1.bf16.msra.mxu0 0
        %1921 = vmatprep.subr.bf16.mxu0 0
        %1922 = vmatpush1.bf16.msra.mxu0 0
        %1923 = vmatprep.subr.bf16.mxu0 0
        %1924 = vmatpush1.bf16.msra.mxu0 0
        %1925 = vmatprep.subr.bf16.mxu0 0
        %1926 = vmatpush1.bf16.msra.mxu0 0
        %1927 = vmatprep.subr.bf16.mxu0 0
        %1928 = vmatpush1.bf16.msra.mxu0 0
        %1929 = vmatprep.subr.bf16.mxu0 0
        %1930 = vmatpush1.bf16.msra.mxu0 0
        %1931 = vmatprep.subr.bf16.mxu0 0
        %1932 = vmatpush1.bf16.msra.mxu0 0
        %1933 = vmatprep.subr.bf16.mxu0 0
        %1934 = vmatpush1.bf16.msra.mxu0 0
        %1935 = vmatprep.mubr.bf16.mxu0 0
        %1936 = vmatmul.mubr.bf16.gmra.mrb[0].mxu0 %v1816
        %v1937 = vpop.f32.mrb[0].mxu0
        %v1938 = vadd.f32 %v1853, %v1937
        %v1939 = vpop.f32.mrb[0].mxu0
        %v1940 = vpop.f32.mrb[0].mxu0
        %v1941 = vadd.f32 %v1853, %v1940
        %v1942 = vpop.f32.mrb[0].mxu0
        %1943 = vmatprep.mubr.bf16.mxu0 0
        %1944 = vmatmul.mubr.bf16.gmra.mrb[0].mxu0 %v1817
        %v1945 = vpop.f32.mrb[0].mxu0
        %v1946 = vadd.f32 %v1853, %v1945
        %v1947 = vpop.f32.mrb[0].mxu0
        %v1948 = vpop.f32.mrb[0].mxu0
        %v1949 = vadd.f32 %v1853, %v1948
        %v1950 = vpop.f32.mrb[0].mxu0
        %1951 = vmatprep.mubr.bf16.mxu0 0
        %1952 = vmatmul.mubr.bf16.gmra.mrb[0].mxu0 %v1818
        %v1953 = vpop.f32.mrb[0].mxu0
        %v1954 = vadd.f32 %v1853, %v1953
        %v1955 = vpop.f32.mrb[0].mxu0
        %v1956 = vpop.f32.mrb[0].mxu0
        %v1957 = vadd.f32 %v1853, %v1956
        %v1958 = vpop.f32.mrb[0].mxu0
        %1959 = vmatprep.mubr.bf16.mxu0 0
        %1960 = vmatmul.mubr.bf16.gmra.mrb[0].mxu0 %v1819
        %v1961 = vpop.f32.mrb[0].mxu0
        %v1962 = vadd.f32 %v1853, %v1961
        %v1963 = vpop.f32.mrb[0].mxu0
        %v1964 = vpop.f32.mrb[0].mxu0
        %v1965 = vadd.f32 %v1853, %v1964
        %v1966 = vpop.f32.mrb[0].mxu0
        %1967 = vmatprep.mubr.bf16.mxu0 0
        %1968 = vmatmul.mubr.bf16.gmra.mrb[0].mxu0 %v1820
        %v1969 = vpop.f32.mrb[0].mxu0
        %v1970 = vadd.f32 %v1853, %v1969
        %v1971 = vpop.f32.mrb[0].mxu0
        %v1972 = vpop.f32.mrb[0].mxu0
        %v1973 = vadd.f32 %v1853, %v1972
        %v1974 = vpop.f32.mrb[0].mxu0
        %1975 = vmatprep.mubr.bf16.mxu0 0
        %1976 = vmatmul.mubr.bf16.gmra.mrb[0].mxu0 %v1821
        %v1977 = vpop.f32.mrb[0].mxu0
        %v1978 = vadd.f32 %v1853, %v1977
        %v1979 = vpop.f32.mrb[0].mxu0
        %v1980 = vpop.f32.mrb[0].mxu0
        %v1981 = vadd.f32 %v1853, %v1980
        %v1982 = vpop.f32.mrb[0].mxu0
        %1983 = vmatprep.mubr.bf16.mxu0 0
        %1984 = vmatmul.mubr.bf16.gmra.mrb[0].mxu0 %v1822
        %v1985 = vpop.f32.mrb[0].mxu0
        %v1986 = vadd.f32 %v1853, %v1985
        %v1987 = vpop.f32.mrb[0].mxu0
        %v1988 = vpop.f32.mrb[0].mxu0
        %v1989 = vadd.f32 %v1853, %v1988
        %v1990 = vpop.f32.mrb[0].mxu0
        %1991 = vmatprep.mubr.bf16.mxu0 0
        %1992 = vmatmul.mubr.bf16.gmra.mrb[0].mxu0 %v1823
        %v1993 = vpop.f32.mrb[0].mxu0
        %v1994 = vadd.f32 %v1853, %v1993
        %v1995 = vpop.f32.mrb[0].mxu0
        %v1996 = vpop.f32.mrb[0].mxu0
        %v1997 = vadd.f32 %v1853, %v1996
        %v1998 = vpop.f32.mrb[0].mxu0
        %1999 = vmatprep.mubr.bf16.mxu0 0
        %2000 = vmatmul.mubr.bf16.gmra.mrb[0].mxu0 %v1824
        %v2001 = vpop.f32.mrb[0].mxu0
        %v2002 = vadd.f32 %v1853, %v2001
        %v2003 = vpop.f32.mrb[0].mxu0
        %v2004 = vpop.f32.mrb[0].mxu0
        %v2005 = vadd.f32 %v1853, %v2004
        %v2006 = vpop.f32.mrb[0].mxu0
        %2007 = vmatprep.mubr.bf16.mxu0 0
        %2008 = vmatmul.mubr.bf16.gmra.mrb[0].mxu0 %v1825
        %v2009 = vpop.f32.mrb[0].mxu0
        %v2010 = vadd.f32 %v1853, %v2009
        %v2011 = vpop.f32.mrb[0].mxu0
        %v2012 = vpop.f32.mrb[0].mxu0
        %v2013 = vadd.f32 %v1853, %v2012
        %v2014 = vpop.f32.mrb[0].mxu0
        %2015 = vmatprep.mubr.bf16.mxu0 0
        %2016 = vmatmul.mubr.bf16.gmra.mrb[0].mxu0 %v1826
        %v2017 = vpop.f32.mrb[0].mxu0
        %v2018 = vadd.f32 %v1853, %v2017
        %v2019 = vpop.f32.mrb[0].mxu0
        %v2020 = vpop.f32.mrb[0].mxu0
        %v2021 = vadd.f32 %v1853, %v2020
        %v2022 = vpop.f32.mrb[0].mxu0
        %2023 = vmatprep.mubr.bf16.mxu0 0
        %2024 = vmatmul.mubr.bf16.gmra.mrb[0].mxu0 %v1827
        %v2025 = vpop.f32.mrb[0].mxu0
        %v2026 = vadd.f32 %v1853, %v2025
        %v2027 = vpop.f32.mrb[0].mxu0
        %v2028 = vpop.f32.mrb[0].mxu0
        %v2029 = vadd.f32 %v1853, %v2028
        %v2030 = vpop.f32.mrb[0].mxu0
        %2031 = vmatprep.mubr.bf16.mxu0 0
        %2032 = vmatmul.mubr.bf16.gmra.mrb[0].mxu0 %v1828
        %v2033 = vpop.f32.mrb[0].mxu0
        %v2034 = vadd.f32 %v1853, %v2033
        %v2035 = vpop.f32.mrb[0].mxu0
        %v2036 = vpop.f32.mrb[0].mxu0
        %v2037 = vadd.f32 %v1853, %v2036
        %v2038 = vpop.f32.mrb[0].mxu0
        %2039 = vmatprep.mubr.bf16.mxu0 0
        %2040 = vmatmul.mubr.bf16.gmra.mrb[0].mxu0 %v1829
        %v2041 = vpop.f32.mrb[0].mxu0
        %v2042 = vadd.f32 %v1853, %v2041
        %v2043 = vpop.f32.mrb[0].mxu0
        %v2044 = vpop.f32.mrb[0].mxu0
        %v2045 = vadd.f32 %v1853, %v2044
        %v2046 = vpop.f32.mrb[0].mxu0
        %2047 = vmatprep.mubr.bf16.mxu0 0
        %2048 = vmatmul.mubr.bf16.gmra.mrb[0].mxu0 %v1830
        %v2049 = vpop.f32.mrb[0].mxu0
        %v2050 = vadd.f32 %v1853, %v2049
        %v2051 = vpop.f32.mrb[0].mxu0
        %v2052 = vpop.f32.mrb[0].mxu0
        %v2053 = vadd.f32 %v1853, %v2052
        %v2054 = vpop.f32.mrb[0].mxu0
        %2055 = vmatprep.mubr.bf16.mxu0 0
        %2056 = vmatmul.mubr.bf16.gmra.mrb[0].mxu0 %v1831
        %v2057 = vpop.f32.mrb[0].mxu0
        %v2058 = vadd.f32 %v1853, %v2057
        %v2059 = vpop.f32.mrb[0].mxu0
        %v2060 = vpop.f32.mrb[0].mxu0
        %v2061 = vadd.f32 %v1853, %v2060
        %v2062 = vpop.f32.mrb[0].mxu0
        %2063 = vdwg.mxu0
        %2064 = vst [vmem:[%s492] sm:$0xff] %v1938
        %2065 = vst [vmem:[%s492 + $0x8] sm:$0xff] %v1941
        %2066 = vst [vmem:[%s492 + $0x10] sm:$0xff] %v1946
        %2067 = vst [vmem:[%s492 + $0x18] sm:$0xff] %v1949
        %2068 = vst [vmem:[%s492 + $0x20] sm:$0xff] %v1954
        %2069 = vst [vmem:[%s492 + $0x28] sm:$0xff] %v1957
        %2070 = vst [vmem:[%s492 + $0x30] sm:$0xff] %v1962
        %2071 = vst [vmem:[%s492 + $0x38] sm:$0xff] %v1965
        %2072 = vst [vmem:[%s492 + $0x40] sm:$0xff] %v1970
        %2073 = vst [vmem:[%s492 + $0x48] sm:$0xff] %v1973
        %2074 = vst [vmem:[%s492 + $0x50] sm:$0xff] %v1978
        %2075 = vst [vmem:[%s492 + $0x58] sm:$0xff] %v1981
        %2076 = vst [vmem:[%s492 + $0x60] sm:$0xff] %v1986
        %2077 = vst [vmem:[%s492 + $0x68] sm:$0xff] %v1989
        %2078 = vst [vmem:[%s492 + $0x70] sm:$0xff] %v1994
        %2079 = vst [vmem:[%s492 + $0x78] sm:$0xff] %v1997
        %2080 = vst [vmem:[%s492 + $0x80] sm:$0xff] %v2002
        %2081 = vst [vmem:[%s492 + $0x88] sm:$0xff] %v2005
        %2082 = vst [vmem:[%s492 + $0x90] sm:$0xff] %v2010
        %2083 = vst [vmem:[%s492 + $0x98] sm:$0xff] %v2013
        %2084 = vst [vmem:[%s492 + $0xa0] sm:$0xff] %v2018
        %2085 = vst [vmem:[%s492 + $0xa8] sm:$0xff] %v2021
        %2086 = vst [vmem:[%s492 + $0xb0] sm:$0xff] %v2026
        %2087 = vst [vmem:[%s492 + $0xb8] sm:$0xff] %v2029
        %2088 = vst [vmem:[%s492 + $0xc0] sm:$0xff] %v2034
        %2089 = vst [vmem:[%s492 + $0xc8] sm:$0xff] %v2037
        %2090 = vst [vmem:[%s492 + $0xd0] sm:$0xff] %v2042
        %2091 = vst [vmem:[%s492 + $0xd8] sm:$0xff] %v2045
        %2092 = vst [vmem:[%s492 + $0xe0] sm:$0xff] %v2050
        %2093 = vst [vmem:[%s492 + $0xe8] sm:$0xff] %v2053
        %2094 = vst [vmem:[%s492 + $0xf0] sm:$0xff] %v2058
        %2095 = vst [vmem:[%s492 + $0xf8] sm:$0xff] %v2061
        %v2096 = vld [vmem:[%s509] sm:$0xff]
        %v2097 = vld [vmem:[%s509 + $0x8] sm:$0xff]
        %v2098 = vld [vmem:[%s509 + $0x10] sm:$0xff]
        %v2099 = vld [vmem:[%s509 + $0x18] sm:$0xff]
        %v2100 = vld [vmem:[%s509 + $0x20] sm:$0xff]
        %v2101 = vld [vmem:[%s509 + $0x28] sm:$0xff]
        %v2102 = vpack.c.bf16 %v2096, %v2096
        %v2103 = vpack.c.bf16 %v2097, %v2097
        %v2104 = vpack.c.bf16 %v2098, %v2098
        %v2105 = vpack.c.bf16 %v2099, %v2099
        %v2106 = vpack.c.bf16 %v2100, %v2100
        %v2107 = vpack.c.bf16 %v2101, %v2101
        %v2108 = vld [vmem:[%s9] sm:$0xff]
        %v2109 = vld [vmem:[%s9 + $0x8] sm:$0xff]
        %v2110 = vld [vmem:[%s9 + $0x10] sm:$0xff]
        %v2111 = vld [vmem:[%s9 + $0x18] sm:$0xff]
        %v2112 = vld [vmem:[%s9 + $0x20] sm:$0xff]
        %v2113 = vld [vmem:[%s9 + $0x28] sm:$0xff]
        %v2114 = vld [vmem:[%s9 + $0x30] sm:$0xff]
        %v2115 = vld [vmem:[%s9 + $0x38] sm:$0xff]
        %v2116 = vld [vmem:[%s9 + $0x40] sm:$0xff]
        %v2117 = vld [vmem:[%s9 + $0x48] sm:$0xff]
        %v2118 = vld [vmem:[%s9 + $0x50] sm:$0xff]
        %v2119 = vld [vmem:[%s9 + $0x58] sm:$0xff]
        %v2120 = vld [vmem:[%s9 + $0x60] sm:$0xff]
        %v2121 = vld [vmem:[%s9 + $0x68] sm:$0xff]
        %v2122 = vld [vmem:[%s9 + $0x70] sm:$0xff]
        %v2123 = vld [vmem:[%s9 + $0x78] sm:$0xff]
        %v2124 = vld [vmem:[%s9 + $0x80] sm:$0xff]
        %v2125 = vld [vmem:[%s9 + $0x88] sm:$0xff]
        %v2126 = vld [vmem:[%s9 + $0x90] sm:$0xff]
        %v2127 = vld [vmem:[%s9 + $0x98] sm:$0xff]
        %v2128 = vld [vmem:[%s9 + $0xa0] sm:$0xff]
        %v2129 = vld [vmem:[%s9 + $0xa8] sm:$0xff]
        %v2130 = vld [vmem:[%s9 + $0xb0] sm:$0xff]
        %v2131 = vld [vmem:[%s9 + $0xb8] sm:$0xff]
        %v2132 = vld [vmem:[%s9 + $0xc0] sm:$0xff]
        %v2133 = vld [vmem:[%s9 + $0xc8] sm:$0xff]
        %v2134 = vld [vmem:[%s9 + $0xd0] sm:$0xff]
        %v2135 = vld [vmem:[%s9 + $0xd8] sm:$0xff]
        %v2136 = vld [vmem:[%s9 + $0xe0] sm:$0xff]
        %v2137 = vld [vmem:[%s9 + $0xe8] sm:$0xff]
        %v2138 = vld [vmem:[%s9 + $0xf0] sm:$0xff]
        %v2139 = vld [vmem:[%s9 + $0xf8] sm:$0xff]
        %v2140 = vld [vmem:[%s9 + $0x100] sm:$0xff]
        %v2141 = vld [vmem:[%s9 + $0x108] sm:$0xff]
        %v2142 = vld [vmem:[%s9 + $0x110] sm:$0xff]
        %v2143 = vld [vmem:[%s9 + $0x118] sm:$0xff]
        %v2144 = vld [vmem:[%s9 + $0x120] sm:$0xff]
        %v2145 = vld [vmem:[%s9 + $0x128] sm:$0xff]
        %v2146 = vld [vmem:[%s9 + $0x130] sm:$0xff]
        %v2147 = vld [vmem:[%s9 + $0x138] sm:$0xff]
        %v2148 = vld [vmem:[%s9 + $0x140] sm:$0xff]
        %v2149 = vld [vmem:[%s9 + $0x148] sm:$0xff]
        %v2150 = vld [vmem:[%s9 + $0x150] sm:$0xff]
        %v2151 = vld [vmem:[%s9 + $0x158] sm:$0xff]
        %v2152 = vld [vmem:[%s9 + $0x160] sm:$0xff]
        %v2153 = vld [vmem:[%s9 + $0x168] sm:$0xff]
        %v2154 = vld [vmem:[%s9 + $0x170] sm:$0xff]
        %v2155 = vld [vmem:[%s9 + $0x178] sm:$0xff]
        %v2156 = vld [vmem:[%s9 + $0x180] sm:$0xff]
        %v2157 = vld [vmem:[%s9 + $0x188] sm:$0xff]
        %v2158 = vld [vmem:[%s9 + $0x190] sm:$0xff]
        %v2159 = vld [vmem:[%s9 + $0x198] sm:$0xff]
        %v2160 = vld [vmem:[%s9 + $0x1a0] sm:$0xff]
        %v2161 = vld [vmem:[%s9 + $0x1a8] sm:$0xff]
        %v2162 = vld [vmem:[%s9 + $0x1b0] sm:$0xff]
        %v2163 = vld [vmem:[%s9 + $0x1b8] sm:$0xff]
        %v2164 = vld [vmem:[%s9 + $0x1c0] sm:$0xff]
        %v2165 = vld [vmem:[%s9 + $0x1c8] sm:$0xff]
        %v2166 = vld [vmem:[%s9 + $0x1d0] sm:$0xff]
        %v2167 = vld [vmem:[%s9 + $0x1d8] sm:$0xff]
        %v2168 = vld [vmem:[%s9 + $0x1e0] sm:$0xff]
        %v2169 = vld [vmem:[%s9 + $0x1e8] sm:$0xff]
        %v2170 = vld [vmem:[%s9 + $0x1f0] sm:$0xff]
        %v2171 = vld [vmem:[%s9 + $0x1f8] sm:$0xff]
        %v2172 = vld [vmem:[%s9 + $0x200] sm:$0xff]
        %v2173 = vld [vmem:[%s9 + $0x208] sm:$0xff]
        %v2174 = vld [vmem:[%s9 + $0x210] sm:$0xff]
        %v2175 = vld [vmem:[%s9 + $0x218] sm:$0xff]
        %v2176 = vld [vmem:[%s9 + $0x220] sm:$0xff]
        %v2177 = vld [vmem:[%s9 + $0x228] sm:$0xff]
        %v2178 = vld [vmem:[%s9 + $0x230] sm:$0xff]
        %v2179 = vld [vmem:[%s9 + $0x238] sm:$0xff]
        %v2180 = vld [vmem:[%s9 + $0x240] sm:$0xff]
        %v2181 = vld [vmem:[%s9 + $0x248] sm:$0xff]
        %v2182 = vld [vmem:[%s9 + $0x250] sm:$0xff]
        %v2183 = vld [vmem:[%s9 + $0x258] sm:$0xff]
        %v2184 = vld [vmem:[%s9 + $0x260] sm:$0xff]
        %v2185 = vld [vmem:[%s9 + $0x268] sm:$0xff]
        %v2186 = vld [vmem:[%s9 + $0x270] sm:$0xff]
        %v2187 = vld [vmem:[%s9 + $0x278] sm:$0xff]
        %v2188 = vld [vmem:[%s9 + $0x280] sm:$0xff]
        %v2189 = vld [vmem:[%s9 + $0x288] sm:$0xff]
        %v2190 = vld [vmem:[%s9 + $0x290] sm:$0xff]
        %v2191 = vld [vmem:[%s9 + $0x298] sm:$0xff]
        %v2192 = vld [vmem:[%s9 + $0x2a0] sm:$0xff]
        %v2193 = vld [vmem:[%s9 + $0x2a8] sm:$0xff]
        %v2194 = vld [vmem:[%s9 + $0x2b0] sm:$0xff]
        %v2195 = vld [vmem:[%s9 + $0x2b8] sm:$0xff]
        %v2196 = vld [vmem:[%s9 + $0x2c0] sm:$0xff]
        %v2197 = vld [vmem:[%s9 + $0x2c8] sm:$0xff]
        %v2198 = vld [vmem:[%s9 + $0x2d0] sm:$0xff]
        %v2199 = vld [vmem:[%s9 + $0x2d8] sm:$0xff]
        %v2200 = vld [vmem:[%s9 + $0x2e0] sm:$0xff]
        %v2201 = vld [vmem:[%s9 + $0x2e8] sm:$0xff]
        %v2202 = vld [vmem:[%s9 + $0x2f0] sm:$0xff]
        %v2203 = vld [vmem:[%s9 + $0x2f8] sm:$0xff]
        %v2204 = vld [vmem:[%s10] sm:$0x3]
        %v2206 = vlaneseq
        %v2207 = vshrl.u32 %v2206, 7
        %v2208 = vsub.s32 0, %v2207
        %v2209 = vrot.slane %v2204, %v2208
        %v2210 = vlaneseq
        %v2211 = vshrl.u32 %v2210, 7
        %v2212 = vsub.s32 1, %v2211
        %v2213 = vrot.slane %v2204, %v2212
        %v2312 = vunpack.c.l.b16 %v2108
        %v2313 = vunpack.c.h.b16 %v2108
        %v2314 = vunpack.c.l.b16 %v2109
        %v2315 = vunpack.c.h.b16 %v2109
        %v2316 = vunpack.c.l.b16 %v2110
        %v2317 = vunpack.c.h.b16 %v2110
        %v2318 = vunpack.c.l.b16 %v2111
        %v2319 = vunpack.c.h.b16 %v2111
        %v2320 = vunpack.c.l.b16 %v2112
        %v2321 = vunpack.c.h.b16 %v2112
        %v2322 = vunpack.c.l.b16 %v2113
        %v2323 = vunpack.c.h.b16 %v2113
        %v2324 = vunpack.c.l.b16 %v2114
        %v2325 = vunpack.c.h.b16 %v2114
        %v2326 = vunpack.c.l.b16 %v2115
        %v2327 = vunpack.c.h.b16 %v2115
        %v2328 = vunpack.c.l.b16 %v2116
        %v2329 = vunpack.c.h.b16 %v2116
        %v2330 = vunpack.c.l.b16 %v2117
        %v2331 = vunpack.c.h.b16 %v2117
        %v2332 = vunpack.c.l.b16 %v2118
        %v2333 = vunpack.c.h.b16 %v2118
        %v2334 = vunpack.c.l.b16 %v2119
        %v2335 = vunpack.c.h.b16 %v2119
        %v2336 = vunpack.c.l.b16 %v2120
        %v2337 = vunpack.c.h.b16 %v2120
        %v2338 = vunpack.c.l.b16 %v2121
        %v2339 = vunpack.c.h.b16 %v2121
        %v2340 = vunpack.c.l.b16 %v2122
        %v2341 = vunpack.c.h.b16 %v2122
        %v2342 = vunpack.c.l.b16 %v2123
        %v2343 = vunpack.c.h.b16 %v2123
        %v2344 = vunpack.c.l.b16 %v2124
        %v2345 = vunpack.c.h.b16 %v2124
        %v2346 = vunpack.c.l.b16 %v2125
        %v2347 = vunpack.c.h.b16 %v2125
        %v2348 = vunpack.c.l.b16 %v2126
        %v2349 = vunpack.c.h.b16 %v2126
        %v2350 = vunpack.c.l.b16 %v2127
        %v2351 = vunpack.c.h.b16 %v2127
        %v2352 = vunpack.c.l.b16 %v2128
        %v2353 = vunpack.c.h.b16 %v2128
        %v2354 = vunpack.c.l.b16 %v2129
        %v2355 = vunpack.c.h.b16 %v2129
        %v2356 = vunpack.c.l.b16 %v2130
        %v2357 = vunpack.c.h.b16 %v2130
        %v2358 = vunpack.c.l.b16 %v2131
        %v2359 = vunpack.c.h.b16 %v2131
        %v2360 = vunpack.c.l.b16 %v2132
        %v2361 = vunpack.c.h.b16 %v2132
        %v2362 = vunpack.c.l.b16 %v2133
        %v2363 = vunpack.c.h.b16 %v2133
        %v2364 = vunpack.c.l.b16 %v2134
        %v2365 = vunpack.c.h.b16 %v2134
        %v2366 = vunpack.c.l.b16 %v2135
        %v2367 = vunpack.c.h.b16 %v2135
        %v2368 = vunpack.c.l.b16 %v2136
        %v2369 = vunpack.c.h.b16 %v2136
        %v2370 = vunpack.c.l.b16 %v2137
        %v2371 = vunpack.c.h.b16 %v2137
        %v2372 = vunpack.c.l.b16 %v2138
        %v2373 = vunpack.c.h.b16 %v2138
        %v2374 = vunpack.c.l.b16 %v2139
        %v2375 = vunpack.c.h.b16 %v2139
        %v2376 = vunpack.c.l.b16 %v2140
        %v2377 = vunpack.c.h.b16 %v2140
        %v2378 = vunpack.c.l.b16 %v2141
        %v2379 = vunpack.c.h.b16 %v2141
        %v2380 = vunpack.c.l.b16 %v2142
        %v2381 = vunpack.c.h.b16 %v2142
        %v2382 = vunpack.c.l.b16 %v2143
        %v2383 = vunpack.c.h.b16 %v2143
        %v2384 = vunpack.c.l.b16 %v2144
        %v2385 = vunpack.c.h.b16 %v2144
        %v2386 = vunpack.c.l.b16 %v2145
        %v2387 = vunpack.c.h.b16 %v2145
        %v2388 = vunpack.c.l.b16 %v2146
        %v2389 = vunpack.c.h.b16 %v2146
        %v2390 = vunpack.c.l.b16 %v2147
        %v2391 = vunpack.c.h.b16 %v2147
        %v2392 = vunpack.c.l.b16 %v2148
        %v2393 = vunpack.c.h.b16 %v2148
        %v2394 = vunpack.c.l.b16 %v2149
        %v2395 = vunpack.c.h.b16 %v2149
        %v2396 = vunpack.c.l.b16 %v2150
        %v2397 = vunpack.c.h.b16 %v2150
        %v2398 = vunpack.c.l.b16 %v2151
        %v2399 = vunpack.c.h.b16 %v2151
        %v2400 = vunpack.c.l.b16 %v2152
        %v2401 = vunpack.c.h.b16 %v2152
        %v2402 = vunpack.c.l.b16 %v2153
        %v2403 = vunpack.c.h.b16 %v2153
        %v2404 = vunpack.c.l.b16 %v2154
        %v2405 = vunpack.c.h.b16 %v2154
        %v2406 = vunpack.c.l.b16 %v2155
        %v2407 = vunpack.c.h.b16 %v2155
        %v2408 = vunpack.c.l.b16 %v2156
        %v2409 = vunpack.c.h.b16 %v2156
        %v2410 = vunpack.c.l.b16 %v2157
        %v2411 = vunpack.c.h.b16 %v2157
        %v2412 = vunpack.c.l.b16 %v2158
        %v2413 = vunpack.c.h.b16 %v2158
        %v2414 = vunpack.c.l.b16 %v2159
        %v2415 = vunpack.c.h.b16 %v2159
        %v2416 = vunpack.c.l.b16 %v2160
        %v2417 = vunpack.c.h.b16 %v2160
        %v2418 = vunpack.c.l.b16 %v2161
        %v2419 = vunpack.c.h.b16 %v2161
        %v2420 = vunpack.c.l.b16 %v2162
        %v2421 = vunpack.c.h.b16 %v2162
        %v2422 = vunpack.c.l.b16 %v2163
        %v2423 = vunpack.c.h.b16 %v2163
        %v2424 = vunpack.c.l.b16 %v2164
        %v2425 = vunpack.c.h.b16 %v2164
        %v2426 = vunpack.c.l.b16 %v2165
        %v2427 = vunpack.c.h.b16 %v2165
        %v2428 = vunpack.c.l.b16 %v2166
        %v2429 = vunpack.c.h.b16 %v2166
        %v2430 = vunpack.c.l.b16 %v2167
        %v2431 = vunpack.c.h.b16 %v2167
        %v2432 = vunpack.c.l.b16 %v2168
        %v2433 = vunpack.c.h.b16 %v2168
        %v2434 = vunpack.c.l.b16 %v2169
        %v2435 = vunpack.c.h.b16 %v2169
        %v2436 = vunpack.c.l.b16 %v2170
        %v2437 = vunpack.c.h.b16 %v2170
        %v2438 = vunpack.c.l.b16 %v2171
        %v2439 = vunpack.c.h.b16 %v2171
        %v2440 = vunpack.c.l.b16 %v2172
        %v2441 = vunpack.c.h.b16 %v2172
        %v2442 = vunpack.c.l.b16 %v2173
        %v2443 = vunpack.c.h.b16 %v2173
        %v2444 = vunpack.c.l.b16 %v2174
        %v2445 = vunpack.c.h.b16 %v2174
        %v2446 = vunpack.c.l.b16 %v2175
        %v2447 = vunpack.c.h.b16 %v2175
        %v2448 = vunpack.c.l.b16 %v2176
        %v2449 = vunpack.c.h.b16 %v2176
        %v2450 = vunpack.c.l.b16 %v2177
        %v2451 = vunpack.c.h.b16 %v2177
        %v2452 = vunpack.c.l.b16 %v2178
        %v2453 = vunpack.c.h.b16 %v2178
        %v2454 = vunpack.c.l.b16 %v2179
        %v2455 = vunpack.c.h.b16 %v2179
        %v2456 = vunpack.c.l.b16 %v2180
        %v2457 = vunpack.c.h.b16 %v2180
        %v2458 = vunpack.c.l.b16 %v2181
        %v2459 = vunpack.c.h.b16 %v2181
        %v2460 = vunpack.c.l.b16 %v2182
        %v2461 = vunpack.c.h.b16 %v2182
        %v2462 = vunpack.c.l.b16 %v2183
        %v2463 = vunpack.c.h.b16 %v2183
        %v2464 = vunpack.c.l.b16 %v2184
        %v2465 = vunpack.c.h.b16 %v2184
        %v2466 = vunpack.c.l.b16 %v2185
        %v2467 = vunpack.c.h.b16 %v2185
        %v2468 = vunpack.c.l.b16 %v2186
        %v2469 = vunpack.c.h.b16 %v2186
        %v2470 = vunpack.c.l.b16 %v2187
        %v2471 = vunpack.c.h.b16 %v2187
        %v2472 = vunpack.c.l.b16 %v2188
        %v2473 = vunpack.c.h.b16 %v2188
        %v2474 = vunpack.c.l.b16 %v2189
        %v2475 = vunpack.c.h.b16 %v2189
        %v2476 = vunpack.c.l.b16 %v2190
        %v2477 = vunpack.c.h.b16 %v2190
        %v2478 = vunpack.c.l.b16 %v2191
        %v2479 = vunpack.c.h.b16 %v2191
        %v2480 = vunpack.c.l.b16 %v2192
        %v2481 = vunpack.c.h.b16 %v2192
        %v2482 = vunpack.c.l.b16 %v2193
        %v2483 = vunpack.c.h.b16 %v2193
        %v2484 = vunpack.c.l.b16 %v2194
        %v2485 = vunpack.c.h.b16 %v2194
        %v2486 = vunpack.c.l.b16 %v2195
        %v2487 = vunpack.c.h.b16 %v2195
        %v2488 = vunpack.c.l.b16 %v2196
        %v2489 = vunpack.c.h.b16 %v2196
        %v2490 = vunpack.c.l.b16 %v2197
        %v2491 = vunpack.c.h.b16 %v2197
        %v2492 = vunpack.c.l.b16 %v2198
        %v2493 = vunpack.c.h.b16 %v2198
        %v2494 = vunpack.c.l.b16 %v2199
        %v2495 = vunpack.c.h.b16 %v2199
        %v2496 = vunpack.c.l.b16 %v2200
        %v2497 = vunpack.c.h.b16 %v2200
        %v2498 = vunpack.c.l.b16 %v2201
        %v2499 = vunpack.c.h.b16 %v2201
        %v2500 = vunpack.c.l.b16 %v2202
        %v2501 = vunpack.c.h.b16 %v2202
        %v2502 = vunpack.c.l.b16 %v2203
        %v2503 = vunpack.c.h.b16 %v2203
        %v2504 = vpack.c.b16 %v2314, %v2312
        %v2505 = vpack.c.b16 %v2315, %v2313
        %v2506 = vpack.c.b16 %v2318, %v2316
        %v2507 = vpack.c.b16 %v2319, %v2317
        %v2508 = vpack.c.b16 %v2322, %v2320
        %v2509 = vpack.c.b16 %v2323, %v2321
        %v2510 = vpack.c.b16 %v2326, %v2324
        %v2511 = vpack.c.b16 %v2327, %v2325
        %v2512 = vpack.c.b16 %v2330, %v2328
        %v2513 = vpack.c.b16 %v2331, %v2329
        %v2514 = vpack.c.b16 %v2334, %v2332
        %v2515 = vpack.c.b16 %v2335, %v2333
        %v2516 = vpack.c.b16 %v2338, %v2336
        %v2517 = vpack.c.b16 %v2339, %v2337
        %v2518 = vpack.c.b16 %v2342, %v2340
        %v2519 = vpack.c.b16 %v2343, %v2341
        %v2520 = vpack.c.b16 %v2346, %v2344
        %v2521 = vpack.c.b16 %v2347, %v2345
        %v2522 = vpack.c.b16 %v2350, %v2348
        %v2523 = vpack.c.b16 %v2351, %v2349
        %v2524 = vpack.c.b16 %v2354, %v2352
        %v2525 = vpack.c.b16 %v2355, %v2353
        %v2526 = vpack.c.b16 %v2358, %v2356
        %v2527 = vpack.c.b16 %v2359, %v2357
        %v2528 = vpack.c.b16 %v2362, %v2360
        %v2529 = vpack.c.b16 %v2363, %v2361
        %v2530 = vpack.c.b16 %v2366, %v2364
        %v2531 = vpack.c.b16 %v2367, %v2365
        %v2532 = vpack.c.b16 %v2370, %v2368
        %v2533 = vpack.c.b16 %v2371, %v2369
        %v2534 = vpack.c.b16 %v2374, %v2372
        %v2535 = vpack.c.b16 %v2375, %v2373
        %v2536 = vpack.c.b16 %v2378, %v2376
        %v2537 = vpack.c.b16 %v2379, %v2377
        %v2538 = vpack.c.b16 %v2382, %v2380
        %v2539 = vpack.c.b16 %v2383, %v2381
        %v2540 = vpack.c.b16 %v2386, %v2384
        %v2541 = vpack.c.b16 %v2387, %v2385
        %v2542 = vpack.c.b16 %v2390, %v2388
        %v2543 = vpack.c.b16 %v2391, %v2389
        %v2544 = vpack.c.b16 %v2394, %v2392
        %v2545 = vpack.c.b16 %v2395, %v2393
        %v2546 = vpack.c.b16 %v2398, %v2396
        %v2547 = vpack.c.b16 %v2399, %v2397
        %v2548 = vpack.c.b16 %v2402, %v2400
        %v2549 = vpack.c.b16 %v2403, %v2401
        %v2550 = vpack.c.b16 %v2406, %v2404
        %v2551 = vpack.c.b16 %v2407, %v2405
        %v2552 = vpack.c.b16 %v2410, %v2408
        %v2553 = vpack.c.b16 %v2411, %v2409
        %v2554 = vpack.c.b16 %v2414, %v2412
        %v2555 = vpack.c.b16 %v2415, %v2413
        %v2556 = vpack.c.b16 %v2418, %v2416
        %v2557 = vpack.c.b16 %v2419, %v2417
        %v2558 = vpack.c.b16 %v2422, %v2420
        %v2559 = vpack.c.b16 %v2423, %v2421
        %v2560 = vpack.c.b16 %v2426, %v2424
        %v2561 = vpack.c.b16 %v2427, %v2425
        %v2562 = vpack.c.b16 %v2430, %v2428
        %v2563 = vpack.c.b16 %v2431, %v2429
        %v2564 = vpack.c.b16 %v2434, %v2432
        %v2565 = vpack.c.b16 %v2435, %v2433
        %v2566 = vpack.c.b16 %v2438, %v2436
        %v2567 = vpack.c.b16 %v2439, %v2437
        %v2568 = vpack.c.b16 %v2442, %v2440
        %v2569 = vpack.c.b16 %v2443, %v2441
        %v2570 = vpack.c.b16 %v2446, %v2444
        %v2571 = vpack.c.b16 %v2447, %v2445
        %v2572 = vpack.c.b16 %v2450, %v2448
        %v2573 = vpack.c.b16 %v2451, %v2449
        %v2574 = vpack.c.b16 %v2454, %v2452
        %v2575 = vpack.c.b16 %v2455, %v2453
        %v2576 = vpack.c.b16 %v2458, %v2456
        %v2577 = vpack.c.b16 %v2459, %v2457
        %v2578 = vpack.c.b16 %v2462, %v2460
        %v2579 = vpack.c.b16 %v2463, %v2461
        %v2580 = vpack.c.b16 %v2466, %v2464
        %v2581 = vpack.c.b16 %v2467, %v2465
        %v2582 = vpack.c.b16 %v2470, %v2468
        %v2583 = vpack.c.b16 %v2471, %v2469
        %v2584 = vpack.c.b16 %v2474, %v2472
        %v2585 = vpack.c.b16 %v2475, %v2473
        %v2586 = vpack.c.b16 %v2478, %v2476
        %v2587 = vpack.c.b16 %v2479, %v2477
        %v2588 = vpack.c.b16 %v2482, %v2480
        %v2589 = vpack.c.b16 %v2483, %v2481
        %v2590 = vpack.c.b16 %v2486, %v2484
        %v2591 = vpack.c.b16 %v2487, %v2485
        %v2592 = vpack.c.b16 %v2490, %v2488
        %v2593 = vpack.c.b16 %v2491, %v2489
        %v2594 = vpack.c.b16 %v2494, %v2492
        %v2595 = vpack.c.b16 %v2495, %v2493
        %v2596 = vpack.c.b16 %v2498, %v2496
        %v2597 = vpack.c.b16 %v2499, %v2497
        %v2598 = vpack.c.b16 %v2502, %v2500
        %v2599 = vpack.c.b16 %v2503, %v2501
        %2696 = vmatprep.subr.bf16.mxu0 %v2505
        %2697 = vmatpush1.bf16.msra.mxu0 %v2504
        %2698 = vmatprep.subr.bf16.mxu0 %v2507
        %2699 = vmatpush1.bf16.msra.mxu0 %v2506
        %2700 = vmatprep.subr.bf16.mxu0 %v2509
        %2701 = vmatpush1.bf16.msra.mxu0 %v2508
        %2702 = vmatprep.subr.bf16.mxu0 %v2511
        %2703 = vmatpush1.bf16.msra.mxu0 %v2510
        %2704 = vmatprep.subr.bf16.mxu0 %v2513
        %2705 = vmatpush1.bf16.msra.mxu0 %v2512
        %2706 = vmatprep.subr.bf16.mxu0 %v2515
        %2707 = vmatpush1.bf16.msra.mxu0 %v2514
        %2708 = vmatprep.subr.bf16.mxu0 %v2517
        %2709 = vmatpush1.bf16.msra.mxu0 %v2516
        %2710 = vmatprep.subr.bf16.mxu0 %v2519
        %2711 = vmatpush1.bf16.msra.mxu0 %v2518
        %2712 = vmatprep.subr.bf16.mxu0 %v2521
        %2713 = vmatpush1.bf16.msra.mxu0 %v2520
        %2714 = vmatprep.subr.bf16.mxu0 %v2523
        %2715 = vmatpush1.bf16.msra.mxu0 %v2522
        %2716 = vmatprep.subr.bf16.mxu0 %v2525
        %2717 = vmatpush1.bf16.msra.mxu0 %v2524
        %2718 = vmatprep.subr.bf16.mxu0 %v2527
        %2719 = vmatpush1.bf16.msra.mxu0 %v2526
        %2720 = vmatprep.subr.bf16.mxu0 %v2529
        %2721 = vmatpush1.bf16.msra.mxu0 %v2528
        %2722 = vmatprep.subr.bf16.mxu0 %v2531
        %2723 = vmatpush1.bf16.msra.mxu0 %v2530
        %2724 = vmatprep.subr.bf16.mxu0 %v2533
        %2725 = vmatpush1.bf16.msra.mxu0 %v2532
        %2726 = vmatprep.subr.bf16.mxu0 %v2535
        %2727 = vmatpush1.bf16.msra.mxu0 %v2534
        %2728 = vmatprep.mubr.bf16.mxu0 %v2103
        %2729 = vmatmul.mubr.bf16.gmra.mrb[0].mxu0 %v2102
        %v2730 = vpop.f32.mrb[0].mxu0
        %v2731 = vadd.f32 %v2209, %v2730
        %v2732 = vpop.f32.mrb[0].mxu0
        %v2733 = vadd.f32 %v2213, %v2732
        %v2734 = vpop.f32.mrb[0].mxu0
        %v2735 = vpop.f32.mrb[0].mxu0
        %2736 = vdwg.mxu0
        %2737 = vmatprep.subr.bf16.mxu0 %v2537
        %2738 = vmatpush1.bf16.msra.mxu0 %v2536
        %2739 = vmatprep.subr.bf16.mxu0 %v2539
        %2740 = vmatpush1.bf16.msra.mxu0 %v2538
        %2741 = vmatprep.subr.bf16.mxu0 %v2541
        %2742 = vmatpush1.bf16.msra.mxu0 %v2540
        %2743 = vmatprep.subr.bf16.mxu0 %v2543
        %2744 = vmatpush1.bf16.msra.mxu0 %v2542
        %2745 = vmatprep.subr.bf16.mxu0 %v2545
        %2746 = vmatpush1.bf16.msra.mxu0 %v2544
        %2747 = vmatprep.subr.bf16.mxu0 %v2547
        %2748 = vmatpush1.bf16.msra.mxu0 %v2546
        %2749 = vmatprep.subr.bf16.mxu0 %v2549
        %2750 = vmatpush1.bf16.msra.mxu0 %v2548
        %2751 = vmatprep.subr.bf16.mxu0 %v2551
        %2752 = vmatpush1.bf16.msra.mxu0 %v2550
        %2753 = vmatprep.subr.bf16.mxu0 %v2553
        %2754 = vmatpush1.bf16.msra.mxu0 %v2552
        %2755 = vmatprep.subr.bf16.mxu0 %v2555
        %2756 = vmatpush1.bf16.msra.mxu0 %v2554
        %2757 = vmatprep.subr.bf16.mxu0 %v2557
        %2758 = vmatpush1.bf16.msra.mxu0 %v2556
        %2759 = vmatprep.subr.bf16.mxu0 %v2559
        %2760 = vmatpush1.bf16.msra.mxu0 %v2558
        %2761 = vmatprep.subr.bf16.mxu0 %v2561
        %2762 = vmatpush1.bf16.msra.mxu0 %v2560
        %2763 = vmatprep.subr.bf16.mxu0 %v2563
        %2764 = vmatpush1.bf16.msra.mxu0 %v2562
        %2765 = vmatprep.subr.bf16.mxu0 %v2565
        %2766 = vmatpush1.bf16.msra.mxu0 %v2564
        %2767 = vmatprep.subr.bf16.mxu0 %v2567
        %2768 = vmatpush1.bf16.msra.mxu0 %v2566
        %2769 = vmatprep.mubr.bf16.mxu0 %v2105
        %2770 = vmatmul.mubr.bf16.gmra.mrb[0].mxu0 %v2104
        %v2771 = vpop.f32.mrb[0].mxu0
        %v2772 = vadd.f32 %v2731, %v2771
        %v2773 = vpop.f32.mrb[0].mxu0
        %v2774 = vadd.f32 %v2733, %v2773
        %v2775 = vpop.f32.mrb[0].mxu0
        %v2776 = vpop.f32.mrb[0].mxu0
        %2777 = vdwg.mxu0
        %2778 = vmatprep.subr.bf16.mxu0 %v2569
        %2779 = vmatpush1.bf16.msra.mxu0 %v2568
        %2780 = vmatprep.subr.bf16.mxu0 %v2571
        %2781 = vmatpush1.bf16.msra.mxu0 %v2570
        %2782 = vmatprep.subr.bf16.mxu0 %v2573
        %2783 = vmatpush1.bf16.msra.mxu0 %v2572
        %2784 = vmatprep.subr.bf16.mxu0 %v2575
        %2785 = vmatpush1.bf16.msra.mxu0 %v2574
        %2786 = vmatprep.subr.bf16.mxu0 %v2577
        %2787 = vmatpush1.bf16.msra.mxu0 %v2576
        %2788 = vmatprep.subr.bf16.mxu0 %v2579
        %2789 = vmatpush1.bf16.msra.mxu0 %v2578
        %2790 = vmatprep.subr.bf16.mxu0 %v2581
        %2791 = vmatpush1.bf16.msra.mxu0 %v2580
        %2792 = vmatprep.subr.bf16.mxu0 %v2583
        %2793 = vmatpush1.bf16.msra.mxu0 %v2582
        %2794 = vmatprep.subr.bf16.mxu0 %v2585
        %2795 = vmatpush1.bf16.msra.mxu0 %v2584
        %2796 = vmatprep.subr.bf16.mxu0 %v2587
        %2797 = vmatpush1.bf16.msra.mxu0 %v2586
        %2798 = vmatprep.subr.bf16.mxu0 %v2589
        %2799 = vmatpush1.bf16.msra.mxu0 %v2588
        %2800 = vmatprep.subr.bf16.mxu0 %v2591
        %2801 = vmatpush1.bf16.msra.mxu0 %v2590
        %2802 = vmatprep.subr.bf16.mxu0 %v2593
        %2803 = vmatpush1.bf16.msra.mxu0 %v2592
        %2804 = vmatprep.subr.bf16.mxu0 %v2595
        %2805 = vmatpush1.bf16.msra.mxu0 %v2594
        %2806 = vmatprep.subr.bf16.mxu0 %v2597
        %2807 = vmatpush1.bf16.msra.mxu0 %v2596
        %2808 = vmatprep.subr.bf16.mxu0 %v2599
        %2809 = vmatpush1.bf16.msra.mxu0 %v2598
        %2810 = vmatprep.mubr.bf16.mxu0 %v2107
        %2811 = vmatmul.mubr.bf16.gmra.mrb[0].mxu0 %v2106
        %v2812 = vpop.f32.mrb[0].mxu0
        %v2813 = vadd.f32 %v2772, %v2812
        %v2814 = vpop.f32.mrb[0].mxu0
        %v2815 = vadd.f32 %v2774, %v2814
        %v2816 = vpop.f32.mrb[0].mxu0
        %v2817 = vpop.f32.mrb[0].mxu0
        %2818 = vdwg.mxu0
        %v2819 = vmax.f32 %v2813, 0.0
        %v2820 = vmax.f32 %v2815, 0.0
        %v2821 = vpack.c.bf16 %v2819, %v2819
        %v2822 = vpack.c.bf16 %v2820, %v2820
        %v2823 = vld [vmem:[%s11] sm:$0xff]
        %v2824 = vld [vmem:[%s11 + $0x8] sm:$0xff]
        %v2825 = vld [vmem:[%s11 + $0x10] sm:$0xff]
        %v2826 = vld [vmem:[%s11 + $0x18] sm:$0xff]
        %v2827 = vld [vmem:[%s11 + $0x20] sm:$0xff]
        %v2828 = vld [vmem:[%s11 + $0x28] sm:$0xff]
        %v2829 = vld [vmem:[%s11 + $0x30] sm:$0xff]
        %v2830 = vld [vmem:[%s11 + $0x38] sm:$0xff]
        %v2831 = vld [vmem:[%s11 + $0x40] sm:$0xff]
        %v2832 = vld [vmem:[%s11 + $0x48] sm:$0xff]
        %v2833 = vld [vmem:[%s11 + $0x50] sm:$0xff]
        %v2834 = vld [vmem:[%s11 + $0x58] sm:$0xff]
        %v2835 = vld [vmem:[%s11 + $0x60] sm:$0xff]
        %v2836 = vld [vmem:[%s11 + $0x68] sm:$0xff]
        %v2837 = vld [vmem:[%s11 + $0x70] sm:$0xff]
        %v2838 = vld [vmem:[%s11 + $0x78] sm:$0xff]
        %v2839 = vld [vmem:[%s11 + $0x80] sm:$0xff]
        %v2840 = vld [vmem:[%s11 + $0x88] sm:$0xff]
        %v2841 = vld [vmem:[%s11 + $0x90] sm:$0xff]
        %v2842 = vld [vmem:[%s11 + $0x98] sm:$0xff]
        %v2843 = vld [vmem:[%s11 + $0xa0] sm:$0xff]
        %v2844 = vld [vmem:[%s11 + $0xa8] sm:$0xff]
        %v2845 = vld [vmem:[%s11 + $0xb0] sm:$0xff]
        %v2846 = vld [vmem:[%s11 + $0xb8] sm:$0xff]
        %v2847 = vld [vmem:[%s11 + $0xc0] sm:$0xff]
        %v2848 = vld [vmem:[%s11 + $0xc8] sm:$0xff]
        %v2849 = vld [vmem:[%s11 + $0xd0] sm:$0xff]
        %v2850 = vld [vmem:[%s11 + $0xd8] sm:$0xff]
        %v2851 = vld [vmem:[%s11 + $0xe0] sm:$0xff]
        %v2852 = vld [vmem:[%s11 + $0xe8] sm:$0xff]
        %v2853 = vld [vmem:[%s11 + $0xf0] sm:$0xff]
        %v2854 = vld [vmem:[%s11 + $0xf8] sm:$0xff]
        %v2855 = vld [vmem:[%s12] sm:$0x3]
        %v2857 = vlaneseq
        %v2858 = vshrl.u32 %v2857, 7
        %v2859 = vsub.s32 0, %v2858
        %v2860 = vrot.slane %v2855, %v2859
        %v2861 = vlaneseq
        %v2862 = vshrl.u32 %v2861, 7
        %v2863 = vsub.s32 1, %v2862
        %v2864 = vrot.slane %v2855, %v2863
        %v2899 = vunpack.c.l.b16 %v2823
        %v2900 = vunpack.c.h.b16 %v2823
        %v2901 = vunpack.c.l.b16 %v2824
        %v2902 = vunpack.c.h.b16 %v2824
        %v2903 = vunpack.c.l.b16 %v2825
        %v2904 = vunpack.c.h.b16 %v2825
        %v2905 = vunpack.c.l.b16 %v2826
        %v2906 = vunpack.c.h.b16 %v2826
        %v2907 = vunpack.c.l.b16 %v2827
        %v2908 = vunpack.c.h.b16 %v2827
        %v2909 = vunpack.c.l.b16 %v2828
        %v2910 = vunpack.c.h.b16 %v2828
        %v2911 = vunpack.c.l.b16 %v2829
        %v2912 = vunpack.c.h.b16 %v2829
        %v2913 = vunpack.c.l.b16 %v2830
        %v2914 = vunpack.c.h.b16 %v2830
        %v2915 = vunpack.c.l.b16 %v2831
        %v2916 = vunpack.c.h.b16 %v2831
        %v2917 = vunpack.c.l.b16 %v2832
        %v2918 = vunpack.c.h.b16 %v2832
        %v2919 = vunpack.c.l.b16 %v2833
        %v2920 = vunpack.c.h.b16 %v2833
        %v2921 = vunpack.c.l.b16 %v2834
        %v2922 = vunpack.c.h.b16 %v2834
        %v2923 = vunpack.c.l.b16 %v2835
        %v2924 = vunpack.c.h.b16 %v2835
        %v2925 = vunpack.c.l.b16 %v2836
        %v2926 = vunpack.c.h.b16 %v2836
        %v2927 = vunpack.c.l.b16 %v2837
        %v2928 = vunpack.c.h.b16 %v2837
        %v2929 = vunpack.c.l.b16 %v2838
        %v2930 = vunpack.c.h.b16 %v2838
        %v2931 = vunpack.c.l.b16 %v2839
        %v2932 = vunpack.c.h.b16 %v2839
        %v2933 = vunpack.c.l.b16 %v2840
        %v2934 = vunpack.c.h.b16 %v2840
        %v2935 = vunpack.c.l.b16 %v2841
        %v2936 = vunpack.c.h.b16 %v2841
        %v2937 = vunpack.c.l.b16 %v2842
        %v2938 = vunpack.c.h.b16 %v2842
        %v2939 = vunpack.c.l.b16 %v2843
        %v2940 = vunpack.c.h.b16 %v2843
        %v2941 = vunpack.c.l.b16 %v2844
        %v2942 = vunpack.c.h.b16 %v2844
        %v2943 = vunpack.c.l.b16 %v2845
        %v2944 = vunpack.c.h.b16 %v2845
        %v2945 = vunpack.c.l.b16 %v2846
        %v2946 = vunpack.c.h.b16 %v2846
        %v2947 = vunpack.c.l.b16 %v2847
        %v2948 = vunpack.c.h.b16 %v2847
        %v2949 = vunpack.c.l.b16 %v2848
        %v2950 = vunpack.c.h.b16 %v2848
        %v2951 = vunpack.c.l.b16 %v2849
        %v2952 = vunpack.c.h.b16 %v2849
        %v2953 = vunpack.c.l.b16 %v2850
        %v2954 = vunpack.c.h.b16 %v2850
        %v2955 = vunpack.c.l.b16 %v2851
        %v2956 = vunpack.c.h.b16 %v2851
        %v2957 = vunpack.c.l.b16 %v2852
        %v2958 = vunpack.c.h.b16 %v2852
        %v2959 = vunpack.c.l.b16 %v2853
        %v2960 = vunpack.c.h.b16 %v2853
        %v2961 = vunpack.c.l.b16 %v2854
        %v2962 = vunpack.c.h.b16 %v2854
        %v2963 = vpack.c.b16 %v2901, %v2899
        %v2964 = vpack.c.b16 %v2902, %v2900
        %v2965 = vpack.c.b16 %v2905, %v2903
        %v2966 = vpack.c.b16 %v2906, %v2904
        %v2967 = vpack.c.b16 %v2909, %v2907
        %v2968 = vpack.c.b16 %v2910, %v2908
        %v2969 = vpack.c.b16 %v2913, %v2911
        %v2970 = vpack.c.b16 %v2914, %v2912
        %v2971 = vpack.c.b16 %v2917, %v2915
        %v2972 = vpack.c.b16 %v2918, %v2916
        %v2973 = vpack.c.b16 %v2921, %v2919
        %v2974 = vpack.c.b16 %v2922, %v2920
        %v2975 = vpack.c.b16 %v2925, %v2923
        %v2976 = vpack.c.b16 %v2926, %v2924
        %v2977 = vpack.c.b16 %v2929, %v2927
        %v2978 = vpack.c.b16 %v2930, %v2928
        %v2979 = vpack.c.b16 %v2933, %v2931
        %v2980 = vpack.c.b16 %v2934, %v2932
        %v2981 = vpack.c.b16 %v2937, %v2935
        %v2982 = vpack.c.b16 %v2938, %v2936
        %v2983 = vpack.c.b16 %v2941, %v2939
        %v2984 = vpack.c.b16 %v2942, %v2940
        %v2985 = vpack.c.b16 %v2945, %v2943
        %v2986 = vpack.c.b16 %v2946, %v2944
        %v2987 = vpack.c.b16 %v2949, %v2947
        %v2988 = vpack.c.b16 %v2950, %v2948
        %v2989 = vpack.c.b16 %v2953, %v2951
        %v2990 = vpack.c.b16 %v2954, %v2952
        %v2991 = vpack.c.b16 %v2957, %v2955
        %v2992 = vpack.c.b16 %v2958, %v2956
        %v2993 = vpack.c.b16 %v2961, %v2959
        %v2994 = vpack.c.b16 %v2962, %v2960
        %3027 = vmatprep.subr.bf16.mxu0 %v2964
        %3028 = vmatpush1.bf16.msra.mxu0 %v2963
        %3029 = vmatprep.subr.bf16.mxu0 %v2966
        %3030 = vmatpush1.bf16.msra.mxu0 %v2965
        %3031 = vmatprep.subr.bf16.mxu0 %v2968
        %3032 = vmatpush1.bf16.msra.mxu0 %v2967
        %3033 = vmatprep.subr.bf16.mxu0 %v2970
        %3034 = vmatpush1.bf16.msra.mxu0 %v2969
        %3035 = vmatprep.subr.bf16.mxu0 %v2972
        %3036 = vmatpush1.bf16.msra.mxu0 %v2971
        %3037 = vmatprep.subr.bf16.mxu0 %v2974
        %3038 = vmatpush1.bf16.msra.mxu0 %v2973
        %3039 = vmatprep.subr.bf16.mxu0 %v2976
        %3040 = vmatpush1.bf16.msra.mxu0 %v2975
        %3041 = vmatprep.subr.bf16.mxu0 %v2978
        %3042 = vmatpush1.bf16.msra.mxu0 %v2977
        %3043 = vmatprep.subr.bf16.mxu0 %v2980
        %3044 = vmatpush1.bf16.msra.mxu0 %v2979
        %3045 = vmatprep.subr.bf16.mxu0 %v2982
        %3046 = vmatpush1.bf16.msra.mxu0 %v2981
        %3047 = vmatprep.subr.bf16.mxu0 %v2984
        %3048 = vmatpush1.bf16.msra.mxu0 %v2983
        %3049 = vmatprep.subr.bf16.mxu0 %v2986
        %3050 = vmatpush1.bf16.msra.mxu0 %v2985
        %3051 = vmatprep.subr.bf16.mxu0 %v2988
        %3052 = vmatpush1.bf16.msra.mxu0 %v2987
        %3053 = vmatprep.subr.bf16.mxu0 %v2990
        %3054 = vmatpush1.bf16.msra.mxu0 %v2989
        %3055 = vmatprep.subr.bf16.mxu0 %v2992
        %3056 = vmatpush1.bf16.msra.mxu0 %v2991
        %3057 = vmatprep.subr.bf16.mxu0 %v2994
        %3058 = vmatpush1.bf16.msra.mxu0 %v2993
        %3059 = vmatprep.mubr.bf16.mxu0 %v2822
        %3060 = vmatmul.mubr.bf16.gmra.mrb[0].mxu0 %v2821
        %v3061 = vpop.f32.mrb[0].mxu0
        %v3062 = vadd.f32 %v2860, %v3061
        %v3063 = vpop.f32.mrb[0].mxu0
        %v3064 = vadd.f32 %v2864, %v3063
        %v3065 = vpop.f32.mrb[0].mxu0
        %v3066 = vpop.f32.mrb[0].mxu0
        %3067 = vdwg.mxu0
        %v3068 = vmax.f32 %v3062, 0.0
        %v3069 = vmax.f32 %v3064, 0.0
        %v3070 = vmul.f32 %v3068, %v3068
        %v3071 = vmul.f32 %v3069, %v3069
        %v3072 = vadd.f32 %v3070, %v3071
        %3073 = vadd.xlane.f32.xlu0 %v3072
        %v3074 = vpop.xlane.xlu0 %3073
        %v3075 = vmax.f32 %v3074, 1e-24
        %v3076 = vrsqrt.pop %v3075
        %v3077 = vmul.f32 %v3068, %v3076
        %v3078 = vmul.f32 %v3069, %v3076
        %v3079 = vld [vmem:[%s513] sm:$0xff]
        %3081 = vset.pattern.permute.xlu0 0
        %3082 = vperm.xlu0 %3081, %v3079
        %v3083 = vpop.permute.xlu0 %3082
        %v3085 = vmul.f32 %v3077, %v3083
        %v3086 = vmul.f32 %v3078, %v3083
        %3087 = vst [vmem:[%s499] sm:$0xff] %v3085
        %3088 = vst [vmem:[%s499 + $0x8] sm:$0xff] %v3086
        %s3089 = sand.u32 %s328, 1
        %s3090 = scalar_lea.sflag [#allocation3], %s3089
        %s3091 = sand.u32 %s328, 1
        %s3092 = smul.addr %s3091, 256
        %s3093 = scalar_lea.vmem [#allocation2], %s3092
        %s3094 = sand.u32 %s354, 1
        %s3095 = scalar_lea.sflag [#allocation5], %s3094
        %s3096 = sand.u32 %s354, 1
        %s3097 = smul.addr %s3096, 16
        %s3098 = scalar_lea.vmem [#allocation4], %s3097
        // Predicated region
        $region73: #{grounding_forward.1} parent=71 // pred_check
          %p3099 = pneg %p338
        $region74: #{grounding_forward.1} parent=71 // pred_check_branch
          %3101 = sbr.rel (%p3099) target = $region76
        $region75: #{grounding_forward.1} parent=71 // pred_region
          %s3103 = ssub.s32 4096, 4096
          %3104 = vsyncadd %s3090, %s3103
          %s3105 = smul.addr %s32, 32
          %s3106 = smul.addr %s3105, 128
          %s3107 = scalar_lea.hbm %s13, %s3106
          %s3108 = sshll.u32 %s3093, 4
          %s3109 = int_to_ptr.vmem [resolvable:$true] %s3108
          %3114 = dma.vmem_to_hbm [thread:$0]  %s3109, 4096, %s3107, %s3090, 128, 128, 8
        $region76: #{grounding_forward.1} parent=71 // pred_fallthru
          _
        // Predicated region
        $region77: #{grounding_forward.1} parent=71 // pred_check
          %p3115 = pneg %p364
        $region78: #{grounding_forward.1} parent=71 // pred_check_branch
          %3117 = sbr.rel (%p3115) target = $region80
        $region79: #{grounding_forward.1} parent=71 // pred_region
          %s3119 = ssub.s32 256, 256
          %3120 = vsyncadd %s3095, %s3119
          %s3121 = smul.addr %s32, 2
          %s3122 = smul.addr %s3121, 128
          %s3123 = scalar_lea.hbm %s14, %s3122
          %s3125 = sshll.u32 %s3098, 4
          %s3126 = int_to_ptr.vmem [resolvable:$true] %s3125
          %3128 = dma.vmem_to_hbm [thread:$0]  %s3126, 256, %s3123, %s3095
        $region80: #{grounding_forward.1} parent=71 // pred_fallthru
          _
      $region72: #{grounding_forward.1} parent=5 // pred_fallthru
        _
      %p3129 = scmp.le.s32.totalorder 2, %s27
      // Predicated region
      $region81: #{grounding_forward.1} parent=5 // pred_check
        %p3130 = pneg %p3129
      $region82: #{grounding_forward.1} parent=5 // pred_check_branch
        %3132 = sbr.rel (%p3130) target = $region84
      $region83: #{grounding_forward.1} parent=5 // pred_region
        %s3133 = ssub.s32 %s27, 2
        // Predicated region
        $region85: #{grounding_forward.1} parent=83 // pred_check
          %p3134 = pneg %p344
        $region86: #{grounding_forward.1} parent=83 // pred_check_branch
          %3136 = sbr.rel (%p3134) target = $region88
        $region87: #{grounding_forward.1} parent=83 // pred_region
          %s3137 = sand.u32 %s329, 1
          %s3138 = scalar_lea.sflag [#allocation3], %s3137
          %s3139 = sand.u32 %s329, 1
          %s3140 = smul.addr %s3139, 256
          %s3141 = scalar_lea.vmem [#allocation2], %s3140
          %3142 = dma.done %s3138, 4096
        $region88: #{grounding_forward.1} parent=83 // pred_fallthru
          _
        // Predicated region
        $region89: #{grounding_forward.1} parent=83 // pred_check
          %p3143 = pneg %p370
        $region90: #{grounding_forward.1} parent=83 // pred_check_branch
          %3145 = sbr.rel (%p3143) target = $region92
        $region91: #{grounding_forward.1} parent=83 // pred_region
          %s3146 = sand.u32 %s355, 1
          %s3147 = scalar_lea.sflag [#allocation5], %s3146
          %s3148 = sand.u32 %s355, 1
          %s3149 = smul.addr %s3148, 16
          %s3150 = scalar_lea.vmem [#allocation4], %s3149
          %3151 = dma.done %s3147, 256
        $region92: #{grounding_forward.1} parent=83 // pred_fallthru
          _
      $region84: #{grounding_forward.1} parent=5 // pred_fallthru
        _
    $region6: #{grounding_forward.1} parent=1 // loop_footer
      %s31 = sadd.s32 1, %s27
    $region7: #{grounding_forward.1} parent=1 // loop_footer_branch
      %26 = sbr.rel target = $region3
    $region8: #{grounding_forward.1} parent=1 // loop_exit
      _
    %3152 = vsyncpa [#allocation3], 1
    %s3153 = scalar_lea.sflag [#allocation3], 1
    %3154 = vsyncpa %s3153, 1
    %3155 = vsyncpa [#allocation5], 1
    %s3156 = scalar_lea.sflag [#allocation5], 1
    %3157 = vsyncpa %s3156, 1

</llo_original>
